<compile_context>
chip_gen: v7x
topology: tpu7x:2x2x1
jax: 0.10.0
libtpu: 0.0.40
codegen_flags: <defaults>
</compile_context>

<pallas_src>
import functools

import jax
import jax.numpy as jnp
from jax.experimental import pallas as pl
from jax.experimental.pallas import tpu as pltpu


# ----------------------------- Pallas kernel ---------------------------------


def _conv3x3_relu(h, w_ref, b_ref, masks, W, nhw):
    """3x3 'SAME' conv + bias + ReLU on a (Cin, nhw) activation slab.

    w_ref: (9, Cout, Cin) tap-major weights.  Each tap is one MXU matmul
    accumulated in fp32; spatial shifts are XLU lane rotations with precomputed
    boundary masks (kills both image-border and cross-ROI leakage).
    """
    acc = None
    mi = 0
    for t in range(9):
        sy, sx = t // 3 - 1, t % 3 - 1
        off = sy * W + sx
        if off == 0:
            tap = h
        else:
            tap = pltpu.roll(h, shift=(-off) % nhw, axis=1) * masks[mi]
            mi += 1
        d = jnp.dot(w_ref[t], tap, preferred_element_type=jnp.float32)
        acc = d if acc is None else acc + d
    return jnp.maximum(acc + b_ref[...], 0.0)


def _keypoint_head_kernel(H, W,
                          x_ref, m_ref, w1_ref, b1_ref, w2_ref, b2_ref,
                          wp_ref, bp_ref, o_ref):
    # x_ref: (Cin, nb*H*W) f32 -- channels on sublanes, flattened spatial on lanes.
    nhw = x_ref.shape[-1]
    x = x_ref[...]
    masks = [m_ref[t:t + 1, :] for t in range(8)]   # (1, nhw) each; shared by both convs

    h1 = _conv3x3_relu(x, w1_ref, b1_ref, masks, W, nhw)    # (Cmid, nhw)
    h2 = _conv3x3_relu(h1, w2_ref, b2_ref, masks, W, nhw)   # (Cmid, nhw)

    # 1x1 predictor -> padded keypoint logits (Kpad, nhw); dense lane/sublane store.
    o_ref[...] = (jnp.dot(wp_ref[...], h2, preferred_element_type=jnp.float32)
                  + bp_ref[...])


# ------------------------------- wrapper --------------------------------------


def _make_tap_masks(H, W, blk, dtype=jnp.float32):
    """(8, blk) multiplicative masks for the 8 non-centre taps of a 3x3 'SAME' conv."""
    p = jnp.arange(blk, dtype=jnp.int32) % (H * W)   # per-ROI flat spatial index
    yy = p // W
    xx = p % W
    rows = []
    for t in range(9):
        if t == 4:
            continue
        sy, sx = t // 3 - 1, t % 3 - 1
        m = ((yy + sy >= 0) & (yy + sy < H) & (xx + sx >= 0) & (xx + sx < W))
        rows.append(m.astype(dtype))
    return jnp.stack(rows, axis=0)


def _pick_rois_per_block(N, HW, target_lanes=2048):
    """Largest divisor nb of N with 128-aligned lane extent <= target, preferring >=2 grid steps."""
    divisors = [d for d in range(1, N + 1) if N % d == 0]
    cands = [d for d in divisors if (d * HW) % 128 == 0 and d * HW <= target_lanes]
    if not cands:
        return N  # full-extent lane block (always a legal BlockSpec)
    multi = [d for d in cands if N // d >= 2]   # let both v7x TensorCores work
    return max(multi) if multi else max(cands)


def roi_keypoint_head_forward(features_nchw, params):
    """features_nchw: (N, Cin, H, W) f32 -> keypoint logits (N, K, H, W) f32."""
    N, Cin, H, W = features_nchw.shape
    w1, b1, w2, b2, wp, bp = params            # HWIO conv weights, (C,) biases
    Cmid = w1.shape[-1]
    K = wp.shape[-1]
    HW = H * W
    Kpad = max(8, ((K + 7) // 8) * 8)          # dense sublane tile for the output

    nb = _pick_rois_per_block(N, HW)
    blk = nb * HW

    # Layout: NCHW -> (Cin, N*H*W); single XLA transpose, reshape is free.
    # TODO(synk): for 128-aligned HW this transpose could be dropped with a
    # Squeezed-N BlockSpec over raw (N, Cin, HW) input.
    x = jnp.transpose(features_nchw, (1, 0, 2, 3)).reshape(Cin, N * HW)
    x = x.astype(jnp.float32)

    # Conv weights -> tap-major (9, Cout, Cin); predictor padded to Kpad rows.
    w1k = jnp.transpose(w1, (0, 1, 3, 2)).reshape(9, Cmid, Cin).astype(jnp.float32)
    w2k = jnp.transpose(w2, (0, 1, 3, 2)).reshape(9, Cmid, Cmid).astype(jnp.float32)
    wpk = jnp.zeros((Kpad, Cmid), jnp.float32).at[:K].set(wp.T.astype(jnp.float32))
    b1k = b1.reshape(Cmid, 1).astype(jnp.float32)
    b2k = b2.reshape(Cmid, 1).astype(jnp.float32)
    bpk = jnp.zeros((Kpad, 1), jnp.float32).at[:K].set(bp.reshape(K, 1).astype(jnp.float32))

    masks = _make_tap_masks(H, W, blk)          # (8, blk), identical for every grid step

    # Resident (constant-index) inputs get a single VMEM buffer.
    const_spec = lambda shape: pl.BlockSpec(
        shape, lambda n: tuple(0 for _ in shape), pipeline_mode=pl.Buffered(1))

    # VMEM budget (f32 everywhere): double-buffered x/out tiles, single-buffered
    # weights/masks, plus activation headroom.  Clamp to v7x's 64 MiB physical VMEM.
    f32b = 4
    est = (2 * Cin * blk + 2 * Kpad * blk + 8 * blk
           + 9 * Cmid * Cin + 9 * Cmid * Cmid + Kpad * Cmid + 2 * Cmid + Kpad
           + 4 * Cmid * blk) * f32b
    vmem_bytes = int(min(max(2 * est, 16 << 20), 64 << 20))

    flops = 2 * N * HW * (9 * Cin * Cmid + 9 * Cmid * Cmid + Cmid * Kpad)
    bytes_accessed = f32b * (Cin * N * HW + Kpad * N * HW + 8 * blk
                             + 9 * Cmid * (Cin + Cmid) + Kpad * Cmid)

    kernel = functools.partial(_keypoint_head_kernel, H, W)
    out = pl.pallas_call(
        kernel,
        out_shape=jax.ShapeDtypeStruct((Kpad, N * HW), jnp.float32),
        grid_spec=pltpu.PrefetchScalarGridSpec(
            num_scalar_prefetch=0,
            grid=(N // nb,),
            in_specs=[
                pl.BlockSpec((Cin, blk), lambda n: (0, n)),
                const_spec(masks.shape),
                const_spec(w1k.shape),
                const_spec(b1k.shape),
                const_spec(w2k.shape),
                const_spec(b2k.shape),
                const_spec(wpk.shape),
                const_spec(bpk.shape),
            ],
            out_specs=pl.BlockSpec((Kpad, blk), lambda n: (0, n)),
        ),
        compiler_params=pltpu.CompilerParams(
            dimension_semantics=("parallel",),          # ROI blocks independent
            vmem_limit_bytes=vmem_bytes),
        cost_estimate=pl.CostEstimate(flops=flops, transcendentals=0,
                                      bytes_accessed=bytes_accessed),
    )(x, masks, w1k, b1k, w2k, b2k, wpk, bpk)

    # (Kpad, N*H*W) -> drop pad rows -> PyTorch keypoint-logits convention (N, K, H, W).
    return jnp.transpose(out[:K].reshape(K, N, H, W), (1, 0, 2, 3))


# --------------------------- pure-JAX reference --------------------------------


def _reference_forward(features_nchw, params):
    w1, b1, w2, b2, wp, bp = params
    x = jnp.transpose(features_nchw, (0, 2, 3, 1))            # NHWC

    def conv(h, w, b):
        y = jax.lax.conv_general_dilated(
            h, w, window_strides=(1, 1), padding="SAME",
            dimension_numbers=("NHWC", "HWIO", "NHWC"))
        return jax.nn.relu(y + b.reshape(1, 1, 1, -1))

    h = conv(x, w1, b1)
    h = conv(h, w2, b2)
    logits = jnp.einsum("nhwc,ck->nhwk", h, wp) + bp.reshape(1, 1, 1, -1)
    return jnp.transpose(logits, (0, 3, 1, 2))


# ------------------------------- parameters ------------------------------------


def make_params(key, in_channels, conv_dim, num_keypoints):
    k1, k2, k3, k4, k5, k6 = jax.random.split(key, 6)
    w1 = jax.random.normal(k1, (3, 3, in_channels, conv_dim), jnp.float32) * 0.1
    b1 = jax.random.normal(k2, (conv_dim,), jnp.float32) * 0.1
    w2 = jax.random.normal(k3, (3, 3, conv_dim, conv_dim), jnp.float32) * 0.1
    b2 = jax.random.normal(k4, (conv_dim,), jnp.float32) * 0.1
    wp = jax.random.normal(k5, (conv_dim, num_keypoints), jnp.float32) * 0.1
    bp = jax.random.normal(k6, (num_keypoints,), jnp.float32) * 0.1
    return (w1, b1, w2, b2, wp, bp)


if __name__ == "__main__":
    # 2 ROIs, in_channels=4, ROI feature resolution 16x16, conv dim 32, 17 keypoints.
    N_ROIS, IN_CH, H, W = 2, 4, 16, 16
    CONV_DIM, NUM_KP = 32, 17

    key = jax.random.PRNGKey(0)
    k_feat, k_par = jax.random.split(key)
    features = jax.random.normal(k_feat, (N_ROIS, IN_CH, H, W), jnp.float32)
    params = make_params(k_par, IN_CH, CONV_DIM, NUM_KP)

    fwd = jax.jit(roi_keypoint_head_forward)
    kp_logits = jax.block_until_ready(fwd(features, params))

    ref = _reference_forward(features, params)
    assert kp_logits.shape == (N_ROIS, NUM_KP, H, W)
    max_err = float(jnp.max(jnp.abs(kp_logits - ref)))
    assert jnp.allclose(kp_logits, ref, atol=1e-3, rtol=1e-3), max_err

    print("KERNEL_OK")
</pallas_src>

<mosaic_0001>
module attributes {stable_mosaic.version = 11 : i64} {
  func.func @_keypoint_head_kernel(%arg0: i32, %arg1: memref<4x256xf32, #tpu.memory_space<vmem>>, %arg2: memref<8x256xf32, #tpu.memory_space<vmem>>, %arg3: memref<9x32x4xf32, #tpu.memory_space<vmem>>, %arg4: memref<32x1xf32, #tpu.memory_space<vmem>>, %arg5: memref<9x32x32xf32, #tpu.memory_space<vmem>>, %arg6: memref<32x1xf32, #tpu.memory_space<vmem>>, %arg7: memref<24x32xf32, #tpu.memory_space<vmem>>, %arg8: memref<24x1xf32, #tpu.memory_space<vmem>>, %arg9: memref<24x256xf32, #tpu.memory_space<vmem>>) attributes {dimension_semantics = [#tpu.dimension_semantics<parallel>], iteration_bounds = array<i64: 2>, scalar_prefetch = 0 : i64, scratch_operands = 0 : i64, tpu.core_type = #tpu.core_type<tc>, window_params = [{transform_indices = @transform_0, window_bounds = array<i64: 4, 256>}, {pipeline_mode = #tpu.pipeline_mode<synchronous>, transform_indices = @transform_1, window_bounds = array<i64: 8, 256>}, {pipeline_mode = #tpu.pipeline_mode<synchronous>, transform_indices = @transform_2, window_bounds = array<i64: 9, 32, 4>}, {pipeline_mode = #tpu.pipeline_mode<synchronous>, transform_indices = @transform_3, window_bounds = array<i64: 32, 1>}, {pipeline_mode = #tpu.pipeline_mode<synchronous>, transform_indices = @transform_4, window_bounds = array<i64: 9, 32, 32>}, {pipeline_mode = #tpu.pipeline_mode<synchronous>, transform_indices = @transform_5, window_bounds = array<i64: 32, 1>}, {pipeline_mode = #tpu.pipeline_mode<synchronous>, transform_indices = @transform_6, window_bounds = array<i64: 24, 32>}, {pipeline_mode = #tpu.pipeline_mode<synchronous>, transform_indices = @transform_7, window_bounds = array<i64: 24, 1>}, {transform_indices = @transform_8, window_bounds = array<i64: 24, 256>}]} {
    %c0 = arith.constant 0 : index
    %c0_0 = arith.constant 0 : index
    %0 = vector.load %arg1[%c0, %c0_0] : memref<4x256xf32, #tpu.memory_space<vmem>>, vector<4x256xf32>
    %c0_1 = arith.constant 0 : index
    %c0_2 = arith.constant 0 : index
    %1 = vector.load %arg2[%c0_1, %c0_2] : memref<8x256xf32, #tpu.memory_space<vmem>>, vector<1x256xf32>
    %c1 = arith.constant 1 : index
    %c0_3 = arith.constant 0 : index
    %2 = vector.load %arg2[%c1, %c0_3] : memref<8x256xf32, #tpu.memory_space<vmem>>, vector<1x256xf32>
    %c2 = arith.constant 2 : index
    %c0_4 = arith.constant 0 : index
    %3 = vector.load %arg2[%c2, %c0_4] : memref<8x256xf32, #tpu.memory_space<vmem>>, vector<1x256xf32>
    %c3 = arith.constant 3 : index
    %c0_5 = arith.constant 0 : index
    %4 = vector.load %arg2[%c3, %c0_5] : memref<8x256xf32, #tpu.memory_space<vmem>>, vector<1x256xf32>
    %c4 = arith.constant 4 : index
    %c0_6 = arith.constant 0 : index
    %5 = vector.load %arg2[%c4, %c0_6] : memref<8x256xf32, #tpu.memory_space<vmem>>, vector<1x256xf32>
    %c5 = arith.constant 5 : index
    %c0_7 = arith.constant 0 : index
    %6 = vector.load %arg2[%c5, %c0_7] : memref<8x256xf32, #tpu.memory_space<vmem>>, vector<1x256xf32>
    %c6 = arith.constant 6 : index
    %c0_8 = arith.constant 0 : index
    %7 = vector.load %arg2[%c6, %c0_8] : memref<8x256xf32, #tpu.memory_space<vmem>>, vector<1x256xf32>
    %c7 = arith.constant 7 : index
    %c0_9 = arith.constant 0 : index
    %8 = vector.load %arg2[%c7, %c0_9] : memref<8x256xf32, #tpu.memory_space<vmem>>, vector<1x256xf32>
    %c17_i32 = arith.constant 17 : i32
    %9 = tpu.dynamic_rotate %0 by %c17_i32 dim 1 : vector<4x256xf32>, i32 -> vector<4x256xf32>
    %10 = vector.broadcast %1 : vector<1x256xf32> to vector<4x256xf32>
    %11 = arith.mulf %9, %10 : vector<4x256xf32>
    %c0_10 = arith.constant 0 : index
    %c0_11 = arith.constant 0 : index
    %c0_12 = arith.constant 0 : index
    %12 = vector.load %arg3[%c0_10, %c0_11, %c0_12] : memref<9x32x4xf32, #tpu.memory_space<vmem>>, vector<1x32x4xf32>
    %13 = vector.shape_cast %12 : vector<1x32x4xf32> to vector<32x4xf32>
    %cst = arith.constant dense<0.000000e+00> : vector<32x256xf32>
    %14 = tpu.matmul %13, %11, %cst {dimension_numbers = #tpu.dot_dimension_numbers<[1], [0], [0], [1], [0, 0, 1, 1], [], []>} : vector<32x4xf32>, vector<4x256xf32>, vector<32x256xf32> -> vector<32x256xf32>
    %c16_i32 = arith.constant 16 : i32
    %15 = tpu.dynamic_rotate %0 by %c16_i32 dim 1 : vector<4x256xf32>, i32 -> vector<4x256xf32>
    %16 = vector.broadcast %2 : vector<1x256xf32> to vector<4x256xf32>
    %17 = arith.mulf %15, %16 : vector<4x256xf32>
    %c1_13 = arith.constant 1 : index
    %c0_14 = arith.constant 0 : index
    %c0_15 = arith.constant 0 : index
    %18 = vector.load %arg3[%c1_13, %c0_14, %c0_15] : memref<9x32x4xf32, #tpu.memory_space<vmem>>, vector<1x32x4xf32>
    %19 = vector.shape_cast %18 : vector<1x32x4xf32> to vector<32x4xf32>
    %cst_16 = arith.constant dense<0.000000e+00> : vector<32x256xf32>
    %20 = tpu.matmul %19, %17, %cst_16 {dimension_numbers = #tpu.dot_dimension_numbers<[1], [0], [0], [1], [0, 0, 1, 1], [], []>} : vector<32x4xf32>, vector<4x256xf32>, vector<32x256xf32> -> vector<32x256xf32>
    %21 = arith.addf %14, %20 : vector<32x256xf32>
    %c15_i32 = arith.constant 15 : i32
    %22 = tpu.dynamic_rotate %0 by %c15_i32 dim 1 : vector<4x256xf32>, i32 -> vector<4x256xf32>
    %23 = vector.broadcast %3 : vector<1x256xf32> to vector<4x256xf32>
    %24 = arith.mulf %22, %23 : vector<4x256xf32>
    %c2_17 = arith.constant 2 : index
    %c0_18 = arith.constant 0 : index
    %c0_19 = arith.constant 0 : index
    %25 = vector.load %arg3[%c2_17, %c0_18, %c0_19] : memref<9x32x4xf32, #tpu.memory_space<vmem>>, vector<1x32x4xf32>
    %26 = vector.shape_cast %25 : vector<1x32x4xf32> to vector<32x4xf32>
    %cst_20 = arith.constant dense<0.000000e+00> : vector<32x256xf32>
    %27 = tpu.matmul %26, %24, %cst_20 {dimension_numbers = #tpu.dot_dimension_numbers<[1], [0], [0], [1], [0, 0, 1, 1], [], []>} : vector<32x4xf32>, vector<4x256xf32>, vector<32x256xf32> -> vector<32x256xf32>
    %28 = arith.addf %21, %27 : vector<32x256xf32>
    %c1_i32 = arith.constant 1 : i32
    %29 = tpu.dynamic_rotate %0 by %c1_i32 dim 1 : vector<4x256xf32>, i32 -> vector<4x256xf32>
    %30 = vector.broadcast %4 : vector<1x256xf32> to vector<4x256xf32>
    %31 = arith.mulf %29, %30 : vector<4x256xf32>
    %c3_21 = arith.constant 3 : index
    %c0_22 = arith.constant 0 : index
    %c0_23 = arith.constant 0 : index
    %32 = vector.load %arg3[%c3_21, %c0_22, %c0_23] : memref<9x32x4xf32, #tpu.memory_space<vmem>>, vector<1x32x4xf32>
    %33 = vector.shape_cast %32 : vector<1x32x4xf32> to vector<32x4xf32>
    %cst_24 = arith.constant dense<0.000000e+00> : vector<32x256xf32>
    %34 = tpu.matmul %33, %31, %cst_24 {dimension_numbers = #tpu.dot_dimension_numbers<[1], [0], [0], [1], [0, 0, 1, 1], [], []>} : vector<32x4xf32>, vector<4x256xf32>, vector<32x256xf32> -> vector<32x256xf32>
    %35 = arith.addf %28, %34 : vector<32x256xf32>
    %c4_25 = arith.constant 4 : index
    %c0_26 = arith.constant 0 : index
    %c0_27 = arith.constant 0 : index
    %36 = vector.load %arg3[%c4_25, %c0_26, %c0_27] : memref<9x32x4xf32, #tpu.memory_space<vmem>>, vector<1x32x4xf32>
    %37 = vector.shape_cast %36 : vector<1x32x4xf32> to vector<32x4xf32>
    %cst_28 = arith.constant dense<0.000000e+00> : vector<32x256xf32>
    %38 = tpu.matmul %37, %0, %cst_28 {dimension_numbers = #tpu.dot_dimension_numbers<[1], [0], [0], [1], [0, 0, 1, 1], [], []>} : vector<32x4xf32>, vector<4x256xf32>, vector<32x256xf32> -> vector<32x256xf32>
    %39 = arith.addf %35, %38 : vector<32x256xf32>
    %c255_i32 = arith.constant 255 : i32
    %40 = tpu.dynamic_rotate %0 by %c255_i32 dim 1 : vector<4x256xf32>, i32 -> vector<4x256xf32>
    %41 = vector.broadcast %5 : vector<1x256xf32> to vector<4x256xf32>
    %42 = arith.mulf %40, %41 : vector<4x256xf32>
    %c5_29 = arith.constant 5 : index
    %c0_30 = arith.constant 0 : index
    %c0_31 = arith.constant 0 : index
    %43 = vector.load %arg3[%c5_29, %c0_30, %c0_31] : memref<9x32x4xf32, #tpu.memory_space<vmem>>, vector<1x32x4xf32>
    %44 = vector.shape_cast %43 : vector<1x32x4xf32> to vector<32x4xf32>
    %cst_32 = arith.constant dense<0.000000e+00> : vector<32x256xf32>
    %45 = tpu.matmul %44, %42, %cst_32 {dimension_numbers = #tpu.dot_dimension_numbers<[1], [0], [0], [1], [0, 0, 1, 1], [], []>} : vector<32x4xf32>, vector<4x256xf32>, vector<32x256xf32> -> vector<32x256xf32>
    %46 = arith.addf %39, %45 : vector<32x256xf32>
    %c241_i32 = arith.constant 241 : i32
    %47 = tpu.dynamic_rotate %0 by %c241_i32 dim 1 : vector<4x256xf32>, i32 -> vector<4x256xf32>
    %48 = vector.broadcast %6 : vector<1x256xf32> to vector<4x256xf32>
    %49 = arith.mulf %47, %48 : vector<4x256xf32>
    %c6_33 = arith.constant 6 : index
    %c0_34 = arith.constant 0 : index
    %c0_35 = arith.constant 0 : index
    %50 = vector.load %arg3[%c6_33, %c0_34, %c0_35] : memref<9x32x4xf32, #tpu.memory_space<vmem>>, vector<1x32x4xf32>
    %51 = vector.shape_cast %50 : vector<1x32x4xf32> to vector<32x4xf32>
    %cst_36 = arith.constant dense<0.000000e+00> : vector<32x256xf32>
    %52 = tpu.matmul %51, %49, %cst_36 {dimension_numbers = #tpu.dot_dimension_numbers<[1], [0], [0], [1], [0, 0, 1, 1], [], []>} : vector<32x4xf32>, vector<4x256xf32>, vector<32x256xf32> -> vector<32x256xf32>
    %53 = arith.addf %46, %52 : vector<32x256xf32>
    %c240_i32 = arith.constant 240 : i32
    %54 = tpu.dynamic_rotate %0 by %c240_i32 dim 1 : vector<4x256xf32>, i32 -> vector<4x256xf32>
    %55 = vector.broadcast %7 : vector<1x256xf32> to vector<4x256xf32>
    %56 = arith.mulf %54, %55 : vector<4x256xf32>
    %c7_37 = arith.constant 7 : index
    %c0_38 = arith.constant 0 : index
    %c0_39 = arith.constant 0 : index
    %57 = vector.load %arg3[%c7_37, %c0_38, %c0_39] : memref<9x32x4xf32, #tpu.memory_space<vmem>>, vector<1x32x4xf32>
    %58 = vector.shape_cast %57 : vector<1x32x4xf32> to vector<32x4xf32>
    %cst_40 = arith.constant dense<0.000000e+00> : vector<32x256xf32>
    %59 = tpu.matmul %58, %56, %cst_40 {dimension_numbers = #tpu.dot_dimension_numbers<[1], [0], [0], [1], [0, 0, 1, 1], [], []>} : vector<32x4xf32>, vector<4x256xf32>, vector<32x256xf32> -> vector<32x256xf32>
    %60 = arith.addf %53, %59 : vector<32x256xf32>
    %c239_i32 = arith.constant 239 : i32
    %61 = tpu.dynamic_rotate %0 by %c239_i32 dim 1 : vector<4x256xf32>, i32 -> vector<4x256xf32>
    %62 = vector.broadcast %8 : vector<1x256xf32> to vector<4x256xf32>
    %63 = arith.mulf %61, %62 : vector<4x256xf32>
    %c8 = arith.constant 8 : index
    %c0_41 = arith.constant 0 : index
    %c0_42 = arith.constant 0 : index
    %64 = vector.load %arg3[%c8, %c0_41, %c0_42] : memref<9x32x4xf32, #tpu.memory_space<vmem>>, vector<1x32x4xf32>
    %65 = vector.shape_cast %64 : vector<1x32x4xf32> to vector<32x4xf32>
    %cst_43 = arith.constant dense<0.000000e+00> : vector<32x256xf32>
    %66 = tpu.matmul %65, %63, %cst_43 {dimension_numbers = #tpu.dot_dimension_numbers<[1], [0], [0], [1], [0, 0, 1, 1], [], []>} : vector<32x4xf32>, vector<4x256xf32>, vector<32x256xf32> -> vector<32x256xf32>
    %67 = arith.addf %60, %66 : vector<32x256xf32>
    %c0_44 = arith.constant 0 : index
    %c0_45 = arith.constant 0 : index
    %68 = vector.load %arg4[%c0_44, %c0_45] : memref<32x1xf32, #tpu.memory_space<vmem>>, vector<32x1xf32>
    %69 = vector.broadcast %68 : vector<32x1xf32> to vector<32x256xf32>
    %70 = arith.addf %67, %69 : vector<32x256xf32>
    %cst_46 = arith.constant 0.000000e+00 : f32
    %71 = vector.broadcast %cst_46 : f32 to vector<32x256xf32>
    %72 = arith.maximumf %70, %71 : vector<32x256xf32>
    %c17_i32_47 = arith.constant 17 : i32
    %73 = tpu.dynamic_rotate %72 by %c17_i32_47 dim 1 : vector<32x256xf32>, i32 -> vector<32x256xf32>
    %74 = vector.broadcast %1 : vector<1x256xf32> to vector<32x256xf32>
    %75 = arith.mulf %73, %74 : vector<32x256xf32>
    %c0_48 = arith.constant 0 : index
    %c0_49 = arith.constant 0 : index
    %c0_50 = arith.constant 0 : index
    %76 = vector.load %arg5[%c0_48, %c0_49, %c0_50] : memref<9x32x32xf32, #tpu.memory_space<vmem>>, vector<1x32x32xf32>
    %77 = vector.shape_cast %76 : vector<1x32x32xf32> to vector<32x32xf32>
    %cst_51 = arith.constant dense<0.000000e+00> : vector<32x256xf32>
    %78 = tpu.matmul %77, %75, %cst_51 {dimension_numbers = #tpu.dot_dimension_numbers<[1], [0], [0], [1], [0, 0, 1, 1], [], []>} : vector<32x32xf32>, vector<32x256xf32>, vector<32x256xf32> -> vector<32x256xf32>
    %c16_i32_52 = arith.constant 16 : i32
    %79 = tpu.dynamic_rotate %72 by %c16_i32_52 dim 1 : vector<32x256xf32>, i32 -> vector<32x256xf32>
    %80 = vector.broadcast %2 : vector<1x256xf32> to vector<32x256xf32>
    %81 = arith.mulf %79, %80 : vector<32x256xf32>
    %c1_53 = arith.constant 1 : index
    %c0_54 = arith.constant 0 : index
    %c0_55 = arith.constant 0 : index
    %82 = vector.load %arg5[%c1_53, %c0_54, %c0_55] : memref<9x32x32xf32, #tpu.memory_space<vmem>>, vector<1x32x32xf32>
    %83 = vector.shape_cast %82 : vector<1x32x32xf32> to vector<32x32xf32>
    %cst_56 = arith.constant dense<0.000000e+00> : vector<32x256xf32>
    %84 = tpu.matmul %83, %81, %cst_56 {dimension_numbers = #tpu.dot_dimension_numbers<[1], [0], [0], [1], [0, 0, 1, 1], [], []>} : vector<32x32xf32>, vector<32x256xf32>, vector<32x256xf32> -> vector<32x256xf32>
    %85 = arith.addf %78, %84 : vector<32x256xf32>
    %c15_i32_57 = arith.constant 15 : i32
    %86 = tpu.dynamic_rotate %72 by %c15_i32_57 dim 1 : vector<32x256xf32>, i32 -> vector<32x256xf32>
    %87 = vector.broadcast %3 : vector<1x256xf32> to vector<32x256xf32>
    %88 = arith.mulf %86, %87 : vector<32x256xf32>
    %c2_58 = arith.constant 2 : index
    %c0_59 = arith.constant 0 : index
    %c0_60 = arith.constant 0 : index
    %89 = vector.load %arg5[%c2_58, %c0_59, %c0_60] : memref<9x32x32xf32, #tpu.memory_space<vmem>>, vector<1x32x32xf32>
    %90 = vector.shape_cast %89 : vector<1x32x32xf32> to vector<32x32xf32>
    %cst_61 = arith.constant dense<0.000000e+00> : vector<32x256xf32>
    %91 = tpu.matmul %90, %88, %cst_61 {dimension_numbers = #tpu.dot_dimension_numbers<[1], [0], [0], [1], [0, 0, 1, 1], [], []>} : vector<32x32xf32>, vector<32x256xf32>, vector<32x256xf32> -> vector<32x256xf32>
    %92 = arith.addf %85, %91 : vector<32x256xf32>
    %c1_i32_62 = arith.constant 1 : i32
    %93 = tpu.dynamic_rotate %72 by %c1_i32_62 dim 1 : vector<32x256xf32>, i32 -> vector<32x256xf32>
    %94 = vector.broadcast %4 : vector<1x256xf32> to vector<32x256xf32>
    %95 = arith.mulf %93, %94 : vector<32x256xf32>
    %c3_63 = arith.constant 3 : index
    %c0_64 = arith.constant 0 : index
    %c0_65 = arith.constant 0 : index
    %96 = vector.load %arg5[%c3_63, %c0_64, %c0_65] : memref<9x32x32xf32, #tpu.memory_space<vmem>>, vector<1x32x32xf32>
    %97 = vector.shape_cast %96 : vector<1x32x32xf32> to vector<32x32xf32>
    %cst_66 = arith.constant dense<0.000000e+00> : vector<32x256xf32>
    %98 = tpu.matmul %97, %95, %cst_66 {dimension_numbers = #tpu.dot_dimension_numbers<[1], [0], [0], [1], [0, 0, 1, 1], [], []>} : vector<32x32xf32>, vector<32x256xf32>, vector<32x256xf32> -> vector<32x256xf32>
    %99 = arith.addf %92, %98 : vector<32x256xf32>
    %c4_67 = arith.constant 4 : index
    %c0_68 = arith.constant 0 : index
    %c0_69 = arith.constant 0 : index
    %100 = vector.load %arg5[%c4_67, %c0_68, %c0_69] : memref<9x32x32xf32, #tpu.memory_space<vmem>>, vector<1x32x32xf32>
    %101 = vector.shape_cast %100 : vector<1x32x32xf32> to vector<32x32xf32>
    %cst_70 = arith.constant dense<0.000000e+00> : vector<32x256xf32>
    %102 = tpu.matmul %101, %72, %cst_70 {dimension_numbers = #tpu.dot_dimension_numbers<[1], [0], [0], [1], [0, 0, 1, 1], [], []>} : vector<32x32xf32>, vector<32x256xf32>, vector<32x256xf32> -> vector<32x256xf32>
    %103 = arith.addf %99, %102 : vector<32x256xf32>
    %c255_i32_71 = arith.constant 255 : i32
    %104 = tpu.dynamic_rotate %72 by %c255_i32_71 dim 1 : vector<32x256xf32>, i32 -> vector<32x256xf32>
    %105 = vector.broadcast %5 : vector<1x256xf32> to vector<32x256xf32>
    %106 = arith.mulf %104, %105 : vector<32x256xf32>
    %c5_72 = arith.constant 5 : index
    %c0_73 = arith.constant 0 : index
    %c0_74 = arith.constant 0 : index
    %107 = vector.load %arg5[%c5_72, %c0_73, %c0_74] : memref<9x32x32xf32, #tpu.memory_space<vmem>>, vector<1x32x32xf32>
    %108 = vector.shape_cast %107 : vector<1x32x32xf32> to vector<32x32xf32>
    %cst_75 = arith.constant dense<0.000000e+00> : vector<32x256xf32>
    %109 = tpu.matmul %108, %106, %cst_75 {dimension_numbers = #tpu.dot_dimension_numbers<[1], [0], [0], [1], [0, 0, 1, 1], [], []>} : vector<32x32xf32>, vector<32x256xf32>, vector<32x256xf32> -> vector<32x256xf32>
    %110 = arith.addf %103, %109 : vector<32x256xf32>
    %c241_i32_76 = arith.constant 241 : i32
    %111 = tpu.dynamic_rotate %72 by %c241_i32_76 dim 1 : vector<32x256xf32>, i32 -> vector<32x256xf32>
    %112 = vector.broadcast %6 : vector<1x256xf32> to vector<32x256xf32>
    %113 = arith.mulf %111, %112 : vector<32x256xf32>
    %c6_77 = arith.constant 6 : index
    %c0_78 = arith.constant 0 : index
    %c0_79 = arith.constant 0 : index
    %114 = vector.load %arg5[%c6_77, %c0_78, %c0_79] : memref<9x32x32xf32, #tpu.memory_space<vmem>>, vector<1x32x32xf32>
    %115 = vector.shape_cast %114 : vector<1x32x32xf32> to vector<32x32xf32>
    %cst_80 = arith.constant dense<0.000000e+00> : vector<32x256xf32>
    %116 = tpu.matmul %115, %113, %cst_80 {dimension_numbers = #tpu.dot_dimension_numbers<[1], [0], [0], [1], [0, 0, 1, 1], [], []>} : vector<32x32xf32>, vector<32x256xf32>, vector<32x256xf32> -> vector<32x256xf32>
    %117 = arith.addf %110, %116 : vector<32x256xf32>
    %c240_i32_81 = arith.constant 240 : i32
    %118 = tpu.dynamic_rotate %72 by %c240_i32_81 dim 1 : vector<32x256xf32>, i32 -> vector<32x256xf32>
    %119 = vector.broadcast %7 : vector<1x256xf32> to vector<32x256xf32>
    %120 = arith.mulf %118, %119 : vector<32x256xf32>
    %c7_82 = arith.constant 7 : index
    %c0_83 = arith.constant 0 : index
    %c0_84 = arith.constant 0 : index
    %121 = vector.load %arg5[%c7_82, %c0_83, %c0_84] : memref<9x32x32xf32, #tpu.memory_space<vmem>>, vector<1x32x32xf32>
    %122 = vector.shape_cast %121 : vector<1x32x32xf32> to vector<32x32xf32>
    %cst_85 = arith.constant dense<0.000000e+00> : vector<32x256xf32>
    %123 = tpu.matmul %122, %120, %cst_85 {dimension_numbers = #tpu.dot_dimension_numbers<[1], [0], [0], [1], [0, 0, 1, 1], [], []>} : vector<32x32xf32>, vector<32x256xf32>, vector<32x256xf32> -> vector<32x256xf32>
    %124 = arith.addf %117, %123 : vector<32x256xf32>
    %c239_i32_86 = arith.constant 239 : i32
    %125 = tpu.dynamic_rotate %72 by %c239_i32_86 dim 1 : vector<32x256xf32>, i32 -> vector<32x256xf32>
    %126 = vector.broadcast %8 : vector<1x256xf32> to vector<32x256xf32>
    %127 = arith.mulf %125, %126 : vector<32x256xf32>
    %c8_87 = arith.constant 8 : index
    %c0_88 = arith.constant 0 : index
    %c0_89 = arith.constant 0 : index
    %128 = vector.load %arg5[%c8_87, %c0_88, %c0_89] : memref<9x32x32xf32, #tpu.memory_space<vmem>>, vector<1x32x32xf32>
    %129 = vector.shape_cast %128 : vector<1x32x32xf32> to vector<32x32xf32>
    %cst_90 = arith.constant dense<0.000000e+00> : vector<32x256xf32>
    %130 = tpu.matmul %129, %127, %cst_90 {dimension_numbers = #tpu.dot_dimension_numbers<[1], [0], [0], [1], [0, 0, 1, 1], [], []>} : vector<32x32xf32>, vector<32x256xf32>, vector<32x256xf32> -> vector<32x256xf32>
    %131 = arith.addf %124, %130 : vector<32x256xf32>
    %c0_91 = arith.constant 0 : index
    %c0_92 = arith.constant 0 : index
    %132 = vector.load %arg6[%c0_91, %c0_92] : memref<32x1xf32, #tpu.memory_space<vmem>>, vector<32x1xf32>
    %133 = vector.broadcast %132 : vector<32x1xf32> to vector<32x256xf32>
    %134 = arith.addf %131, %133 : vector<32x256xf32>
    %cst_93 = arith.constant 0.000000e+00 : f32
    %135 = vector.broadcast %cst_93 : f32 to vector<32x256xf32>
    %136 = arith.maximumf %134, %135 : vector<32x256xf32>
    %c0_94 = arith.constant 0 : index
    %c0_95 = arith.constant 0 : index
    %137 = vector.load %arg7[%c0_94, %c0_95] : memref<24x32xf32, #tpu.memory_space<vmem>>, vector<24x32xf32>
    %cst_96 = arith.constant dense<0.000000e+00> : vector<24x256xf32>
    %138 = tpu.matmul %137, %136, %cst_96 {dimension_numbers = #tpu.dot_dimension_numbers<[1], [0], [0], [1], [0, 0, 1, 1], [], []>} : vector<24x32xf32>, vector<32x256xf32>, vector<24x256xf32> -> vector<24x256xf32>
    %c0_97 = arith.constant 0 : index
    %c0_98 = arith.constant 0 : index
    %139 = vector.load %arg8[%c0_97, %c0_98] : memref<24x1xf32, #tpu.memory_space<vmem>>, vector<24x1xf32>
    %140 = vector.broadcast %139 : vector<24x1xf32> to vector<24x256xf32>
    %141 = arith.addf %138, %140 : vector<24x256xf32>
    %c0_99 = arith.constant 0 : index
    %c0_100 = arith.constant 0 : index
    %142 = vector.load %arg9[%c0_99, %c0_100] : memref<24x256xf32, #tpu.memory_space<vmem>>, vector<24x256xf32>
    tpu.vector_store %arg9[%c0_99, %c0_100], %141 {strides = array<i32>} : memref<24x256xf32, #tpu.memory_space<vmem>>, vector<24x256xf32>,
    return
  }
  func.func @transform_0(%arg0: i32) -> (i32, i32) {
    %c0_i32 = arith.constant 0 : i32
    %c0_i32_0 = arith.constant 0 : i32
    return %c0_i32, %arg0 : i32, i32
  }
  func.func @transform_1(%arg0: i32) -> (i32, i32) {
    %c0_i32 = arith.constant 0 : i32
    %c0_i32_0 = arith.constant 0 : i32
    %c0_i32_1 = arith.constant 0 : i32
    return %c0_i32, %c0_i32_0 : i32, i32
  }
  func.func @transform_2(%arg0: i32) -> (i32, i32, i32) {
    %c0_i32 = arith.constant 0 : i32
    %c0_i32_0 = arith.constant 0 : i32
    %c0_i32_1 = arith.constant 0 : i32
    %c0_i32_2 = arith.constant 0 : i32
    return %c0_i32, %c0_i32_0, %c0_i32_1 : i32, i32, i32
  }
  func.func @transform_3(%arg0: i32) -> (i32, i32) {
    %c0_i32 = arith.constant 0 : i32
    %c0_i32_0 = arith.constant 0 : i32
    %c0_i32_1 = arith.constant 0 : i32
    return %c0_i32, %c0_i32_0 : i32, i32
  }
  func.func @transform_4(%arg0: i32) -> (i32, i32, i32) {
    %c0_i32 = arith.constant 0 : i32
    %c0_i32_0 = arith.constant 0 : i32
    %c0_i32_1 = arith.constant 0 : i32
    %c0_i32_2 = arith.constant 0 : i32
    return %c0_i32, %c0_i32_0, %c0_i32_1 : i32, i32, i32
  }
  func.func @transform_5(%arg0: i32) -> (i32, i32) {
    %c0_i32 = arith.constant 0 : i32
    %c0_i32_0 = arith.constant 0 : i32
    %c0_i32_1 = arith.constant 0 : i32
    return %c0_i32, %c0_i32_0 : i32, i32
  }
  func.func @transform_6(%arg0: i32) -> (i32, i32) {
    %c0_i32 = arith.constant 0 : i32
    %c0_i32_0 = arith.constant 0 : i32
    %c0_i32_1 = arith.constant 0 : i32
    return %c0_i32, %c0_i32_0 : i32, i32
  }
  func.func @transform_7(%arg0: i32) -> (i32, i32) {
    %c0_i32 = arith.constant 0 : i32
    %c0_i32_0 = arith.constant 0 : i32
    %c0_i32_1 = arith.constant 0 : i32
    return %c0_i32, %c0_i32_0 : i32, i32
  }
  func.func @transform_8(%arg0: i32) -> (i32, i32) {
    %c0_i32 = arith.constant 0 : i32
    %c0_i32_0 = arith.constant 0 : i32
    return %c0_i32, %arg0 : i32, i32
  }
}

</mosaic_0001>

<llo_original>
// kernel: roi_keypoint_head_forward.1
$region0: #{roi_keypoint_head_forward.1}
  #allocation0 [shape = 'u32[]', space=smem, size = 0x4, offset = 0x4, fixed_abs, tag = 'smem constant byte address 0x4 - core index']
  #allocation1 [shape = 'u32[144,128]{1,0:T(1,128)}', space=vmem, size = 0x12000, scoped, tag = 'internal scratch']
  %s0 = inlined_call_operand.vmem [shape: f32[4,512], index: 0, kind: input, shape index: {}]
  %s1 = inlined_call_operand.vmem [shape: f32[8,256], index: 1, kind: input, shape index: {}]
  %s2 = inlined_call_operand.vmem [shape: f32[9,32,4], index: 2, kind: input, shape index: {}]
  %s3 = inlined_call_operand.vmem [shape: f32[32,1], index: 3, kind: input, shape index: {}]
  %s4 = inlined_call_operand.vmem [shape: f32[9,32,32], index: 4, kind: input, shape index: {}]
  %s5 = inlined_call_operand.vmem [shape: f32[32,1], index: 5, kind: input, shape index: {}]
  %s6 = inlined_call_operand.vmem [shape: f32[24,32], index: 6, kind: input, shape index: {}]
  %s7 = inlined_call_operand.vmem [shape: f32[24,1], index: 7, kind: input, shape index: {}]
  %s8 = inlined_call_operand.vmem [shape: f32[24,512], index: 8, kind: output, shape index: {}]
  %s9 = sld [smem:[#allocation0]]
  $region84: #{roi_keypoint_head_forward.1} parent=0
    _
  %s11 = ssub.s32 1, %s9
  %s12 = scalar_select 0, %s11, %s9
  $region1: #{roi_keypoint_head_forward.1} parent=0
    #allocation2 [shape = 'u8[49152]{0}', space=vmem, size = 0xc000, scoped, tag = 'output window, operand 0']
    loop: start=0, step=1, limit=4
    $region2: #{roi_keypoint_head_forward.1} parent=1 // loop_pre_header
      _
    $region3: #{roi_keypoint_head_forward.1} parent=1 // loop_header
      %s14 = sphi 0, %s18
      %p15 = scmp.ge.s32.totalorder %s14, 4
      %s24 = sphi 0, %s26
      %s27 = sphi 0, %s24
      %s28 = sphi 0, %s27
      %s44 = sphi 0, %s28
      %s48 = sphi 0, %s48
      %s50 = sphi 0, %s48
      %s51 = sphi 0, %s50
      %s65 = sphi 0, %s51
      %s69 = sphi 0, %s69
      %s71 = sphi 0, %s69
      %s72 = sphi 0, %s71
      %s86 = sphi 0, %s72
      %s90 = sphi 0, %s90
      %s92 = sphi 0, %s90
      %s93 = sphi 0, %s92
      %s107 = sphi 0, %s93
      %s111 = sphi 0, %s111
      %s113 = sphi 0, %s111
      %s114 = sphi 0, %s113
      %s128 = sphi 0, %s114
      %s132 = sphi 0, %s132
      %s134 = sphi 0, %s132
      %s135 = sphi 0, %s134
      %s149 = sphi 0, %s135
      %s153 = sphi 0, %s153
      %s155 = sphi 0, %s153
      %s156 = sphi 0, %s155
      %s170 = sphi 0, %s156
      %s174 = sphi 0, %s174
      %s176 = sphi 0, %s174
      %s177 = sphi 0, %s176
      %s191 = sphi 0, %s177
      %s197 = sphi 0, %s199
      %s200 = sphi 0, %s197
      %s201 = sphi 0, %s200
      %s217 = sphi 0, %s201
    $region4: #{roi_keypoint_head_forward.1} parent=1 // loop_header_branch
      %17 = sbr.rel (%p15) target = $region8
    $region5: #{roi_keypoint_head_forward.1} parent=1 // loop_body
      %s19 = ssub.s32 %s14, 1
      %s20 = ssub.s32 %s14, 2
      %s21 = sadd.s32 %s14, 1
      %s22 = ssub.s32 %s14, %s21
      %p23 = scmp.eq.s32.totalorder %s22, 0
      %s25 = sadd.s32 %s24, 1
      %s26 = scalar_select %p23, %s24, %s25
      %p29 = pneg %p23
      %p30 = scmp.eq.s32.totalorder %s14, 1
      %p31 = por %p29, %p30
      %p32 = scmp.ne.s32.totalorder %s24, %s27
      %p33 = scmp.eq.s32.totalorder %s14, 0
      %p34 = por %p32, %p33
      %p35 = scmp.ne.s32.totalorder %s24, %s27
      %p36 = scmp.eq.s32.totalorder %s19, 1
      %p37 = por %p35, %p36
      %p38 = scmp.ne.s32.totalorder %s27, %s28
      %p39 = scmp.eq.s32.totalorder %s19, 0
      %p40 = por %p38, %p39
      %p41 = scmp.ne.s32.totalorder %s27, %s28
      %p42 = scmp.eq.s32.totalorder %s20, 1
      %p43 = por %p41, %p42
      %p45 = scmp.ne.s32.totalorder %s28, %s44
      %p46 = scmp.eq.s32.totalorder %s20, 0
      %p47 = por %p45, %p46
      %s49 = sadd.s32 %s48, 1
      %p52 = scmp.eq.s32.totalorder %s14, 1
      %p53 = scmp.ne.s32.totalorder %s48, %s50
      %p54 = scmp.eq.s32.totalorder %s14, 0
      %p55 = por %p53, %p54
      %p56 = scmp.ne.s32.totalorder %s48, %s50
      %p57 = scmp.eq.s32.totalorder %s19, 1
      %p58 = por %p56, %p57
      %p59 = scmp.ne.s32.totalorder %s50, %s51
      %p60 = scmp.eq.s32.totalorder %s19, 0
      %p61 = por %p59, %p60
      %p62 = scmp.ne.s32.totalorder %s50, %s51
      %p63 = scmp.eq.s32.totalorder %s20, 1
      %p64 = por %p62, %p63
      %p66 = scmp.ne.s32.totalorder %s51, %s65
      %p67 = scmp.eq.s32.totalorder %s20, 0
      %p68 = por %p66, %p67
      %s70 = sadd.s32 %s69, 1
      %p73 = scmp.eq.s32.totalorder %s14, 1
      %p74 = scmp.ne.s32.totalorder %s69, %s71
      %p75 = scmp.eq.s32.totalorder %s14, 0
      %p76 = por %p74, %p75
      %p77 = scmp.ne.s32.totalorder %s69, %s71
      %p78 = scmp.eq.s32.totalorder %s19, 1
      %p79 = por %p77, %p78
      %p80 = scmp.ne.s32.totalorder %s71, %s72
      %p81 = scmp.eq.s32.totalorder %s19, 0
      %p82 = por %p80, %p81
      %p83 = scmp.ne.s32.totalorder %s71, %s72
      %p84 = scmp.eq.s32.totalorder %s20, 1
      %p85 = por %p83, %p84
      %p87 = scmp.ne.s32.totalorder %s72, %s86
      %p88 = scmp.eq.s32.totalorder %s20, 0
      %p89 = por %p87, %p88
      %s91 = sadd.s32 %s90, 1
      %p94 = scmp.eq.s32.totalorder %s14, 1
      %p95 = scmp.ne.s32.totalorder %s90, %s92
      %p96 = scmp.eq.s32.totalorder %s14, 0
      %p97 = por %p95, %p96
      %p98 = scmp.ne.s32.totalorder %s90, %s92
      %p99 = scmp.eq.s32.totalorder %s19, 1
      %p100 = por %p98, %p99
      %p101 = scmp.ne.s32.totalorder %s92, %s93
      %p102 = scmp.eq.s32.totalorder %s19, 0
      %p103 = por %p101, %p102
      %p104 = scmp.ne.s32.totalorder %s92, %s93
      %p105 = scmp.eq.s32.totalorder %s20, 1
      %p106 = por %p104, %p105
      %p108 = scmp.ne.s32.totalorder %s93, %s107
      %p109 = scmp.eq.s32.totalorder %s20, 0
      %p110 = por %p108, %p109
      %s112 = sadd.s32 %s111, 1
      %p115 = scmp.eq.s32.totalorder %s14, 1
      %p116 = scmp.ne.s32.totalorder %s111, %s113
      %p117 = scmp.eq.s32.totalorder %s14, 0
      %p118 = por %p116, %p117
      %p119 = scmp.ne.s32.totalorder %s111, %s113
      %p120 = scmp.eq.s32.totalorder %s19, 1
      %p121 = por %p119, %p120
      %p122 = scmp.ne.s32.totalorder %s113, %s114
      %p123 = scmp.eq.s32.totalorder %s19, 0
      %p124 = por %p122, %p123
      %p125 = scmp.ne.s32.totalorder %s113, %s114
      %p126 = scmp.eq.s32.totalorder %s20, 1
      %p127 = por %p125, %p126
      %p129 = scmp.ne.s32.totalorder %s114, %s128
      %p130 = scmp.eq.s32.totalorder %s20, 0
      %p131 = por %p129, %p130
      %s133 = sadd.s32 %s132, 1
      %p136 = scmp.eq.s32.totalorder %s14, 1
      %p137 = scmp.ne.s32.totalorder %s132, %s134
      %p138 = scmp.eq.s32.totalorder %s14, 0
      %p139 = por %p137, %p138
      %p140 = scmp.ne.s32.totalorder %s132, %s134
      %p141 = scmp.eq.s32.totalorder %s19, 1
      %p142 = por %p140, %p141
      %p143 = scmp.ne.s32.totalorder %s134, %s135
      %p144 = scmp.eq.s32.totalorder %s19, 0
      %p145 = por %p143, %p144
      %p146 = scmp.ne.s32.totalorder %s134, %s135
      %p147 = scmp.eq.s32.totalorder %s20, 1
      %p148 = por %p146, %p147
      %p150 = scmp.ne.s32.totalorder %s135, %s149
      %p151 = scmp.eq.s32.totalorder %s20, 0
      %p152 = por %p150, %p151
      %s154 = sadd.s32 %s153, 1
      %p157 = scmp.eq.s32.totalorder %s14, 1
      %p158 = scmp.ne.s32.totalorder %s153, %s155
      %p159 = scmp.eq.s32.totalorder %s14, 0
      %p160 = por %p158, %p159
      %p161 = scmp.ne.s32.totalorder %s153, %s155
      %p162 = scmp.eq.s32.totalorder %s19, 1
      %p163 = por %p161, %p162
      %p164 = scmp.ne.s32.totalorder %s155, %s156
      %p165 = scmp.eq.s32.totalorder %s19, 0
      %p166 = por %p164, %p165
      %p167 = scmp.ne.s32.totalorder %s155, %s156
      %p168 = scmp.eq.s32.totalorder %s20, 1
      %p169 = por %p167, %p168
      %p171 = scmp.ne.s32.totalorder %s156, %s170
      %p172 = scmp.eq.s32.totalorder %s20, 0
      %p173 = por %p171, %p172
      %s175 = sadd.s32 %s174, 1
      %p178 = scmp.eq.s32.totalorder %s14, 1
      %p179 = scmp.ne.s32.totalorder %s174, %s176
      %p180 = scmp.eq.s32.totalorder %s14, 0
      %p181 = por %p179, %p180
      %p182 = scmp.ne.s32.totalorder %s174, %s176
      %p183 = scmp.eq.s32.totalorder %s19, 1
      %p184 = por %p182, %p183
      %p185 = scmp.ne.s32.totalorder %s176, %s177
      %p186 = scmp.eq.s32.totalorder %s19, 0
      %p187 = por %p185, %p186
      %p188 = scmp.ne.s32.totalorder %s176, %s177
      %p189 = scmp.eq.s32.totalorder %s20, 1
      %p190 = por %p188, %p189
      %p192 = scmp.ne.s32.totalorder %s177, %s191
      %p193 = scmp.eq.s32.totalorder %s20, 0
      %p194 = por %p192, %p193
      %s195 = ssub.s32 %s14, %s21
      %p196 = scmp.eq.s32.totalorder %s195, 0
      %s198 = sadd.s32 %s197, 1
      %s199 = scalar_select %p196, %s197, %s198
      %p202 = pneg %p196
      %p203 = scmp.eq.s32.totalorder %s14, 1
      %p204 = por %p202, %p203
      %p205 = scmp.ne.s32.totalorder %s197, %s200
      %p206 = scmp.eq.s32.totalorder %s14, 0
      %p207 = por %p205, %p206
      %p208 = scmp.ne.s32.totalorder %s197, %s200
      %p209 = scmp.eq.s32.totalorder %s19, 1
      %p210 = por %p208, %p209
      %p211 = scmp.ne.s32.totalorder %s200, %s201
      %p212 = scmp.eq.s32.totalorder %s19, 0
      %p213 = por %p211, %p212
      %p214 = scmp.ne.s32.totalorder %s200, %s201
      %p215 = scmp.eq.s32.totalorder %s20, 1
      %p216 = por %p214, %p215
      %p218 = scmp.ne.s32.totalorder %s201, %s217
      %p219 = scmp.eq.s32.totalorder %s20, 0
      %p220 = por %p218, %p219
      %p221 = scmp.le.s32.totalorder 1, %s14
      %p222 = scmp.lt.s32.totalorder %s14, 3
      %p223 = pnand %p221, %p222
      %p224 = pneg %p223
      // Predicated region
      $region9: #{roi_keypoint_head_forward.1} parent=5 // pred_check
        _
      $region10: #{roi_keypoint_head_forward.1} parent=5 // pred_check_branch
        %226 = sbr.rel (%p223) target = $region12
      $region11: #{roi_keypoint_head_forward.1} parent=5 // pred_region
        %s227 = ssub.s32 %s14, 1
        // Predicated region
        $region13: #{roi_keypoint_head_forward.1} parent=11 // pred_check
          %p228 = pneg %p61
        $region14: #{roi_keypoint_head_forward.1} parent=11 // pred_check_branch
          %230 = sbr.rel (%p228) target = $region16
        $region15: #{roi_keypoint_head_forward.1} parent=11 // pred_region
          _
        $region16: #{roi_keypoint_head_forward.1} parent=11 // pred_fallthru
          _
        // Predicated region
        $region17: #{roi_keypoint_head_forward.1} parent=11 // pred_check
          %p231 = pneg %p82
        $region18: #{roi_keypoint_head_forward.1} parent=11 // pred_check_branch
          %233 = sbr.rel (%p231) target = $region20
        $region19: #{roi_keypoint_head_forward.1} parent=11 // pred_region
          _
        $region20: #{roi_keypoint_head_forward.1} parent=11 // pred_fallthru
          _
        // Predicated region
        $region21: #{roi_keypoint_head_forward.1} parent=11 // pred_check
          %p234 = pneg %p103
        $region22: #{roi_keypoint_head_forward.1} parent=11 // pred_check_branch
          %236 = sbr.rel (%p234) target = $region24
        $region23: #{roi_keypoint_head_forward.1} parent=11 // pred_region
          _
        $region24: #{roi_keypoint_head_forward.1} parent=11 // pred_fallthru
          _
        // Predicated region
        $region25: #{roi_keypoint_head_forward.1} parent=11 // pred_check
          %p237 = pneg %p124
        $region26: #{roi_keypoint_head_forward.1} parent=11 // pred_check_branch
          %239 = sbr.rel (%p237) target = $region28
        $region27: #{roi_keypoint_head_forward.1} parent=11 // pred_region
          _
        $region28: #{roi_keypoint_head_forward.1} parent=11 // pred_fallthru
          _
        // Predicated region
        $region29: #{roi_keypoint_head_forward.1} parent=11 // pred_check
          %p240 = pneg %p145
        $region30: #{roi_keypoint_head_forward.1} parent=11 // pred_check_branch
          %242 = sbr.rel (%p240) target = $region32
        $region31: #{roi_keypoint_head_forward.1} parent=11 // pred_region
          _
        $region32: #{roi_keypoint_head_forward.1} parent=11 // pred_fallthru
          _
        // Predicated region
        $region33: #{roi_keypoint_head_forward.1} parent=11 // pred_check
          %p243 = pneg %p166
        $region34: #{roi_keypoint_head_forward.1} parent=11 // pred_check_branch
          %245 = sbr.rel (%p243) target = $region36
        $region35: #{roi_keypoint_head_forward.1} parent=11 // pred_region
          _
        $region36: #{roi_keypoint_head_forward.1} parent=11 // pred_fallthru
          _
        // Predicated region
        $region37: #{roi_keypoint_head_forward.1} parent=11 // pred_check
          %p246 = pneg %p187
        $region38: #{roi_keypoint_head_forward.1} parent=11 // pred_check_branch
          %248 = sbr.rel (%p246) target = $region40
        $region39: #{roi_keypoint_head_forward.1} parent=11 // pred_region
          _
        $region40: #{roi_keypoint_head_forward.1} parent=11 // pred_fallthru
          _
      $region12: #{roi_keypoint_head_forward.1} parent=5 // pred_fallthru
        _
      %p249 = scmp.lt.s32.totalorder %s14, 2
      // Predicated region
      $region41: #{roi_keypoint_head_forward.1} parent=5 // pred_check
        %p250 = pneg %p249
      $region42: #{roi_keypoint_head_forward.1} parent=5 // pred_check_branch
        %252 = sbr.rel (%p250) target = $region44
      $region43: #{roi_keypoint_head_forward.1} parent=5 // pred_region
        // Predicated region
        $region45: #{roi_keypoint_head_forward.1} parent=43 // pred_check
          %p253 = pneg %p34
        $region46: #{roi_keypoint_head_forward.1} parent=43 // pred_check_branch
          %255 = sbr.rel (%p253) target = $region48
        $region47: #{roi_keypoint_head_forward.1} parent=43 // pred_region
          %s256 = smul.u32 2, %s14
          %p257 = scmp.lt.s32.totalorder %s256, 3
          %s258 = scalar_select %p257, %s256, 3
          %s259 = smul.addr %s258, 4
          %s260 = scalar_lea.vmem %s0, %s259
          %s261 = smul.u32 2, %s14
        $region48: #{roi_keypoint_head_forward.1} parent=43 // pred_fallthru
          _
      $region44: #{roi_keypoint_head_forward.1} parent=5 // pred_fallthru
        _
      %p262 = scmp.le.s32.totalorder 1, %s14
      %p263 = scmp.lt.s32.totalorder %s14, 3
      %p264 = pnand %p262, %p263
      %p265 = pneg %p264
      // Predicated region
      $region49: #{roi_keypoint_head_forward.1} parent=5 // pred_check
        _
      $region50: #{roi_keypoint_head_forward.1} parent=5 // pred_check_branch
        %267 = sbr.rel (%p264) target = $region52
      $region51: #{roi_keypoint_head_forward.1} parent=5 // pred_region
        %s268 = ssub.s32 %s14, 1
        %s269 = smul.u32 2, %s19
        %p270 = scmp.lt.s32.totalorder %s269, 3
        %s271 = scalar_select %p270, %s269, 3
        %s272 = smul.addr %s271, 4
        %s273 = scalar_lea.vmem %s0, %s272
        %p274 = pneg %p40
        %p275 = pneg %p37
        %p276 = pneg %p61
        %p277 = pneg %p58
        %p278 = pneg %p82
        %p279 = pneg %p79
        %p280 = pneg %p103
        %p281 = pneg %p100
        %p282 = pneg %p124
        %p283 = pneg %p121
        %p284 = pneg %p145
        %p285 = pneg %p142
        %p286 = pneg %p166
        %p287 = pneg %p163
        %p288 = pneg %p187
        %p289 = pneg %p184
        %p290 = pneg %p213
        %p291 = pneg %p210
        %s292 = sand.u32 %s200, 1
        %s293 = sand.u32 %s200, 1
        %s294 = smul.addr %s293, 48
        %s295 = scalar_lea.vmem [#allocation2], %s294
        %s296 = smul.u32 2, %s19
        %p297 = scmp.lt.s32.totalorder %s296, 3
        %s298 = scalar_select %p297, %s296, 3
        %s299 = smul.addr %s298, 4
        %s300 = scalar_lea.vmem %s0, %s299
        %s301 = smul.u32 2, %s19
        %s302 = smul.u32 2, %s19
        %v303 = vld [vmem:[%s300] sm:$0xff]
        %v304 = vld [vmem:[%s1] ss:$8 sm:$0x3]
        %s305 = scalar_lea.vmem %s1, 1
        %v306 = vld [vmem:[%s305] ss:$8 sm:$0x3]
        %s307 = scalar_lea.vmem %s1, 2
        %v308 = vld [vmem:[%s307] ss:$8 sm:$0x3]
        %s309 = scalar_lea.vmem %s1, 3
        %v310 = vld [vmem:[%s309] ss:$8 sm:$0x3]
        %s311 = scalar_lea.vmem %s1, 4
        %v312 = vld [vmem:[%s311] ss:$8 sm:$0x3]
        %s313 = scalar_lea.vmem %s1, 5
        %v314 = vld [vmem:[%s313] ss:$8 sm:$0x3]
        %s315 = scalar_lea.vmem %s1, 6
        %v316 = vld [vmem:[%s315] ss:$8 sm:$0x3]
        %s317 = scalar_lea.vmem %s1, 7
        %v318 = vld [vmem:[%s317] ss:$8 sm:$0x3]
        %v320 = vcombine.high %v303, %v303
        %322 = vrot.lane.b32.xlu0 %v303, 17
        %v323 = vpop.permute.xlu0 %322
        %324 = vrot.lane.b32.xlu0 %v320, 17
        %v325 = vpop.permute.xlu0 %324
        %v326 = vlaneseq
        %v327 = vand.u32 %v326, 127
        %vm328 = vcmp.lt.s32.totalorder %v327, 17
        %v329 = vsel %vm328, %v323, %v325
        %v330 = vsel %vm328, %v325, %v323
        %v332 = vlaneseq
        %v333 = vshrl.u32 %v332, 7
        %v334 = vsub.s32 0, %v333
        %v335 = vrot.slane %v304, %v334
        %v336 = vlaneseq
        %v337 = vshrl.u32 %v336, 7
        %v338 = vsub.s32 1, %v337
        %v339 = vrot.slane %v304, %v338
        %v342 = vmul.f32 %v330, %v335
        %v343 = vmul.f32 %v329, %v339
        %v344 = vld [vmem:[%s2] sm:$0xff]
        %v345 = vld [vmem:[%s2 + $0x8] sm:$0xff]
        %v346 = vld [vmem:[%s2 + $0x10] sm:$0xff]
        %v347 = vld [vmem:[%s2 + $0x18] sm:$0xff]
        %348 = vrot.lane.b32.xlu0 %v303, 16
        %v349 = vpop.permute.xlu0 %348
        %350 = vrot.lane.b32.xlu0 %v320, 16
        %v351 = vpop.permute.xlu0 %350
        %vm352 = vcmp.lt.s32.totalorder %v327, 16
        %v353 = vsel %vm352, %v349, %v351
        %v354 = vsel %vm352, %v351, %v349
        %v356 = vlaneseq
        %v357 = vshrl.u32 %v356, 7
        %v358 = vsub.s32 0, %v357
        %v359 = vrot.slane %v306, %v358
        %v360 = vlaneseq
        %v361 = vshrl.u32 %v360, 7
        %v362 = vsub.s32 1, %v361
        %v363 = vrot.slane %v306, %v362
        %v366 = vmul.f32 %v354, %v359
        %v367 = vmul.f32 %v353, %v363
        %s368 = scalar_lea.vmem %s2, 32
        %v369 = vld [vmem:[%s368] sm:$0xff]
        %v370 = vld [vmem:[%s368 + $0x8] sm:$0xff]
        %v371 = vld [vmem:[%s368 + $0x10] sm:$0xff]
        %v372 = vld [vmem:[%s368 + $0x18] sm:$0xff]
        %vm373 = vcmask 31744
        %v375 = vsel %vm373, %v369, 0
        %v378 = vsel %vm373, %v370, 0
        %v381 = vsel %vm373, %v371, 0
        %v384 = vsel %vm373, %v372, 0
        %vm386 = vcmask 1043456
        %v388 = vsel %vm386, %v366, 0
        %v391 = vsel %vm386, %v367, 0
        %393 = vmatprep.subr.mxu0 %v391
        %394 = vmatpush1.msra.mxu0 %v388
        %395 = vmatprep.subr.mxu0 0.0
        %396 = vmatpush1.msra.mxu0 0.0
        %397 = vmatprep.subr.mxu0 0.0
        %398 = vmatpush1.msra.mxu0 0.0
        %399 = vmatprep.subr.mxu0 0.0
        %400 = vmatpush1.msra.mxu0 0.0
        %401 = vmatprep.subr.mxu0 0.0
        %402 = vmatpush1.msra.mxu0 0.0
        %403 = vmatprep.subr.mxu0 0.0
        %404 = vmatpush1.msra.mxu0 0.0
        %405 = vmatprep.subr.mxu0 0.0
        %406 = vmatpush1.msra.mxu0 0.0
        %407 = vmatprep.subr.mxu0 0.0
        %408 = vmatpush1.msra.mxu0 0.0
        %409 = vmatprep.subr.mxu0 0.0
        %410 = vmatpush1.msra.mxu0 0.0
        %411 = vmatprep.subr.mxu0 0.0
        %412 = vmatpush1.msra.mxu0 0.0
        %413 = vmatprep.subr.mxu0 0.0
        %414 = vmatpush1.msra.mxu0 0.0
        %415 = vmatprep.subr.mxu0 0.0
        %416 = vmatpush1.msra.mxu0 0.0
        %417 = vmatprep.subr.mxu0 0.0
        %418 = vmatpush1.msra.mxu0 0.0
        %419 = vmatprep.subr.mxu0 0.0
        %420 = vmatpush1.msra.mxu0 0.0
        %421 = vmatprep.subr.mxu0 0.0
        %422 = vmatpush1.msra.mxu0 0.0
        %423 = vmatprep.subr.mxu0 0.0
        %424 = vmatpush1.msra.mxu0 0.0
        %425 = vmatprep.subr.mxu0 0.0
        %426 = vmatpush1.msra.mxu0 0.0
        %427 = vmatprep.subr.mxu0 0.0
        %428 = vmatpush1.msra.mxu0 0.0
        %429 = vmatprep.subr.mxu0 0.0
        %430 = vmatpush1.msra.mxu0 0.0
        %431 = vmatprep.subr.mxu0 0.0
        %432 = vmatpush1.msra.mxu0 0.0
        %433 = vmatprep.subr.mxu0 0.0
        %434 = vmatpush1.msra.mxu0 0.0
        %435 = vmatprep.subr.mxu0 0.0
        %436 = vmatpush1.msra.mxu0 0.0
        %437 = vmatprep.subr.mxu0 0.0
        %438 = vmatpush1.msra.mxu0 0.0
        %439 = vmatprep.subr.mxu0 0.0
        %440 = vmatpush1.msra.mxu0 0.0
        %441 = vmatprep.subr.mxu0 0.0
        %442 = vmatpush1.msra.mxu0 0.0
        %443 = vmatprep.subr.mxu0 0.0
        %444 = vmatpush1.msra.mxu0 0.0
        %445 = vmatprep.subr.mxu0 0.0
        %446 = vmatpush1.msra.mxu0 0.0
        %447 = vmatprep.subr.mxu0 0.0
        %448 = vmatpush1.msra.mxu0 0.0
        %449 = vmatprep.subr.mxu0 0.0
        %450 = vmatpush1.msra.mxu0 0.0
        %451 = vmatprep.subr.mxu0 0.0
        %452 = vmatpush1.msra.mxu0 0.0
        %453 = vmatprep.subr.mxu0 0.0
        %454 = vmatpush1.msra.mxu0 0.0
        %455 = vmatprep.subr.mxu0 0.0
        %456 = vmatpush1.msra.mxu0 0.0
        %457 = vmatprep.mubr.f32.mxu0 0.0
        %458 = vmatmul.mubr.f32.gmra.mrb[0].mxu0 %v375
        %v459 = vpop.f32.mrb[0].mxu0
        %v460 = vadd.f32 0.0, %v459
        %v461 = vpop.f32.mrb[0].mxu0
        %v462 = vadd.f32 0.0, %v461
        %463 = vmatprep.mubr.f32.mxu0 0.0
        %464 = vmatmul.mubr.f32.gmra.mrb[0].mxu0 %v378
        %v465 = vpop.f32.mrb[0].mxu0
        %v466 = vadd.f32 0.0, %v465
        %v467 = vpop.f32.mrb[0].mxu0
        %v468 = vadd.f32 0.0, %v467
        %469 = vmatprep.mubr.f32.mxu0 0.0
        %470 = vmatmul.mubr.f32.gmra.mrb[0].mxu0 %v381
        %v471 = vpop.f32.mrb[0].mxu0
        %v472 = vadd.f32 0.0, %v471
        %v473 = vpop.f32.mrb[0].mxu0
        %v474 = vadd.f32 0.0, %v473
        %475 = vmatprep.mubr.f32.mxu0 0.0
        %476 = vmatmul.mubr.f32.gmra.mrb[0].mxu0 %v384
        %v477 = vpop.f32.mrb[0].mxu0
        %v478 = vadd.f32 0.0, %v477
        %v479 = vpop.f32.mrb[0].mxu0
        %v480 = vadd.f32 0.0, %v479
        %481 = vdwg.mxu0
        %v483 = vsel %vm373, %v344, 0
        %v486 = vsel %vm373, %v345, 0
        %v489 = vsel %vm373, %v346, 0
        %v492 = vsel %vm373, %v347, 0
        %v495 = vsel %vm386, %v342, 0
        %v498 = vsel %vm386, %v343, 0
        %500 = vmatprep.subr.mxu0 %v498
        %501 = vmatpush1.msra.mxu0 %v495
        %502 = vmatprep.subr.mxu0 0.0
        %503 = vmatpush1.msra.mxu0 0.0
        %504 = vmatprep.subr.mxu0 0.0
        %505 = vmatpush1.msra.mxu0 0.0
        %506 = vmatprep.subr.mxu0 0.0
        %507 = vmatpush1.msra.mxu0 0.0
        %508 = vmatprep.subr.mxu0 0.0
        %509 = vmatpush1.msra.mxu0 0.0
        %510 = vmatprep.subr.mxu0 0.0
        %511 = vmatpush1.msra.mxu0 0.0
        %512 = vmatprep.subr.mxu0 0.0
        %513 = vmatpush1.msra.mxu0 0.0
        %514 = vmatprep.subr.mxu0 0.0
        %515 = vmatpush1.msra.mxu0 0.0
        %516 = vmatprep.subr.mxu0 0.0
        %517 = vmatpush1.msra.mxu0 0.0
        %518 = vmatprep.subr.mxu0 0.0
        %519 = vmatpush1.msra.mxu0 0.0
        %520 = vmatprep.subr.mxu0 0.0
        %521 = vmatpush1.msra.mxu0 0.0
        %522 = vmatprep.subr.mxu0 0.0
        %523 = vmatpush1.msra.mxu0 0.0
        %524 = vmatprep.subr.mxu0 0.0
        %525 = vmatpush1.msra.mxu0 0.0
        %526 = vmatprep.subr.mxu0 0.0
        %527 = vmatpush1.msra.mxu0 0.0
        %528 = vmatprep.subr.mxu0 0.0
        %529 = vmatpush1.msra.mxu0 0.0
        %530 = vmatprep.subr.mxu0 0.0
        %531 = vmatpush1.msra.mxu0 0.0
        %532 = vmatprep.subr.mxu0 0.0
        %533 = vmatpush1.msra.mxu0 0.0
        %534 = vmatprep.subr.mxu0 0.0
        %535 = vmatpush1.msra.mxu0 0.0
        %536 = vmatprep.subr.mxu0 0.0
        %537 = vmatpush1.msra.mxu0 0.0
        %538 = vmatprep.subr.mxu0 0.0
        %539 = vmatpush1.msra.mxu0 0.0
        %540 = vmatprep.subr.mxu0 0.0
        %541 = vmatpush1.msra.mxu0 0.0
        %542 = vmatprep.subr.mxu0 0.0
        %543 = vmatpush1.msra.mxu0 0.0
        %544 = vmatprep.subr.mxu0 0.0
        %545 = vmatpush1.msra.mxu0 0.0
        %546 = vmatprep.subr.mxu0 0.0
        %547 = vmatpush1.msra.mxu0 0.0
        %548 = vmatprep.subr.mxu0 0.0
        %549 = vmatpush1.msra.mxu0 0.0
        %550 = vmatprep.subr.mxu0 0.0
        %551 = vmatpush1.msra.mxu0 0.0
        %552 = vmatprep.subr.mxu0 0.0
        %553 = vmatpush1.msra.mxu0 0.0
        %554 = vmatprep.subr.mxu0 0.0
        %555 = vmatpush1.msra.mxu0 0.0
        %556 = vmatprep.subr.mxu0 0.0
        %557 = vmatpush1.msra.mxu0 0.0
        %558 = vmatprep.subr.mxu0 0.0
        %559 = vmatpush1.msra.mxu0 0.0
        %560 = vmatprep.subr.mxu0 0.0
        %561 = vmatpush1.msra.mxu0 0.0
        %562 = vmatprep.subr.mxu0 0.0
        %563 = vmatpush1.msra.mxu0 0.0
        %564 = vmatprep.mubr.f32.mxu0 0.0
        %565 = vmatmul.mubr.f32.gmra.mrb[0].mxu0 %v483
        %v566 = vpop.f32.mrb[0].mxu0
        %v567 = vadd.f32 %v460, %v566
        %v568 = vpop.f32.mrb[0].mxu0
        %v569 = vadd.f32 %v462, %v568
        %570 = vmatprep.mubr.f32.mxu0 0.0
        %571 = vmatmul.mubr.f32.gmra.mrb[0].mxu0 %v486
        %v572 = vpop.f32.mrb[0].mxu0
        %v573 = vadd.f32 %v466, %v572
        %v574 = vpop.f32.mrb[0].mxu0
        %v575 = vadd.f32 %v468, %v574
        %576 = vmatprep.mubr.f32.mxu0 0.0
        %577 = vmatmul.mubr.f32.gmra.mrb[0].mxu0 %v489
        %v578 = vpop.f32.mrb[0].mxu0
        %v579 = vadd.f32 %v472, %v578
        %v580 = vpop.f32.mrb[0].mxu0
        %v581 = vadd.f32 %v474, %v580
        %582 = vmatprep.mubr.f32.mxu0 0.0
        %583 = vmatmul.mubr.f32.gmra.mrb[0].mxu0 %v492
        %v584 = vpop.f32.mrb[0].mxu0
        %v585 = vadd.f32 %v478, %v584
        %v586 = vpop.f32.mrb[0].mxu0
        %v587 = vadd.f32 %v480, %v586
        %588 = vdwg.mxu0
        %589 = vrot.lane.b32.xlu0 %v303, 15
        %v590 = vpop.permute.xlu0 %589
        %591 = vrot.lane.b32.xlu0 %v320, 15
        %v592 = vpop.permute.xlu0 %591
        %vm593 = vcmp.lt.s32.totalorder %v327, 15
        %v594 = vsel %vm593, %v590, %v592
        %v595 = vsel %vm593, %v592, %v590
        %v597 = vlaneseq
        %v598 = vshrl.u32 %v597, 7
        %v599 = vsub.s32 0, %v598
        %v600 = vrot.slane %v308, %v599
        %v601 = vlaneseq
        %v602 = vshrl.u32 %v601, 7
        %v603 = vsub.s32 1, %v602
        %v604 = vrot.slane %v308, %v603
        %v607 = vmul.f32 %v595, %v600
        %v608 = vmul.f32 %v594, %v604
        %s609 = scalar_lea.vmem %s2, 64
        %v610 = vld [vmem:[%s609] sm:$0xff]
        %v611 = vld [vmem:[%s609 + $0x8] sm:$0xff]
        %v612 = vld [vmem:[%s609 + $0x10] sm:$0xff]
        %v613 = vld [vmem:[%s609 + $0x18] sm:$0xff]
        %v615 = vsel %vm373, %v610, 0
        %v618 = vsel %vm373, %v611, 0
        %v621 = vsel %vm373, %v612, 0
        %v624 = vsel %vm373, %v613, 0
        %v627 = vsel %vm386, %v607, 0
        %v630 = vsel %vm386, %v608, 0
        %632 = vmatprep.subr.mxu0 %v630
        %633 = vmatpush1.msra.mxu0 %v627
        %634 = vmatprep.subr.mxu0 0.0
        %635 = vmatpush1.msra.mxu0 0.0
        %636 = vmatprep.subr.mxu0 0.0
        %637 = vmatpush1.msra.mxu0 0.0
        %638 = vmatprep.subr.mxu0 0.0
        %639 = vmatpush1.msra.mxu0 0.0
        %640 = vmatprep.subr.mxu0 0.0
        %641 = vmatpush1.msra.mxu0 0.0
        %642 = vmatprep.subr.mxu0 0.0
        %643 = vmatpush1.msra.mxu0 0.0
        %644 = vmatprep.subr.mxu0 0.0
        %645 = vmatpush1.msra.mxu0 0.0
        %646 = vmatprep.subr.mxu0 0.0
        %647 = vmatpush1.msra.mxu0 0.0
        %648 = vmatprep.subr.mxu0 0.0
        %649 = vmatpush1.msra.mxu0 0.0
        %650 = vmatprep.subr.mxu0 0.0
        %651 = vmatpush1.msra.mxu0 0.0
        %652 = vmatprep.subr.mxu0 0.0
        %653 = vmatpush1.msra.mxu0 0.0
        %654 = vmatprep.subr.mxu0 0.0
        %655 = vmatpush1.msra.mxu0 0.0
        %656 = vmatprep.subr.mxu0 0.0
        %657 = vmatpush1.msra.mxu0 0.0
        %658 = vmatprep.subr.mxu0 0.0
        %659 = vmatpush1.msra.mxu0 0.0
        %660 = vmatprep.subr.mxu0 0.0
        %661 = vmatpush1.msra.mxu0 0.0
        %662 = vmatprep.subr.mxu0 0.0
        %663 = vmatpush1.msra.mxu0 0.0
        %664 = vmatprep.subr.mxu0 0.0
        %665 = vmatpush1.msra.mxu0 0.0
        %666 = vmatprep.subr.mxu0 0.0
        %667 = vmatpush1.msra.mxu0 0.0
        %668 = vmatprep.subr.mxu0 0.0
        %669 = vmatpush1.msra.mxu0 0.0
        %670 = vmatprep.subr.mxu0 0.0
        %671 = vmatpush1.msra.mxu0 0.0
        %672 = vmatprep.subr.mxu0 0.0
        %673 = vmatpush1.msra.mxu0 0.0
        %674 = vmatprep.subr.mxu0 0.0
        %675 = vmatpush1.msra.mxu0 0.0
        %676 = vmatprep.subr.mxu0 0.0
        %677 = vmatpush1.msra.mxu0 0.0
        %678 = vmatprep.subr.mxu0 0.0
        %679 = vmatpush1.msra.mxu0 0.0
        %680 = vmatprep.subr.mxu0 0.0
        %681 = vmatpush1.msra.mxu0 0.0
        %682 = vmatprep.subr.mxu0 0.0
        %683 = vmatpush1.msra.mxu0 0.0
        %684 = vmatprep.subr.mxu0 0.0
        %685 = vmatpush1.msra.mxu0 0.0
        %686 = vmatprep.subr.mxu0 0.0
        %687 = vmatpush1.msra.mxu0 0.0
        %688 = vmatprep.subr.mxu0 0.0
        %689 = vmatpush1.msra.mxu0 0.0
        %690 = vmatprep.subr.mxu0 0.0
        %691 = vmatpush1.msra.mxu0 0.0
        %692 = vmatprep.subr.mxu0 0.0
        %693 = vmatpush1.msra.mxu0 0.0
        %694 = vmatprep.subr.mxu0 0.0
        %695 = vmatpush1.msra.mxu0 0.0
        %696 = vmatprep.mubr.f32.mxu0 0.0
        %697 = vmatmul.mubr.f32.gmra.mrb[0].mxu0 %v615
        %v698 = vpop.f32.mrb[0].mxu0
        %v699 = vadd.f32 0.0, %v698
        %v700 = vpop.f32.mrb[0].mxu0
        %v701 = vadd.f32 0.0, %v700
        %702 = vmatprep.mubr.f32.mxu0 0.0
        %703 = vmatmul.mubr.f32.gmra.mrb[0].mxu0 %v618
        %v704 = vpop.f32.mrb[0].mxu0
        %v705 = vadd.f32 0.0, %v704
        %v706 = vpop.f32.mrb[0].mxu0
        %v707 = vadd.f32 0.0, %v706
        %708 = vmatprep.mubr.f32.mxu0 0.0
        %709 = vmatmul.mubr.f32.gmra.mrb[0].mxu0 %v621
        %v710 = vpop.f32.mrb[0].mxu0
        %v711 = vadd.f32 0.0, %v710
        %v712 = vpop.f32.mrb[0].mxu0
        %v713 = vadd.f32 0.0, %v712
        %714 = vmatprep.mubr.f32.mxu0 0.0
        %715 = vmatmul.mubr.f32.gmra.mrb[0].mxu0 %v624
        %v716 = vpop.f32.mrb[0].mxu0
        %v717 = vadd.f32 0.0, %v716
        %v718 = vpop.f32.mrb[0].mxu0
        %v719 = vadd.f32 0.0, %v718
        %720 = vdwg.mxu0
        %v721 = vadd.f32 %v567, %v699
        %v722 = vadd.f32 %v569, %v701
        %v723 = vadd.f32 %v573, %v705
        %v724 = vadd.f32 %v575, %v707
        %v725 = vadd.f32 %v579, %v711
        %v726 = vadd.f32 %v581, %v713
        %v727 = vadd.f32 %v585, %v717
        %v728 = vadd.f32 %v587, %v719
        %729 = vrot.lane.b32.xlu0 %v303, 1
        %v730 = vpop.permute.xlu0 %729
        %731 = vrot.lane.b32.xlu0 %v320, 1
        %v732 = vpop.permute.xlu0 %731
        %vm733 = vcmp.lt.s32.totalorder %v327, 1
        %v734 = vsel %vm733, %v730, %v732
        %v735 = vsel %vm733, %v732, %v730
        %v737 = vlaneseq
        %v738 = vshrl.u32 %v737, 7
        %v739 = vsub.s32 0, %v738
        %v740 = vrot.slane %v310, %v739
        %v741 = vlaneseq
        %v742 = vshrl.u32 %v741, 7
        %v743 = vsub.s32 1, %v742
        %v744 = vrot.slane %v310, %v743
        %v747 = vmul.f32 %v735, %v740
        %v748 = vmul.f32 %v734, %v744
        %s749 = scalar_lea.vmem %s2, 96
        %v750 = vld [vmem:[%s749] sm:$0xff]
        %v751 = vld [vmem:[%s749 + $0x8] sm:$0xff]
        %v752 = vld [vmem:[%s749 + $0x10] sm:$0xff]
        %v753 = vld [vmem:[%s749 + $0x18] sm:$0xff]
        %v755 = vsel %vm373, %v750, 0
        %v758 = vsel %vm373, %v751, 0
        %v761 = vsel %vm373, %v752, 0
        %v764 = vsel %vm373, %v753, 0
        %v767 = vsel %vm386, %v747, 0
        %v770 = vsel %vm386, %v748, 0
        %772 = vmatprep.subr.mxu0 %v770
        %773 = vmatpush1.msra.mxu0 %v767
        %774 = vmatprep.subr.mxu0 0.0
        %775 = vmatpush1.msra.mxu0 0.0
        %776 = vmatprep.subr.mxu0 0.0
        %777 = vmatpush1.msra.mxu0 0.0
        %778 = vmatprep.subr.mxu0 0.0
        %779 = vmatpush1.msra.mxu0 0.0
        %780 = vmatprep.subr.mxu0 0.0
        %781 = vmatpush1.msra.mxu0 0.0
        %782 = vmatprep.subr.mxu0 0.0
        %783 = vmatpush1.msra.mxu0 0.0
        %784 = vmatprep.subr.mxu0 0.0
        %785 = vmatpush1.msra.mxu0 0.0
        %786 = vmatprep.subr.mxu0 0.0
        %787 = vmatpush1.msra.mxu0 0.0
        %788 = vmatprep.subr.mxu0 0.0
        %789 = vmatpush1.msra.mxu0 0.0
        %790 = vmatprep.subr.mxu0 0.0
        %791 = vmatpush1.msra.mxu0 0.0
        %792 = vmatprep.subr.mxu0 0.0
        %793 = vmatpush1.msra.mxu0 0.0
        %794 = vmatprep.subr.mxu0 0.0
        %795 = vmatpush1.msra.mxu0 0.0
        %796 = vmatprep.subr.mxu0 0.0
        %797 = vmatpush1.msra.mxu0 0.0
        %798 = vmatprep.subr.mxu0 0.0
        %799 = vmatpush1.msra.mxu0 0.0
        %800 = vmatprep.subr.mxu0 0.0
        %801 = vmatpush1.msra.mxu0 0.0
        %802 = vmatprep.subr.mxu0 0.0
        %803 = vmatpush1.msra.mxu0 0.0
        %804 = vmatprep.subr.mxu0 0.0
        %805 = vmatpush1.msra.mxu0 0.0
        %806 = vmatprep.subr.mxu0 0.0
        %807 = vmatpush1.msra.mxu0 0.0
        %808 = vmatprep.subr.mxu0 0.0
        %809 = vmatpush1.msra.mxu0 0.0
        %810 = vmatprep.subr.mxu0 0.0
        %811 = vmatpush1.msra.mxu0 0.0
        %812 = vmatprep.subr.mxu0 0.0
        %813 = vmatpush1.msra.mxu0 0.0
        %814 = vmatprep.subr.mxu0 0.0
        %815 = vmatpush1.msra.mxu0 0.0
        %816 = vmatprep.subr.mxu0 0.0
        %817 = vmatpush1.msra.mxu0 0.0
        %818 = vmatprep.subr.mxu0 0.0
        %819 = vmatpush1.msra.mxu0 0.0
        %820 = vmatprep.subr.mxu0 0.0
        %821 = vmatpush1.msra.mxu0 0.0
        %822 = vmatprep.subr.mxu0 0.0
        %823 = vmatpush1.msra.mxu0 0.0
        %824 = vmatprep.subr.mxu0 0.0
        %825 = vmatpush1.msra.mxu0 0.0
        %826 = vmatprep.subr.mxu0 0.0
        %827 = vmatpush1.msra.mxu0 0.0
        %828 = vmatprep.subr.mxu0 0.0
        %829 = vmatpush1.msra.mxu0 0.0
        %830 = vmatprep.subr.mxu0 0.0
        %831 = vmatpush1.msra.mxu0 0.0
        %832 = vmatprep.subr.mxu0 0.0
        %833 = vmatpush1.msra.mxu0 0.0
        %834 = vmatprep.subr.mxu0 0.0
        %835 = vmatpush1.msra.mxu0 0.0
        %836 = vmatprep.mubr.f32.mxu0 0.0
        %837 = vmatmul.mubr.f32.gmra.mrb[0].mxu0 %v755
        %v838 = vpop.f32.mrb[0].mxu0
        %v839 = vadd.f32 0.0, %v838
        %v840 = vpop.f32.mrb[0].mxu0
        %v841 = vadd.f32 0.0, %v840
        %842 = vmatprep.mubr.f32.mxu0 0.0
        %843 = vmatmul.mubr.f32.gmra.mrb[0].mxu0 %v758
        %v844 = vpop.f32.mrb[0].mxu0
        %v845 = vadd.f32 0.0, %v844
        %v846 = vpop.f32.mrb[0].mxu0
        %v847 = vadd.f32 0.0, %v846
        %848 = vmatprep.mubr.f32.mxu0 0.0
        %849 = vmatmul.mubr.f32.gmra.mrb[0].mxu0 %v761
        %v850 = vpop.f32.mrb[0].mxu0
        %v851 = vadd.f32 0.0, %v850
        %v852 = vpop.f32.mrb[0].mxu0
        %v853 = vadd.f32 0.0, %v852
        %854 = vmatprep.mubr.f32.mxu0 0.0
        %855 = vmatmul.mubr.f32.gmra.mrb[0].mxu0 %v764
        %v856 = vpop.f32.mrb[0].mxu0
        %v857 = vadd.f32 0.0, %v856
        %v858 = vpop.f32.mrb[0].mxu0
        %v859 = vadd.f32 0.0, %v858
        %860 = vdwg.mxu0
        %v861 = vadd.f32 %v721, %v839
        %v862 = vadd.f32 %v722, %v841
        %v863 = vadd.f32 %v723, %v845
        %v864 = vadd.f32 %v724, %v847
        %v865 = vadd.f32 %v725, %v851
        %v866 = vadd.f32 %v726, %v853
        %v867 = vadd.f32 %v727, %v857
        %v868 = vadd.f32 %v728, %v859
        %s869 = scalar_lea.vmem %s2, 128
        %v870 = vld [vmem:[%s869] sm:$0xff]
        %v871 = vld [vmem:[%s869 + $0x8] sm:$0xff]
        %v872 = vld [vmem:[%s869 + $0x10] sm:$0xff]
        %v873 = vld [vmem:[%s869 + $0x18] sm:$0xff]
        %v875 = vsel %vm373, %v870, 0
        %v878 = vsel %vm373, %v871, 0
        %v881 = vsel %vm373, %v872, 0
        %v884 = vsel %vm373, %v873, 0
        %v886 = vsel %vm386, %v303, 0
        %v888 = vsel %vm386, %v320, 0
        %890 = vmatprep.subr.mxu0 %v888
        %891 = vmatpush1.msra.mxu0 %v886
        %892 = vmatprep.subr.mxu0 0.0
        %893 = vmatpush1.msra.mxu0 0.0
        %894 = vmatprep.subr.mxu0 0.0
        %895 = vmatpush1.msra.mxu0 0.0
        %896 = vmatprep.subr.mxu0 0.0
        %897 = vmatpush1.msra.mxu0 0.0
        %898 = vmatprep.subr.mxu0 0.0
        %899 = vmatpush1.msra.mxu0 0.0
        %900 = vmatprep.subr.mxu0 0.0
        %901 = vmatpush1.msra.mxu0 0.0
        %902 = vmatprep.subr.mxu0 0.0
        %903 = vmatpush1.msra.mxu0 0.0
        %904 = vmatprep.subr.mxu0 0.0
        %905 = vmatpush1.msra.mxu0 0.0
        %906 = vmatprep.subr.mxu0 0.0
        %907 = vmatpush1.msra.mxu0 0.0
        %908 = vmatprep.subr.mxu0 0.0
        %909 = vmatpush1.msra.mxu0 0.0
        %910 = vmatprep.subr.mxu0 0.0
        %911 = vmatpush1.msra.mxu0 0.0
        %912 = vmatprep.subr.mxu0 0.0
        %913 = vmatpush1.msra.mxu0 0.0
        %914 = vmatprep.subr.mxu0 0.0
        %915 = vmatpush1.msra.mxu0 0.0
        %916 = vmatprep.subr.mxu0 0.0
        %917 = vmatpush1.msra.mxu0 0.0
        %918 = vmatprep.subr.mxu0 0.0
        %919 = vmatpush1.msra.mxu0 0.0
        %920 = vmatprep.subr.mxu0 0.0
        %921 = vmatpush1.msra.mxu0 0.0
        %922 = vmatprep.subr.mxu0 0.0
        %923 = vmatpush1.msra.mxu0 0.0
        %924 = vmatprep.subr.mxu0 0.0
        %925 = vmatpush1.msra.mxu0 0.0
        %926 = vmatprep.subr.mxu0 0.0
        %927 = vmatpush1.msra.mxu0 0.0
        %928 = vmatprep.subr.mxu0 0.0
        %929 = vmatpush1.msra.mxu0 0.0
        %930 = vmatprep.subr.mxu0 0.0
        %931 = vmatpush1.msra.mxu0 0.0
        %932 = vmatprep.subr.mxu0 0.0
        %933 = vmatpush1.msra.mxu0 0.0
        %934 = vmatprep.subr.mxu0 0.0
        %935 = vmatpush1.msra.mxu0 0.0
        %936 = vmatprep.subr.mxu0 0.0
        %937 = vmatpush1.msra.mxu0 0.0
        %938 = vmatprep.subr.mxu0 0.0
        %939 = vmatpush1.msra.mxu0 0.0
        %940 = vmatprep.subr.mxu0 0.0
        %941 = vmatpush1.msra.mxu0 0.0
        %942 = vmatprep.subr.mxu0 0.0
        %943 = vmatpush1.msra.mxu0 0.0
        %944 = vmatprep.subr.mxu0 0.0
        %945 = vmatpush1.msra.mxu0 0.0
        %946 = vmatprep.subr.mxu0 0.0
        %947 = vmatpush1.msra.mxu0 0.0
        %948 = vmatprep.subr.mxu0 0.0
        %949 = vmatpush1.msra.mxu0 0.0
        %950 = vmatprep.subr.mxu0 0.0
        %951 = vmatpush1.msra.mxu0 0.0
        %952 = vmatprep.subr.mxu0 0.0
        %953 = vmatpush1.msra.mxu0 0.0
        %954 = vmatprep.mubr.f32.mxu0 0.0
        %955 = vmatmul.mubr.f32.gmra.mrb[0].mxu0 %v875
        %v956 = vpop.f32.mrb[0].mxu0
        %v957 = vadd.f32 0.0, %v956
        %v958 = vpop.f32.mrb[0].mxu0
        %v959 = vadd.f32 0.0, %v958
        %960 = vmatprep.mubr.f32.mxu0 0.0
        %961 = vmatmul.mubr.f32.gmra.mrb[0].mxu0 %v878
        %v962 = vpop.f32.mrb[0].mxu0
        %v963 = vadd.f32 0.0, %v962
        %v964 = vpop.f32.mrb[0].mxu0
        %v965 = vadd.f32 0.0, %v964
        %966 = vmatprep.mubr.f32.mxu0 0.0
        %967 = vmatmul.mubr.f32.gmra.mrb[0].mxu0 %v881
        %v968 = vpop.f32.mrb[0].mxu0
        %v969 = vadd.f32 0.0, %v968
        %v970 = vpop.f32.mrb[0].mxu0
        %v971 = vadd.f32 0.0, %v970
        %972 = vmatprep.mubr.f32.mxu0 0.0
        %973 = vmatmul.mubr.f32.gmra.mrb[0].mxu0 %v884
        %v974 = vpop.f32.mrb[0].mxu0
        %v975 = vadd.f32 0.0, %v974
        %v976 = vpop.f32.mrb[0].mxu0
        %v977 = vadd.f32 0.0, %v976
        %978 = vdwg.mxu0
        %v979 = vadd.f32 %v861, %v957
        %v980 = vadd.f32 %v862, %v959
        %v981 = vadd.f32 %v863, %v963
        %v982 = vadd.f32 %v864, %v965
        %v983 = vadd.f32 %v865, %v969
        %v984 = vadd.f32 %v866, %v971
        %v985 = vadd.f32 %v867, %v975
        %v986 = vadd.f32 %v868, %v977
        %987 = vrot.lane.b32.xlu0 %v303, 127
        %v988 = vpop.permute.xlu0 %987
        %989 = vrot.lane.b32.xlu0 %v320, 127
        %v990 = vpop.permute.xlu0 %989
        %vm991 = vcmp.lt.s32.totalorder %v327, 127
        %v992 = vsel %vm991, %v988, %v990
        %v993 = vsel %vm991, %v990, %v988
        %v995 = vlaneseq
        %v996 = vshrl.u32 %v995, 7
        %v997 = vsub.s32 0, %v996
        %v998 = vrot.slane %v312, %v997
        %v999 = vlaneseq
        %v1000 = vshrl.u32 %v999, 7
        %v1001 = vsub.s32 1, %v1000
        %v1002 = vrot.slane %v312, %v1001
        %v1005 = vmul.f32 %v992, %v998
        %v1006 = vmul.f32 %v993, %v1002
        %s1007 = scalar_lea.vmem %s2, 160
        %v1008 = vld [vmem:[%s1007] sm:$0xff]
        %v1009 = vld [vmem:[%s1007 + $0x8] sm:$0xff]
        %v1010 = vld [vmem:[%s1007 + $0x10] sm:$0xff]
        %v1011 = vld [vmem:[%s1007 + $0x18] sm:$0xff]
        %v1013 = vsel %vm373, %v1008, 0
        %v1016 = vsel %vm373, %v1009, 0
        %v1019 = vsel %vm373, %v1010, 0
        %v1022 = vsel %vm373, %v1011, 0
        %v1025 = vsel %vm386, %v1005, 0
        %v1028 = vsel %vm386, %v1006, 0
        %1030 = vmatprep.subr.mxu0 %v1028
        %1031 = vmatpush1.msra.mxu0 %v1025
        %1032 = vmatprep.subr.mxu0 0.0
        %1033 = vmatpush1.msra.mxu0 0.0
        %1034 = vmatprep.subr.mxu0 0.0
        %1035 = vmatpush1.msra.mxu0 0.0
        %1036 = vmatprep.subr.mxu0 0.0
        %1037 = vmatpush1.msra.mxu0 0.0
        %1038 = vmatprep.subr.mxu0 0.0
        %1039 = vmatpush1.msra.mxu0 0.0
        %1040 = vmatprep.subr.mxu0 0.0
        %1041 = vmatpush1.msra.mxu0 0.0
        %1042 = vmatprep.subr.mxu0 0.0
        %1043 = vmatpush1.msra.mxu0 0.0
        %1044 = vmatprep.subr.mxu0 0.0
        %1045 = vmatpush1.msra.mxu0 0.0
        %1046 = vmatprep.subr.mxu0 0.0
        %1047 = vmatpush1.msra.mxu0 0.0
        %1048 = vmatprep.subr.mxu0 0.0
        %1049 = vmatpush1.msra.mxu0 0.0
        %1050 = vmatprep.subr.mxu0 0.0
        %1051 = vmatpush1.msra.mxu0 0.0
        %1052 = vmatprep.subr.mxu0 0.0
        %1053 = vmatpush1.msra.mxu0 0.0
        %1054 = vmatprep.subr.mxu0 0.0
        %1055 = vmatpush1.msra.mxu0 0.0
        %1056 = vmatprep.subr.mxu0 0.0
        %1057 = vmatpush1.msra.mxu0 0.0
        %1058 = vmatprep.subr.mxu0 0.0
        %1059 = vmatpush1.msra.mxu0 0.0
        %1060 = vmatprep.subr.mxu0 0.0
        %1061 = vmatpush1.msra.mxu0 0.0
        %1062 = vmatprep.subr.mxu0 0.0
        %1063 = vmatpush1.msra.mxu0 0.0
        %1064 = vmatprep.subr.mxu0 0.0
        %1065 = vmatpush1.msra.mxu0 0.0
        %1066 = vmatprep.subr.mxu0 0.0
        %1067 = vmatpush1.msra.mxu0 0.0
        %1068 = vmatprep.subr.mxu0 0.0
        %1069 = vmatpush1.msra.mxu0 0.0
        %1070 = vmatprep.subr.mxu0 0.0
        %1071 = vmatpush1.msra.mxu0 0.0
        %1072 = vmatprep.subr.mxu0 0.0
        %1073 = vmatpush1.msra.mxu0 0.0
        %1074 = vmatprep.subr.mxu0 0.0
        %1075 = vmatpush1.msra.mxu0 0.0
        %1076 = vmatprep.subr.mxu0 0.0
        %1077 = vmatpush1.msra.mxu0 0.0
        %1078 = vmatprep.subr.mxu0 0.0
        %1079 = vmatpush1.msra.mxu0 0.0
        %1080 = vmatprep.subr.mxu0 0.0
        %1081 = vmatpush1.msra.mxu0 0.0
        %1082 = vmatprep.subr.mxu0 0.0
        %1083 = vmatpush1.msra.mxu0 0.0
        %1084 = vmatprep.subr.mxu0 0.0
        %1085 = vmatpush1.msra.mxu0 0.0
        %1086 = vmatprep.subr.mxu0 0.0
        %1087 = vmatpush1.msra.mxu0 0.0
        %1088 = vmatprep.subr.mxu0 0.0
        %1089 = vmatpush1.msra.mxu0 0.0
        %1090 = vmatprep.subr.mxu0 0.0
        %1091 = vmatpush1.msra.mxu0 0.0
        %1092 = vmatprep.subr.mxu0 0.0
        %1093 = vmatpush1.msra.mxu0 0.0
        %1094 = vmatprep.mubr.f32.mxu0 0.0
        %1095 = vmatmul.mubr.f32.gmra.mrb[0].mxu0 %v1013
        %v1096 = vpop.f32.mrb[0].mxu0
        %v1097 = vadd.f32 0.0, %v1096
        %v1098 = vpop.f32.mrb[0].mxu0
        %v1099 = vadd.f32 0.0, %v1098
        %1100 = vmatprep.mubr.f32.mxu0 0.0
        %1101 = vmatmul.mubr.f32.gmra.mrb[0].mxu0 %v1016
        %v1102 = vpop.f32.mrb[0].mxu0
        %v1103 = vadd.f32 0.0, %v1102
        %v1104 = vpop.f32.mrb[0].mxu0
        %v1105 = vadd.f32 0.0, %v1104
        %1106 = vmatprep.mubr.f32.mxu0 0.0
        %1107 = vmatmul.mubr.f32.gmra.mrb[0].mxu0 %v1019
        %v1108 = vpop.f32.mrb[0].mxu0
        %v1109 = vadd.f32 0.0, %v1108
        %v1110 = vpop.f32.mrb[0].mxu0
        %v1111 = vadd.f32 0.0, %v1110
        %1112 = vmatprep.mubr.f32.mxu0 0.0
        %1113 = vmatmul.mubr.f32.gmra.mrb[0].mxu0 %v1022
        %v1114 = vpop.f32.mrb[0].mxu0
        %v1115 = vadd.f32 0.0, %v1114
        %v1116 = vpop.f32.mrb[0].mxu0
        %v1117 = vadd.f32 0.0, %v1116
        %1118 = vdwg.mxu0
        %v1119 = vadd.f32 %v979, %v1097
        %v1120 = vadd.f32 %v980, %v1099
        %v1121 = vadd.f32 %v981, %v1103
        %v1122 = vadd.f32 %v982, %v1105
        %v1123 = vadd.f32 %v983, %v1109
        %v1124 = vadd.f32 %v984, %v1111
        %v1125 = vadd.f32 %v985, %v1115
        %v1126 = vadd.f32 %v986, %v1117
        %1127 = vrot.lane.b32.xlu0 %v303, 113
        %v1128 = vpop.permute.xlu0 %1127
        %1129 = vrot.lane.b32.xlu0 %v320, 113
        %v1130 = vpop.permute.xlu0 %1129
        %vm1131 = vcmp.lt.s32.totalorder %v327, 113
        %v1132 = vsel %vm1131, %v1128, %v1130
        %v1133 = vsel %vm1131, %v1130, %v1128
        %v1135 = vlaneseq
        %v1136 = vshrl.u32 %v1135, 7
        %v1137 = vsub.s32 0, %v1136
        %v1138 = vrot.slane %v314, %v1137
        %v1139 = vlaneseq
        %v1140 = vshrl.u32 %v1139, 7
        %v1141 = vsub.s32 1, %v1140
        %v1142 = vrot.slane %v314, %v1141
        %v1145 = vmul.f32 %v1132, %v1138
        %v1146 = vmul.f32 %v1133, %v1142
        %s1147 = scalar_lea.vmem %s2, 192
        %v1148 = vld [vmem:[%s1147] sm:$0xff]
        %v1149 = vld [vmem:[%s1147 + $0x8] sm:$0xff]
        %v1150 = vld [vmem:[%s1147 + $0x10] sm:$0xff]
        %v1151 = vld [vmem:[%s1147 + $0x18] sm:$0xff]
        %v1153 = vsel %vm373, %v1148, 0
        %v1156 = vsel %vm373, %v1149, 0
        %v1159 = vsel %vm373, %v1150, 0
        %v1162 = vsel %vm373, %v1151, 0
        %v1165 = vsel %vm386, %v1145, 0
        %v1168 = vsel %vm386, %v1146, 0
        %1170 = vmatprep.subr.mxu0 %v1168
        %1171 = vmatpush1.msra.mxu0 %v1165
        %1172 = vmatprep.subr.mxu0 0.0
        %1173 = vmatpush1.msra.mxu0 0.0
        %1174 = vmatprep.subr.mxu0 0.0
        %1175 = vmatpush1.msra.mxu0 0.0
        %1176 = vmatprep.subr.mxu0 0.0
        %1177 = vmatpush1.msra.mxu0 0.0
        %1178 = vmatprep.subr.mxu0 0.0
        %1179 = vmatpush1.msra.mxu0 0.0
        %1180 = vmatprep.subr.mxu0 0.0
        %1181 = vmatpush1.msra.mxu0 0.0
        %1182 = vmatprep.subr.mxu0 0.0
        %1183 = vmatpush1.msra.mxu0 0.0
        %1184 = vmatprep.subr.mxu0 0.0
        %1185 = vmatpush1.msra.mxu0 0.0
        %1186 = vmatprep.subr.mxu0 0.0
        %1187 = vmatpush1.msra.mxu0 0.0
        %1188 = vmatprep.subr.mxu0 0.0
        %1189 = vmatpush1.msra.mxu0 0.0
        %1190 = vmatprep.subr.mxu0 0.0
        %1191 = vmatpush1.msra.mxu0 0.0
        %1192 = vmatprep.subr.mxu0 0.0
        %1193 = vmatpush1.msra.mxu0 0.0
        %1194 = vmatprep.subr.mxu0 0.0
        %1195 = vmatpush1.msra.mxu0 0.0
        %1196 = vmatprep.subr.mxu0 0.0
        %1197 = vmatpush1.msra.mxu0 0.0
        %1198 = vmatprep.subr.mxu0 0.0
        %1199 = vmatpush1.msra.mxu0 0.0
        %1200 = vmatprep.subr.mxu0 0.0
        %1201 = vmatpush1.msra.mxu0 0.0
        %1202 = vmatprep.subr.mxu0 0.0
        %1203 = vmatpush1.msra.mxu0 0.0
        %1204 = vmatprep.subr.mxu0 0.0
        %1205 = vmatpush1.msra.mxu0 0.0
        %1206 = vmatprep.subr.mxu0 0.0
        %1207 = vmatpush1.msra.mxu0 0.0
        %1208 = vmatprep.subr.mxu0 0.0
        %1209 = vmatpush1.msra.mxu0 0.0
        %1210 = vmatprep.subr.mxu0 0.0
        %1211 = vmatpush1.msra.mxu0 0.0
        %1212 = vmatprep.subr.mxu0 0.0
        %1213 = vmatpush1.msra.mxu0 0.0
        %1214 = vmatprep.subr.mxu0 0.0
        %1215 = vmatpush1.msra.mxu0 0.0
        %1216 = vmatprep.subr.mxu0 0.0
        %1217 = vmatpush1.msra.mxu0 0.0
        %1218 = vmatprep.subr.mxu0 0.0
        %1219 = vmatpush1.msra.mxu0 0.0
        %1220 = vmatprep.subr.mxu0 0.0
        %1221 = vmatpush1.msra.mxu0 0.0
        %1222 = vmatprep.subr.mxu0 0.0
        %1223 = vmatpush1.msra.mxu0 0.0
        %1224 = vmatprep.subr.mxu0 0.0
        %1225 = vmatpush1.msra.mxu0 0.0
        %1226 = vmatprep.subr.mxu0 0.0
        %1227 = vmatpush1.msra.mxu0 0.0
        %1228 = vmatprep.subr.mxu0 0.0
        %1229 = vmatpush1.msra.mxu0 0.0
        %1230 = vmatprep.subr.mxu0 0.0
        %1231 = vmatpush1.msra.mxu0 0.0
        %1232 = vmatprep.subr.mxu0 0.0
        %1233 = vmatpush1.msra.mxu0 0.0
        %1234 = vmatprep.mubr.f32.mxu0 0.0
        %1235 = vmatmul.mubr.f32.gmra.mrb[0].mxu0 %v1153
        %v1236 = vpop.f32.mrb[0].mxu0
        %v1237 = vadd.f32 0.0, %v1236
        %v1238 = vpop.f32.mrb[0].mxu0
        %v1239 = vadd.f32 0.0, %v1238
        %1240 = vmatprep.mubr.f32.mxu0 0.0
        %1241 = vmatmul.mubr.f32.gmra.mrb[0].mxu0 %v1156
        %v1242 = vpop.f32.mrb[0].mxu0
        %v1243 = vadd.f32 0.0, %v1242
        %v1244 = vpop.f32.mrb[0].mxu0
        %v1245 = vadd.f32 0.0, %v1244
        %1246 = vmatprep.mubr.f32.mxu0 0.0
        %1247 = vmatmul.mubr.f32.gmra.mrb[0].mxu0 %v1159
        %v1248 = vpop.f32.mrb[0].mxu0
        %v1249 = vadd.f32 0.0, %v1248
        %v1250 = vpop.f32.mrb[0].mxu0
        %v1251 = vadd.f32 0.0, %v1250
        %1252 = vmatprep.mubr.f32.mxu0 0.0
        %1253 = vmatmul.mubr.f32.gmra.mrb[0].mxu0 %v1162
        %v1254 = vpop.f32.mrb[0].mxu0
        %v1255 = vadd.f32 0.0, %v1254
        %v1256 = vpop.f32.mrb[0].mxu0
        %v1257 = vadd.f32 0.0, %v1256
        %1258 = vdwg.mxu0
        %v1259 = vadd.f32 %v1119, %v1237
        %v1260 = vadd.f32 %v1120, %v1239
        %v1261 = vadd.f32 %v1121, %v1243
        %v1262 = vadd.f32 %v1122, %v1245
        %v1263 = vadd.f32 %v1123, %v1249
        %v1264 = vadd.f32 %v1124, %v1251
        %v1265 = vadd.f32 %v1125, %v1255
        %v1266 = vadd.f32 %v1126, %v1257
        %1267 = vrot.lane.b32.xlu0 %v303, 112
        %v1268 = vpop.permute.xlu0 %1267
        %1269 = vrot.lane.b32.xlu0 %v320, 112
        %v1270 = vpop.permute.xlu0 %1269
        %vm1271 = vcmp.lt.s32.totalorder %v327, 112
        %v1272 = vsel %vm1271, %v1268, %v1270
        %v1273 = vsel %vm1271, %v1270, %v1268
        %v1275 = vlaneseq
        %v1276 = vshrl.u32 %v1275, 7
        %v1277 = vsub.s32 0, %v1276
        %v1278 = vrot.slane %v316, %v1277
        %v1279 = vlaneseq
        %v1280 = vshrl.u32 %v1279, 7
        %v1281 = vsub.s32 1, %v1280
        %v1282 = vrot.slane %v316, %v1281
        %v1285 = vmul.f32 %v1272, %v1278
        %v1286 = vmul.f32 %v1273, %v1282
        %s1287 = scalar_lea.vmem %s2, 224
        %v1288 = vld [vmem:[%s1287] sm:$0xff]
        %v1289 = vld [vmem:[%s1287 + $0x8] sm:$0xff]
        %v1290 = vld [vmem:[%s1287 + $0x10] sm:$0xff]
        %v1291 = vld [vmem:[%s1287 + $0x18] sm:$0xff]
        %v1293 = vsel %vm373, %v1288, 0
        %v1296 = vsel %vm373, %v1289, 0
        %v1299 = vsel %vm373, %v1290, 0
        %v1302 = vsel %vm373, %v1291, 0
        %v1305 = vsel %vm386, %v1285, 0
        %v1308 = vsel %vm386, %v1286, 0
        %1310 = vmatprep.subr.mxu0 %v1308
        %1311 = vmatpush1.msra.mxu0 %v1305
        %1312 = vmatprep.subr.mxu0 0.0
        %1313 = vmatpush1.msra.mxu0 0.0
        %1314 = vmatprep.subr.mxu0 0.0
        %1315 = vmatpush1.msra.mxu0 0.0
        %1316 = vmatprep.subr.mxu0 0.0
        %1317 = vmatpush1.msra.mxu0 0.0
        %1318 = vmatprep.subr.mxu0 0.0
        %1319 = vmatpush1.msra.mxu0 0.0
        %1320 = vmatprep.subr.mxu0 0.0
        %1321 = vmatpush1.msra.mxu0 0.0
        %1322 = vmatprep.subr.mxu0 0.0
        %1323 = vmatpush1.msra.mxu0 0.0
        %1324 = vmatprep.subr.mxu0 0.0
        %1325 = vmatpush1.msra.mxu0 0.0
        %1326 = vmatprep.subr.mxu0 0.0
        %1327 = vmatpush1.msra.mxu0 0.0
        %1328 = vmatprep.subr.mxu0 0.0
        %1329 = vmatpush1.msra.mxu0 0.0
        %1330 = vmatprep.subr.mxu0 0.0
        %1331 = vmatpush1.msra.mxu0 0.0
        %1332 = vmatprep.subr.mxu0 0.0
        %1333 = vmatpush1.msra.mxu0 0.0
        %1334 = vmatprep.subr.mxu0 0.0
        %1335 = vmatpush1.msra.mxu0 0.0
        %1336 = vmatprep.subr.mxu0 0.0
        %1337 = vmatpush1.msra.mxu0 0.0
        %1338 = vmatprep.subr.mxu0 0.0
        %1339 = vmatpush1.msra.mxu0 0.0
        %1340 = vmatprep.subr.mxu0 0.0
        %1341 = vmatpush1.msra.mxu0 0.0
        %1342 = vmatprep.subr.mxu0 0.0
        %1343 = vmatpush1.msra.mxu0 0.0
        %1344 = vmatprep.subr.mxu0 0.0
        %1345 = vmatpush1.msra.mxu0 0.0
        %1346 = vmatprep.subr.mxu0 0.0
        %1347 = vmatpush1.msra.mxu0 0.0
        %1348 = vmatprep.subr.mxu0 0.0
        %1349 = vmatpush1.msra.mxu0 0.0
        %1350 = vmatprep.subr.mxu0 0.0
        %1351 = vmatpush1.msra.mxu0 0.0
        %1352 = vmatprep.subr.mxu0 0.0
        %1353 = vmatpush1.msra.mxu0 0.0
        %1354 = vmatprep.subr.mxu0 0.0
        %1355 = vmatpush1.msra.mxu0 0.0
        %1356 = vmatprep.subr.mxu0 0.0
        %1357 = vmatpush1.msra.mxu0 0.0
        %1358 = vmatprep.subr.mxu0 0.0
        %1359 = vmatpush1.msra.mxu0 0.0
        %1360 = vmatprep.subr.mxu0 0.0
        %1361 = vmatpush1.msra.mxu0 0.0
        %1362 = vmatprep.subr.mxu0 0.0
        %1363 = vmatpush1.msra.mxu0 0.0
        %1364 = vmatprep.subr.mxu0 0.0
        %1365 = vmatpush1.msra.mxu0 0.0
        %1366 = vmatprep.subr.mxu0 0.0
        %1367 = vmatpush1.msra.mxu0 0.0
        %1368 = vmatprep.subr.mxu0 0.0
        %1369 = vmatpush1.msra.mxu0 0.0
        %1370 = vmatprep.subr.mxu0 0.0
        %1371 = vmatpush1.msra.mxu0 0.0
        %1372 = vmatprep.subr.mxu0 0.0
        %1373 = vmatpush1.msra.mxu0 0.0
        %1374 = vmatprep.mubr.f32.mxu0 0.0
        %1375 = vmatmul.mubr.f32.gmra.mrb[0].mxu0 %v1293
        %v1376 = vpop.f32.mrb[0].mxu0
        %v1377 = vadd.f32 0.0, %v1376
        %v1378 = vpop.f32.mrb[0].mxu0
        %v1379 = vadd.f32 0.0, %v1378
        %1380 = vmatprep.mubr.f32.mxu0 0.0
        %1381 = vmatmul.mubr.f32.gmra.mrb[0].mxu0 %v1296
        %v1382 = vpop.f32.mrb[0].mxu0
        %v1383 = vadd.f32 0.0, %v1382
        %v1384 = vpop.f32.mrb[0].mxu0
        %v1385 = vadd.f32 0.0, %v1384
        %1386 = vmatprep.mubr.f32.mxu0 0.0
        %1387 = vmatmul.mubr.f32.gmra.mrb[0].mxu0 %v1299
        %v1388 = vpop.f32.mrb[0].mxu0
        %v1389 = vadd.f32 0.0, %v1388
        %v1390 = vpop.f32.mrb[0].mxu0
        %v1391 = vadd.f32 0.0, %v1390
        %1392 = vmatprep.mubr.f32.mxu0 0.0
        %1393 = vmatmul.mubr.f32.gmra.mrb[0].mxu0 %v1302
        %v1394 = vpop.f32.mrb[0].mxu0
        %v1395 = vadd.f32 0.0, %v1394
        %v1396 = vpop.f32.mrb[0].mxu0
        %v1397 = vadd.f32 0.0, %v1396
        %1398 = vdwg.mxu0
        %v1399 = vadd.f32 %v1259, %v1377
        %v1400 = vadd.f32 %v1260, %v1379
        %v1401 = vadd.f32 %v1261, %v1383
        %v1402 = vadd.f32 %v1262, %v1385
        %v1403 = vadd.f32 %v1263, %v1389
        %v1404 = vadd.f32 %v1264, %v1391
        %v1405 = vadd.f32 %v1265, %v1395
        %v1406 = vadd.f32 %v1266, %v1397
        %1407 = vrot.lane.b32.xlu0 %v303, 111
        %v1408 = vpop.permute.xlu0 %1407
        %1409 = vrot.lane.b32.xlu0 %v320, 111
        %v1410 = vpop.permute.xlu0 %1409
        %vm1411 = vcmp.lt.s32.totalorder %v327, 111
        %v1412 = vsel %vm1411, %v1408, %v1410
        %v1413 = vsel %vm1411, %v1410, %v1408
        %v1415 = vlaneseq
        %v1416 = vshrl.u32 %v1415, 7
        %v1417 = vsub.s32 0, %v1416
        %v1418 = vrot.slane %v318, %v1417
        %v1419 = vlaneseq
        %v1420 = vshrl.u32 %v1419, 7
        %v1421 = vsub.s32 1, %v1420
        %v1422 = vrot.slane %v318, %v1421
        %v1425 = vmul.f32 %v1412, %v1418
        %v1426 = vmul.f32 %v1413, %v1422
        %s1427 = scalar_lea.vmem %s2, 256
        %v1428 = vld [vmem:[%s1427] sm:$0xff]
        %v1429 = vld [vmem:[%s1427 + $0x8] sm:$0xff]
        %v1430 = vld [vmem:[%s1427 + $0x10] sm:$0xff]
        %v1431 = vld [vmem:[%s1427 + $0x18] sm:$0xff]
        %v1433 = vsel %vm373, %v1428, 0
        %v1436 = vsel %vm373, %v1429, 0
        %v1439 = vsel %vm373, %v1430, 0
        %v1442 = vsel %vm373, %v1431, 0
        %v1445 = vsel %vm386, %v1425, 0
        %v1448 = vsel %vm386, %v1426, 0
        %1450 = vmatprep.subr.mxu0 %v1448
        %1451 = vmatpush1.msra.mxu0 %v1445
        %1452 = vmatprep.subr.mxu0 0.0
        %1453 = vmatpush1.msra.mxu0 0.0
        %1454 = vmatprep.subr.mxu0 0.0
        %1455 = vmatpush1.msra.mxu0 0.0
        %1456 = vmatprep.subr.mxu0 0.0
        %1457 = vmatpush1.msra.mxu0 0.0
        %1458 = vmatprep.subr.mxu0 0.0
        %1459 = vmatpush1.msra.mxu0 0.0
        %1460 = vmatprep.subr.mxu0 0.0
        %1461 = vmatpush1.msra.mxu0 0.0
        %1462 = vmatprep.subr.mxu0 0.0
        %1463 = vmatpush1.msra.mxu0 0.0
        %1464 = vmatprep.subr.mxu0 0.0
        %1465 = vmatpush1.msra.mxu0 0.0
        %1466 = vmatprep.subr.mxu0 0.0
        %1467 = vmatpush1.msra.mxu0 0.0
        %1468 = vmatprep.subr.mxu0 0.0
        %1469 = vmatpush1.msra.mxu0 0.0
        %1470 = vmatprep.subr.mxu0 0.0
        %1471 = vmatpush1.msra.mxu0 0.0
        %1472 = vmatprep.subr.mxu0 0.0
        %1473 = vmatpush1.msra.mxu0 0.0
        %1474 = vmatprep.subr.mxu0 0.0
        %1475 = vmatpush1.msra.mxu0 0.0
        %1476 = vmatprep.subr.mxu0 0.0
        %1477 = vmatpush1.msra.mxu0 0.0
        %1478 = vmatprep.subr.mxu0 0.0
        %1479 = vmatpush1.msra.mxu0 0.0
        %1480 = vmatprep.subr.mxu0 0.0
        %1481 = vmatpush1.msra.mxu0 0.0
        %1482 = vmatprep.subr.mxu0 0.0
        %1483 = vmatpush1.msra.mxu0 0.0
        %1484 = vmatprep.subr.mxu0 0.0
        %1485 = vmatpush1.msra.mxu0 0.0
        %1486 = vmatprep.subr.mxu0 0.0
        %1487 = vmatpush1.msra.mxu0 0.0
        %1488 = vmatprep.subr.mxu0 0.0
        %1489 = vmatpush1.msra.mxu0 0.0
        %1490 = vmatprep.subr.mxu0 0.0
        %1491 = vmatpush1.msra.mxu0 0.0
        %1492 = vmatprep.subr.mxu0 0.0
        %1493 = vmatpush1.msra.mxu0 0.0
        %1494 = vmatprep.subr.mxu0 0.0
        %1495 = vmatpush1.msra.mxu0 0.0
        %1496 = vmatprep.subr.mxu0 0.0
        %1497 = vmatpush1.msra.mxu0 0.0
        %1498 = vmatprep.subr.mxu0 0.0
        %1499 = vmatpush1.msra.mxu0 0.0
        %1500 = vmatprep.subr.mxu0 0.0
        %1501 = vmatpush1.msra.mxu0 0.0
        %1502 = vmatprep.subr.mxu0 0.0
        %1503 = vmatpush1.msra.mxu0 0.0
        %1504 = vmatprep.subr.mxu0 0.0
        %1505 = vmatpush1.msra.mxu0 0.0
        %1506 = vmatprep.subr.mxu0 0.0
        %1507 = vmatpush1.msra.mxu0 0.0
        %1508 = vmatprep.subr.mxu0 0.0
        %1509 = vmatpush1.msra.mxu0 0.0
        %1510 = vmatprep.subr.mxu0 0.0
        %1511 = vmatpush1.msra.mxu0 0.0
        %1512 = vmatprep.subr.mxu0 0.0
        %1513 = vmatpush1.msra.mxu0 0.0
        %1514 = vmatprep.mubr.f32.mxu0 0.0
        %1515 = vmatmul.mubr.f32.gmra.mrb[0].mxu0 %v1433
        %v1516 = vpop.f32.mrb[0].mxu0
        %v1517 = vadd.f32 0.0, %v1516
        %v1518 = vpop.f32.mrb[0].mxu0
        %v1519 = vadd.f32 0.0, %v1518
        %1520 = vmatprep.mubr.f32.mxu0 0.0
        %1521 = vmatmul.mubr.f32.gmra.mrb[0].mxu0 %v1436
        %v1522 = vpop.f32.mrb[0].mxu0
        %v1523 = vadd.f32 0.0, %v1522
        %v1524 = vpop.f32.mrb[0].mxu0
        %v1525 = vadd.f32 0.0, %v1524
        %1526 = vmatprep.mubr.f32.mxu0 0.0
        %1527 = vmatmul.mubr.f32.gmra.mrb[0].mxu0 %v1439
        %v1528 = vpop.f32.mrb[0].mxu0
        %v1529 = vadd.f32 0.0, %v1528
        %v1530 = vpop.f32.mrb[0].mxu0
        %v1531 = vadd.f32 0.0, %v1530
        %1532 = vmatprep.mubr.f32.mxu0 0.0
        %1533 = vmatmul.mubr.f32.gmra.mrb[0].mxu0 %v1442
        %v1534 = vpop.f32.mrb[0].mxu0
        %v1535 = vadd.f32 0.0, %v1534
        %v1536 = vpop.f32.mrb[0].mxu0
        %v1537 = vadd.f32 0.0, %v1536
        %1538 = vdwg.mxu0
        %v1539 = vadd.f32 %v1399, %v1517
        %v1540 = vadd.f32 %v1400, %v1519
        %v1541 = vadd.f32 %v1401, %v1523
        %v1542 = vadd.f32 %v1402, %v1525
        %v1543 = vadd.f32 %v1403, %v1529
        %v1544 = vadd.f32 %v1404, %v1531
        %v1545 = vadd.f32 %v1405, %v1535
        %v1546 = vadd.f32 %v1406, %v1537
        %v1547 = vld [vmem:[%s3] sm:$0xff]
        %v1548 = vld [vmem:[%s3 + $0x8] sm:$0xff]
        %v1549 = vld [vmem:[%s3 + $0x10] sm:$0xff]
        %v1550 = vld [vmem:[%s3 + $0x18] sm:$0xff]
        %1552 = vset.pattern.permute.xlu0 0
        %1553 = vperm.xlu0 %1552, %v1547
        %v1554 = vpop.permute.xlu0 %1553
        %1557 = vset.pattern.permute.xlu0 0
        %1558 = vperm.xlu0 %1557, %v1548
        %v1559 = vpop.permute.xlu0 %1558
        %1562 = vset.pattern.permute.xlu0 0
        %1563 = vperm.xlu0 %1562, %v1549
        %v1564 = vpop.permute.xlu0 %1563
        %1567 = vset.pattern.permute.xlu0 0
        %1568 = vperm.xlu0 %1567, %v1550
        %v1569 = vpop.permute.xlu0 %1568
        %v1571 = vadd.f32 %v1539, %v1554
        %v1572 = vadd.f32 %v1540, %v1554
        %v1573 = vadd.f32 %v1541, %v1559
        %v1574 = vadd.f32 %v1542, %v1559
        %v1575 = vadd.f32 %v1543, %v1564
        %v1576 = vadd.f32 %v1544, %v1564
        %v1577 = vadd.f32 %v1545, %v1569
        %v1578 = vadd.f32 %v1546, %v1569
        %v1579 = vmax.f32 %v1571, 0.0
        %v1580 = vmax.f32 %v1572, 0.0
        %v1581 = vmax.f32 %v1573, 0.0
        %v1582 = vmax.f32 %v1574, 0.0
        %v1583 = vmax.f32 %v1575, 0.0
        %v1584 = vmax.f32 %v1576, 0.0
        %v1585 = vmax.f32 %v1577, 0.0
        %v1586 = vmax.f32 %v1578, 0.0
        %1587 = vrot.lane.b32.xlu0 %v1579, 17
        %v1588 = vpop.permute.xlu0 %1587
        %1589 = vrot.lane.b32.xlu0 %v1581, 17
        %v1590 = vpop.permute.xlu0 %1589
        %1591 = vrot.lane.b32.xlu0 %v1583, 17
        %v1592 = vpop.permute.xlu0 %1591
        %1593 = vrot.lane.b32.xlu0 %v1585, 17
        %v1594 = vpop.permute.xlu0 %1593
        %1595 = vrot.lane.b32.xlu0 %v1580, 17
        %v1596 = vpop.permute.xlu0 %1595
        %1597 = vrot.lane.b32.xlu0 %v1582, 17
        %v1598 = vpop.permute.xlu0 %1597
        %1599 = vrot.lane.b32.xlu0 %v1584, 17
        %v1600 = vpop.permute.xlu0 %1599
        %1601 = vrot.lane.b32.xlu0 %v1586, 17
        %v1602 = vpop.permute.xlu0 %1601
        %v1603 = vsel %vm328, %v1588, %v1596
        %v1604 = vsel %vm328, %v1590, %v1598
        %v1605 = vsel %vm328, %v1592, %v1600
        %v1606 = vsel %vm328, %v1594, %v1602
        %v1607 = vsel %vm328, %v1596, %v1588
        %v1608 = vsel %vm328, %v1598, %v1590
        %v1609 = vsel %vm328, %v1600, %v1592
        %v1610 = vsel %vm328, %v1602, %v1594
        %v1611 = vmul.f32 %v1607, %v335
        %v1612 = vmul.f32 %v1603, %v339
        %v1613 = vmul.f32 %v1608, %v335
        %v1614 = vmul.f32 %v1604, %v339
        %v1615 = vmul.f32 %v1609, %v335
        %v1616 = vmul.f32 %v1605, %v339
        %v1617 = vmul.f32 %v1610, %v335
        %v1618 = vmul.f32 %v1606, %v339
        %v1619 = vld [vmem:[%s4] sm:$0xff]
        %v1620 = vld [vmem:[%s4 + $0x8] sm:$0xff]
        %v1621 = vld [vmem:[%s4 + $0x10] sm:$0xff]
        %v1622 = vld [vmem:[%s4 + $0x18] sm:$0xff]
        %1623 = vrot.lane.b32.xlu0 %v1579, 16
        %v1624 = vpop.permute.xlu0 %1623
        %1625 = vrot.lane.b32.xlu0 %v1581, 16
        %v1626 = vpop.permute.xlu0 %1625
        %1627 = vrot.lane.b32.xlu0 %v1583, 16
        %v1628 = vpop.permute.xlu0 %1627
        %1629 = vrot.lane.b32.xlu0 %v1585, 16
        %v1630 = vpop.permute.xlu0 %1629
        %1631 = vrot.lane.b32.xlu0 %v1580, 16
        %v1632 = vpop.permute.xlu0 %1631
        %1633 = vrot.lane.b32.xlu0 %v1582, 16
        %v1634 = vpop.permute.xlu0 %1633
        %1635 = vrot.lane.b32.xlu0 %v1584, 16
        %v1636 = vpop.permute.xlu0 %1635
        %1637 = vrot.lane.b32.xlu0 %v1586, 16
        %v1638 = vpop.permute.xlu0 %1637
        %v1639 = vsel %vm352, %v1624, %v1632
        %v1640 = vsel %vm352, %v1626, %v1634
        %v1641 = vsel %vm352, %v1628, %v1636
        %v1642 = vsel %vm352, %v1630, %v1638
        %v1643 = vsel %vm352, %v1632, %v1624
        %v1644 = vsel %vm352, %v1634, %v1626
        %v1645 = vsel %vm352, %v1636, %v1628
        %v1646 = vsel %vm352, %v1638, %v1630
        %v1647 = vmul.f32 %v1643, %v359
        %v1648 = vmul.f32 %v1639, %v363
        %v1649 = vmul.f32 %v1644, %v359
        %v1650 = vmul.f32 %v1640, %v363
        %v1651 = vmul.f32 %v1645, %v359
        %v1652 = vmul.f32 %v1641, %v363
        %v1653 = vmul.f32 %v1646, %v359
        %v1654 = vmul.f32 %v1642, %v363
        %s1655 = scalar_lea.vmem %s4, 32
        %v1656 = vld [vmem:[%s1655] sm:$0xff]
        %v1657 = vld [vmem:[%s1655 + $0x8] sm:$0xff]
        %v1658 = vld [vmem:[%s1655 + $0x10] sm:$0xff]
        %v1659 = vld [vmem:[%s1655 + $0x18] sm:$0xff]
        %vm1660 = vcmask 261120
        %v1662 = vsel %vm1660, %v1656, 0
        %v1665 = vsel %vm1660, %v1657, 0
        %v1668 = vsel %vm1660, %v1658, 0
        %v1671 = vsel %vm1660, %v1659, 0
        %1673 = vmatprep.subr.mxu0 %v1648
        %1674 = vmatpush1.msra.mxu0 %v1647
        %1675 = vmatprep.subr.mxu0 %v1650
        %1676 = vmatpush1.msra.mxu0 %v1649
        %1677 = vmatprep.subr.mxu0 %v1652
        %1678 = vmatpush1.msra.mxu0 %v1651
        %1679 = vmatprep.subr.mxu0 %v1654
        %1680 = vmatpush1.msra.mxu0 %v1653
        %1681 = vmatprep.subr.mxu0 0.0
        %1682 = vmatpush1.msra.mxu0 0.0
        %1683 = vmatprep.subr.mxu0 0.0
        %1684 = vmatpush1.msra.mxu0 0.0
        %1685 = vmatprep.subr.mxu0 0.0
        %1686 = vmatpush1.msra.mxu0 0.0
        %1687 = vmatprep.subr.mxu0 0.0
        %1688 = vmatpush1.msra.mxu0 0.0
        %1689 = vmatprep.subr.mxu0 0.0
        %1690 = vmatpush1.msra.mxu0 0.0
        %1691 = vmatprep.subr.mxu0 0.0
        %1692 = vmatpush1.msra.mxu0 0.0
        %1693 = vmatprep.subr.mxu0 0.0
        %1694 = vmatpush1.msra.mxu0 0.0
        %1695 = vmatprep.subr.mxu0 0.0
        %1696 = vmatpush1.msra.mxu0 0.0
        %1697 = vmatprep.subr.mxu0 0.0
        %1698 = vmatpush1.msra.mxu0 0.0
        %1699 = vmatprep.subr.mxu0 0.0
        %1700 = vmatpush1.msra.mxu0 0.0
        %1701 = vmatprep.subr.mxu0 0.0
        %1702 = vmatpush1.msra.mxu0 0.0
        %1703 = vmatprep.subr.mxu0 0.0
        %1704 = vmatpush1.msra.mxu0 0.0
        %1705 = vmatprep.subr.mxu0 0.0
        %1706 = vmatpush1.msra.mxu0 0.0
        %1707 = vmatprep.subr.mxu0 0.0
        %1708 = vmatpush1.msra.mxu0 0.0
        %1709 = vmatprep.subr.mxu0 0.0
        %1710 = vmatpush1.msra.mxu0 0.0
        %1711 = vmatprep.subr.mxu0 0.0
        %1712 = vmatpush1.msra.mxu0 0.0
        %1713 = vmatprep.subr.mxu0 0.0
        %1714 = vmatpush1.msra.mxu0 0.0
        %1715 = vmatprep.subr.mxu0 0.0
        %1716 = vmatpush1.msra.mxu0 0.0
        %1717 = vmatprep.subr.mxu0 0.0
        %1718 = vmatpush1.msra.mxu0 0.0
        %1719 = vmatprep.subr.mxu0 0.0
        %1720 = vmatpush1.msra.mxu0 0.0
        %1721 = vmatprep.subr.mxu0 0.0
        %1722 = vmatpush1.msra.mxu0 0.0
        %1723 = vmatprep.subr.mxu0 0.0
        %1724 = vmatpush1.msra.mxu0 0.0
        %1725 = vmatprep.subr.mxu0 0.0
        %1726 = vmatpush1.msra.mxu0 0.0
        %1727 = vmatprep.subr.mxu0 0.0
        %1728 = vmatpush1.msra.mxu0 0.0
        %1729 = vmatprep.subr.mxu0 0.0
        %1730 = vmatpush1.msra.mxu0 0.0
        %1731 = vmatprep.subr.mxu0 0.0
        %1732 = vmatpush1.msra.mxu0 0.0
        %1733 = vmatprep.subr.mxu0 0.0
        %1734 = vmatpush1.msra.mxu0 0.0
        %1735 = vmatprep.subr.mxu0 0.0
        %1736 = vmatpush1.msra.mxu0 0.0
        %1737 = vmatprep.mubr.f32.mxu0 0.0
        %1738 = vmatmul.mubr.f32.gmra.mrb[0].mxu0 %v1662
        %v1739 = vpop.f32.mrb[0].mxu0
        %v1740 = vadd.f32 0.0, %v1739
        %v1741 = vpop.f32.mrb[0].mxu0
        %v1742 = vadd.f32 0.0, %v1741
        %1743 = vmatprep.mubr.f32.mxu0 0.0
        %1744 = vmatmul.mubr.f32.gmra.mrb[0].mxu0 %v1665
        %v1745 = vpop.f32.mrb[0].mxu0
        %v1746 = vadd.f32 0.0, %v1745
        %v1747 = vpop.f32.mrb[0].mxu0
        %v1748 = vadd.f32 0.0, %v1747
        %1749 = vmatprep.mubr.f32.mxu0 0.0
        %1750 = vmatmul.mubr.f32.gmra.mrb[0].mxu0 %v1668
        %v1751 = vpop.f32.mrb[0].mxu0
        %v1752 = vadd.f32 0.0, %v1751
        %v1753 = vpop.f32.mrb[0].mxu0
        %v1754 = vadd.f32 0.0, %v1753
        %1755 = vmatprep.mubr.f32.mxu0 0.0
        %1756 = vmatmul.mubr.f32.gmra.mrb[0].mxu0 %v1671
        %v1757 = vpop.f32.mrb[0].mxu0
        %v1758 = vadd.f32 0.0, %v1757
        %v1759 = vpop.f32.mrb[0].mxu0
        %v1760 = vadd.f32 0.0, %v1759
        %1761 = vdwg.mxu0
        %v1763 = vsel %vm1660, %v1619, 0
        %v1766 = vsel %vm1660, %v1620, 0
        %v1769 = vsel %vm1660, %v1621, 0
        %v1772 = vsel %vm1660, %v1622, 0
        %1774 = vmatprep.subr.mxu0 %v1612
        %1775 = vmatpush1.msra.mxu0 %v1611
        %1776 = vmatprep.subr.mxu0 %v1614
        %1777 = vmatpush1.msra.mxu0 %v1613
        %1778 = vmatprep.subr.mxu0 %v1616
        %1779 = vmatpush1.msra.mxu0 %v1615
        %1780 = vmatprep.subr.mxu0 %v1618
        %1781 = vmatpush1.msra.mxu0 %v1617
        %1782 = vmatprep.subr.mxu0 0.0
        %1783 = vmatpush1.msra.mxu0 0.0
        %1784 = vmatprep.subr.mxu0 0.0
        %1785 = vmatpush1.msra.mxu0 0.0
        %1786 = vmatprep.subr.mxu0 0.0
        %1787 = vmatpush1.msra.mxu0 0.0
        %1788 = vmatprep.subr.mxu0 0.0
        %1789 = vmatpush1.msra.mxu0 0.0
        %1790 = vmatprep.subr.mxu0 0.0
        %1791 = vmatpush1.msra.mxu0 0.0
        %1792 = vmatprep.subr.mxu0 0.0
        %1793 = vmatpush1.msra.mxu0 0.0
        %1794 = vmatprep.subr.mxu0 0.0
        %1795 = vmatpush1.msra.mxu0 0.0
        %1796 = vmatprep.subr.mxu0 0.0
        %1797 = vmatpush1.msra.mxu0 0.0
        %1798 = vmatprep.subr.mxu0 0.0
        %1799 = vmatpush1.msra.mxu0 0.0
        %1800 = vmatprep.subr.mxu0 0.0
        %1801 = vmatpush1.msra.mxu0 0.0
        %1802 = vmatprep.subr.mxu0 0.0
        %1803 = vmatpush1.msra.mxu0 0.0
        %1804 = vmatprep.subr.mxu0 0.0
        %1805 = vmatpush1.msra.mxu0 0.0
        %1806 = vmatprep.subr.mxu0 0.0
        %1807 = vmatpush1.msra.mxu0 0.0
        %1808 = vmatprep.subr.mxu0 0.0
        %1809 = vmatpush1.msra.mxu0 0.0
        %1810 = vmatprep.subr.mxu0 0.0
        %1811 = vmatpush1.msra.mxu0 0.0
        %1812 = vmatprep.subr.mxu0 0.0
        %1813 = vmatpush1.msra.mxu0 0.0
        %1814 = vmatprep.subr.mxu0 0.0
        %1815 = vmatpush1.msra.mxu0 0.0
        %1816 = vmatprep.subr.mxu0 0.0
        %1817 = vmatpush1.msra.mxu0 0.0
        %1818 = vmatprep.subr.mxu0 0.0
        %1819 = vmatpush1.msra.mxu0 0.0
        %1820 = vmatprep.subr.mxu0 0.0
        %1821 = vmatpush1.msra.mxu0 0.0
        %1822 = vmatprep.subr.mxu0 0.0
        %1823 = vmatpush1.msra.mxu0 0.0
        %1824 = vmatprep.subr.mxu0 0.0
        %1825 = vmatpush1.msra.mxu0 0.0
        %1826 = vmatprep.subr.mxu0 0.0
        %1827 = vmatpush1.msra.mxu0 0.0
        %1828 = vmatprep.subr.mxu0 0.0
        %1829 = vmatpush1.msra.mxu0 0.0
        %1830 = vmatprep.subr.mxu0 0.0
        %1831 = vmatpush1.msra.mxu0 0.0
        %1832 = vmatprep.subr.mxu0 0.0
        %1833 = vmatpush1.msra.mxu0 0.0
        %1834 = vmatprep.subr.mxu0 0.0
        %1835 = vmatpush1.msra.mxu0 0.0
        %1836 = vmatprep.subr.mxu0 0.0
        %1837 = vmatpush1.msra.mxu0 0.0
        %1838 = vmatprep.mubr.f32.mxu0 0.0
        %1839 = vmatmul.mubr.f32.gmra.mrb[0].mxu0 %v1763
        %v1840 = vpop.f32.mrb[0].mxu0
        %v1841 = vadd.f32 %v1740, %v1840
        %v1842 = vpop.f32.mrb[0].mxu0
        %v1843 = vadd.f32 %v1742, %v1842
        %1844 = vmatprep.mubr.f32.mxu0 0.0
        %1845 = vmatmul.mubr.f32.gmra.mrb[0].mxu0 %v1766
        %v1846 = vpop.f32.mrb[0].mxu0
        %v1847 = vadd.f32 %v1746, %v1846
        %v1848 = vpop.f32.mrb[0].mxu0
        %v1849 = vadd.f32 %v1748, %v1848
        %1850 = vmatprep.mubr.f32.mxu0 0.0
        %1851 = vmatmul.mubr.f32.gmra.mrb[0].mxu0 %v1769
        %v1852 = vpop.f32.mrb[0].mxu0
        %v1853 = vadd.f32 %v1752, %v1852
        %v1854 = vpop.f32.mrb[0].mxu0
        %v1855 = vadd.f32 %v1754, %v1854
        %1856 = vmatprep.mubr.f32.mxu0 0.0
        %1857 = vmatmul.mubr.f32.gmra.mrb[0].mxu0 %v1772
        %v1858 = vpop.f32.mrb[0].mxu0
        %v1859 = vadd.f32 %v1758, %v1858
        %v1860 = vpop.f32.mrb[0].mxu0
        %v1861 = vadd.f32 %v1760, %v1860
        %1862 = vdwg.mxu0
        %1863 = vrot.lane.b32.xlu0 %v1579, 15
        %v1864 = vpop.permute.xlu0 %1863
        %1865 = vrot.lane.b32.xlu0 %v1581, 15
        %v1866 = vpop.permute.xlu0 %1865
        %1867 = vrot.lane.b32.xlu0 %v1583, 15
        %v1868 = vpop.permute.xlu0 %1867
        %1869 = vrot.lane.b32.xlu0 %v1585, 15
        %v1870 = vpop.permute.xlu0 %1869
        %1871 = vrot.lane.b32.xlu0 %v1580, 15
        %v1872 = vpop.permute.xlu0 %1871
        %1873 = vrot.lane.b32.xlu0 %v1582, 15
        %v1874 = vpop.permute.xlu0 %1873
        %1875 = vrot.lane.b32.xlu0 %v1584, 15
        %v1876 = vpop.permute.xlu0 %1875
        %1877 = vrot.lane.b32.xlu0 %v1586, 15
        %v1878 = vpop.permute.xlu0 %1877
        %v1879 = vsel %vm593, %v1864, %v1872
        %v1880 = vsel %vm593, %v1866, %v1874
        %v1881 = vsel %vm593, %v1868, %v1876
        %v1882 = vsel %vm593, %v1870, %v1878
        %v1883 = vsel %vm593, %v1872, %v1864
        %v1884 = vsel %vm593, %v1874, %v1866
        %v1885 = vsel %vm593, %v1876, %v1868
        %v1886 = vsel %vm593, %v1878, %v1870
        %v1887 = vmul.f32 %v1883, %v600
        %v1888 = vmul.f32 %v1879, %v604
        %v1889 = vmul.f32 %v1884, %v600
        %v1890 = vmul.f32 %v1880, %v604
        %v1891 = vmul.f32 %v1885, %v600
        %v1892 = vmul.f32 %v1881, %v604
        %v1893 = vmul.f32 %v1886, %v600
        %v1894 = vmul.f32 %v1882, %v604
        %s1895 = scalar_lea.vmem %s4, 64
        %v1896 = vld [vmem:[%s1895] sm:$0xff]
        %v1897 = vld [vmem:[%s1895 + $0x8] sm:$0xff]
        %v1898 = vld [vmem:[%s1895 + $0x10] sm:$0xff]
        %v1899 = vld [vmem:[%s1895 + $0x18] sm:$0xff]
        %v1901 = vsel %vm1660, %v1896, 0
        %v1904 = vsel %vm1660, %v1897, 0
        %v1907 = vsel %vm1660, %v1898, 0
        %v1910 = vsel %vm1660, %v1899, 0
        %1912 = vmatprep.subr.mxu0 %v1888
        %1913 = vmatpush1.msra.mxu0 %v1887
        %1914 = vmatprep.subr.mxu0 %v1890
        %1915 = vmatpush1.msra.mxu0 %v1889
        %1916 = vmatprep.subr.mxu0 %v1892
        %1917 = vmatpush1.msra.mxu0 %v1891
        %1918 = vmatprep.subr.mxu0 %v1894
        %1919 = vmatpush1.msra.mxu0 %v1893
        %1920 = vmatprep.subr.mxu0 0.0
        %1921 = vmatpush1.msra.mxu0 0.0
        %1922 = vmatprep.subr.mxu0 0.0
        %1923 = vmatpush1.msra.mxu0 0.0
        %1924 = vmatprep.subr.mxu0 0.0
        %1925 = vmatpush1.msra.mxu0 0.0
        %1926 = vmatprep.subr.mxu0 0.0
        %1927 = vmatpush1.msra.mxu0 0.0
        %1928 = vmatprep.subr.mxu0 0.0
        %1929 = vmatpush1.msra.mxu0 0.0
        %1930 = vmatprep.subr.mxu0 0.0
        %1931 = vmatpush1.msra.mxu0 0.0
        %1932 = vmatprep.subr.mxu0 0.0
        %1933 = vmatpush1.msra.mxu0 0.0
        %1934 = vmatprep.subr.mxu0 0.0
        %1935 = vmatpush1.msra.mxu0 0.0
        %1936 = vmatprep.subr.mxu0 0.0
        %1937 = vmatpush1.msra.mxu0 0.0
        %1938 = vmatprep.subr.mxu0 0.0
        %1939 = vmatpush1.msra.mxu0 0.0
        %1940 = vmatprep.subr.mxu0 0.0
        %1941 = vmatpush1.msra.mxu0 0.0
        %1942 = vmatprep.subr.mxu0 0.0
        %1943 = vmatpush1.msra.mxu0 0.0
        %1944 = vmatprep.subr.mxu0 0.0
        %1945 = vmatpush1.msra.mxu0 0.0
        %1946 = vmatprep.subr.mxu0 0.0
        %1947 = vmatpush1.msra.mxu0 0.0
        %1948 = vmatprep.subr.mxu0 0.0
        %1949 = vmatpush1.msra.mxu0 0.0
        %1950 = vmatprep.subr.mxu0 0.0
        %1951 = vmatpush1.msra.mxu0 0.0
        %1952 = vmatprep.subr.mxu0 0.0
        %1953 = vmatpush1.msra.mxu0 0.0
        %1954 = vmatprep.subr.mxu0 0.0
        %1955 = vmatpush1.msra.mxu0 0.0
        %1956 = vmatprep.subr.mxu0 0.0
        %1957 = vmatpush1.msra.mxu0 0.0
        %1958 = vmatprep.subr.mxu0 0.0
        %1959 = vmatpush1.msra.mxu0 0.0
        %1960 = vmatprep.subr.mxu0 0.0
        %1961 = vmatpush1.msra.mxu0 0.0
        %1962 = vmatprep.subr.mxu0 0.0
        %1963 = vmatpush1.msra.mxu0 0.0
        %1964 = vmatprep.subr.mxu0 0.0
        %1965 = vmatpush1.msra.mxu0 0.0
        %1966 = vmatprep.subr.mxu0 0.0
        %1967 = vmatpush1.msra.mxu0 0.0
        %1968 = vmatprep.subr.mxu0 0.0
        %1969 = vmatpush1.msra.mxu0 0.0
        %1970 = vmatprep.subr.mxu0 0.0
        %1971 = vmatpush1.msra.mxu0 0.0
        %1972 = vmatprep.subr.mxu0 0.0
        %1973 = vmatpush1.msra.mxu0 0.0
        %1974 = vmatprep.subr.mxu0 0.0
        %1975 = vmatpush1.msra.mxu0 0.0
        %1976 = vmatprep.mubr.f32.mxu0 0.0
        %1977 = vmatmul.mubr.f32.gmra.mrb[0].mxu0 %v1901
        %v1978 = vpop.f32.mrb[0].mxu0
        %v1979 = vadd.f32 0.0, %v1978
        %v1980 = vpop.f32.mrb[0].mxu0
        %v1981 = vadd.f32 0.0, %v1980
        %1982 = vmatprep.mubr.f32.mxu0 0.0
        %1983 = vmatmul.mubr.f32.gmra.mrb[0].mxu0 %v1904
        %v1984 = vpop.f32.mrb[0].mxu0
        %v1985 = vadd.f32 0.0, %v1984
        %v1986 = vpop.f32.mrb[0].mxu0
        %v1987 = vadd.f32 0.0, %v1986
        %1988 = vmatprep.mubr.f32.mxu0 0.0
        %1989 = vmatmul.mubr.f32.gmra.mrb[0].mxu0 %v1907
        %v1990 = vpop.f32.mrb[0].mxu0
        %v1991 = vadd.f32 0.0, %v1990
        %v1992 = vpop.f32.mrb[0].mxu0
        %v1993 = vadd.f32 0.0, %v1992
        %1994 = vmatprep.mubr.f32.mxu0 0.0
        %1995 = vmatmul.mubr.f32.gmra.mrb[0].mxu0 %v1910
        %v1996 = vpop.f32.mrb[0].mxu0
        %v1997 = vadd.f32 0.0, %v1996
        %v1998 = vpop.f32.mrb[0].mxu0
        %v1999 = vadd.f32 0.0, %v1998
        %2000 = vdwg.mxu0
        %v2001 = vadd.f32 %v1841, %v1979
        %v2002 = vadd.f32 %v1843, %v1981
        %v2003 = vadd.f32 %v1847, %v1985
        %v2004 = vadd.f32 %v1849, %v1987
        %v2005 = vadd.f32 %v1853, %v1991
        %v2006 = vadd.f32 %v1855, %v1993
        %v2007 = vadd.f32 %v1859, %v1997
        %v2008 = vadd.f32 %v1861, %v1999
        %2009 = vrot.lane.b32.xlu0 %v1579, 1
        %v2010 = vpop.permute.xlu0 %2009
        %2011 = vrot.lane.b32.xlu0 %v1581, 1
        %v2012 = vpop.permute.xlu0 %2011
        %2013 = vrot.lane.b32.xlu0 %v1583, 1
        %v2014 = vpop.permute.xlu0 %2013
        %2015 = vrot.lane.b32.xlu0 %v1585, 1
        %v2016 = vpop.permute.xlu0 %2015
        %2017 = vrot.lane.b32.xlu0 %v1580, 1
        %v2018 = vpop.permute.xlu0 %2017
        %2019 = vrot.lane.b32.xlu0 %v1582, 1
        %v2020 = vpop.permute.xlu0 %2019
        %2021 = vrot.lane.b32.xlu0 %v1584, 1
        %v2022 = vpop.permute.xlu0 %2021
        %2023 = vrot.lane.b32.xlu0 %v1586, 1
        %v2024 = vpop.permute.xlu0 %2023
        %v2025 = vsel %vm733, %v2010, %v2018
        %v2026 = vsel %vm733, %v2012, %v2020
        %v2027 = vsel %vm733, %v2014, %v2022
        %v2028 = vsel %vm733, %v2016, %v2024
        %v2029 = vsel %vm733, %v2018, %v2010
        %v2030 = vsel %vm733, %v2020, %v2012
        %v2031 = vsel %vm733, %v2022, %v2014
        %v2032 = vsel %vm733, %v2024, %v2016
        %v2033 = vmul.f32 %v2029, %v740
        %v2034 = vmul.f32 %v2025, %v744
        %v2035 = vmul.f32 %v2030, %v740
        %v2036 = vmul.f32 %v2026, %v744
        %v2037 = vmul.f32 %v2031, %v740
        %v2038 = vmul.f32 %v2027, %v744
        %v2039 = vmul.f32 %v2032, %v740
        %v2040 = vmul.f32 %v2028, %v744
        %s2041 = scalar_lea.vmem %s4, 96
        %v2042 = vld [vmem:[%s2041] sm:$0xff]
        %v2043 = vld [vmem:[%s2041 + $0x8] sm:$0xff]
        %v2044 = vld [vmem:[%s2041 + $0x10] sm:$0xff]
        %v2045 = vld [vmem:[%s2041 + $0x18] sm:$0xff]
        %v2047 = vsel %vm1660, %v2042, 0
        %v2050 = vsel %vm1660, %v2043, 0
        %v2053 = vsel %vm1660, %v2044, 0
        %v2056 = vsel %vm1660, %v2045, 0
        %2058 = vmatprep.subr.mxu0 %v2034
        %2059 = vmatpush1.msra.mxu0 %v2033
        %2060 = vmatprep.subr.mxu0 %v2036
        %2061 = vmatpush1.msra.mxu0 %v2035
        %2062 = vmatprep.subr.mxu0 %v2038
        %2063 = vmatpush1.msra.mxu0 %v2037
        %2064 = vmatprep.subr.mxu0 %v2040
        %2065 = vmatpush1.msra.mxu0 %v2039
        %2066 = vmatprep.subr.mxu0 0.0
        %2067 = vmatpush1.msra.mxu0 0.0
        %2068 = vmatprep.subr.mxu0 0.0
        %2069 = vmatpush1.msra.mxu0 0.0
        %2070 = vmatprep.subr.mxu0 0.0
        %2071 = vmatpush1.msra.mxu0 0.0
        %2072 = vmatprep.subr.mxu0 0.0
        %2073 = vmatpush1.msra.mxu0 0.0
        %2074 = vmatprep.subr.mxu0 0.0
        %2075 = vmatpush1.msra.mxu0 0.0
        %2076 = vmatprep.subr.mxu0 0.0
        %2077 = vmatpush1.msra.mxu0 0.0
        %2078 = vmatprep.subr.mxu0 0.0
        %2079 = vmatpush1.msra.mxu0 0.0
        %2080 = vmatprep.subr.mxu0 0.0
        %2081 = vmatpush1.msra.mxu0 0.0
        %2082 = vmatprep.subr.mxu0 0.0
        %2083 = vmatpush1.msra.mxu0 0.0
        %2084 = vmatprep.subr.mxu0 0.0
        %2085 = vmatpush1.msra.mxu0 0.0
        %2086 = vmatprep.subr.mxu0 0.0
        %2087 = vmatpush1.msra.mxu0 0.0
        %2088 = vmatprep.subr.mxu0 0.0
        %2089 = vmatpush1.msra.mxu0 0.0
        %2090 = vmatprep.subr.mxu0 0.0
        %2091 = vmatpush1.msra.mxu0 0.0
        %2092 = vmatprep.subr.mxu0 0.0
        %2093 = vmatpush1.msra.mxu0 0.0
        %2094 = vmatprep.subr.mxu0 0.0
        %2095 = vmatpush1.msra.mxu0 0.0
        %2096 = vmatprep.subr.mxu0 0.0
        %2097 = vmatpush1.msra.mxu0 0.0
        %2098 = vmatprep.subr.mxu0 0.0
        %2099 = vmatpush1.msra.mxu0 0.0
        %2100 = vmatprep.subr.mxu0 0.0
        %2101 = vmatpush1.msra.mxu0 0.0
        %2102 = vmatprep.subr.mxu0 0.0
        %2103 = vmatpush1.msra.mxu0 0.0
        %2104 = vmatprep.subr.mxu0 0.0
        %2105 = vmatpush1.msra.mxu0 0.0
        %2106 = vmatprep.subr.mxu0 0.0
        %2107 = vmatpush1.msra.mxu0 0.0
        %2108 = vmatprep.subr.mxu0 0.0
        %2109 = vmatpush1.msra.mxu0 0.0
        %2110 = vmatprep.subr.mxu0 0.0
        %2111 = vmatpush1.msra.mxu0 0.0
        %2112 = vmatprep.subr.mxu0 0.0
        %2113 = vmatpush1.msra.mxu0 0.0
        %2114 = vmatprep.subr.mxu0 0.0
        %2115 = vmatpush1.msra.mxu0 0.0
        %2116 = vmatprep.subr.mxu0 0.0
        %2117 = vmatpush1.msra.mxu0 0.0
        %2118 = vmatprep.subr.mxu0 0.0
        %2119 = vmatpush1.msra.mxu0 0.0
        %2120 = vmatprep.subr.mxu0 0.0
        %2121 = vmatpush1.msra.mxu0 0.0
        %2122 = vmatprep.mubr.f32.mxu0 0.0
        %2123 = vmatmul.mubr.f32.gmra.mrb[0].mxu0 %v2047
        %v2124 = vpop.f32.mrb[0].mxu0
        %v2125 = vadd.f32 0.0, %v2124
        %v2126 = vpop.f32.mrb[0].mxu0
        %v2127 = vadd.f32 0.0, %v2126
        %2128 = vmatprep.mubr.f32.mxu0 0.0
        %2129 = vmatmul.mubr.f32.gmra.mrb[0].mxu0 %v2050
        %v2130 = vpop.f32.mrb[0].mxu0
        %v2131 = vadd.f32 0.0, %v2130
        %v2132 = vpop.f32.mrb[0].mxu0
        %v2133 = vadd.f32 0.0, %v2132
        %2134 = vmatprep.mubr.f32.mxu0 0.0
        %2135 = vmatmul.mubr.f32.gmra.mrb[0].mxu0 %v2053
        %v2136 = vpop.f32.mrb[0].mxu0
        %v2137 = vadd.f32 0.0, %v2136
        %v2138 = vpop.f32.mrb[0].mxu0
        %v2139 = vadd.f32 0.0, %v2138
        %2140 = vmatprep.mubr.f32.mxu0 0.0
        %2141 = vmatmul.mubr.f32.gmra.mrb[0].mxu0 %v2056
        %v2142 = vpop.f32.mrb[0].mxu0
        %v2143 = vadd.f32 0.0, %v2142
        %v2144 = vpop.f32.mrb[0].mxu0
        %v2145 = vadd.f32 0.0, %v2144
        %2146 = vdwg.mxu0
        %v2147 = vadd.f32 %v2001, %v2125
        %v2148 = vadd.f32 %v2002, %v2127
        %v2149 = vadd.f32 %v2003, %v2131
        %v2150 = vadd.f32 %v2004, %v2133
        %v2151 = vadd.f32 %v2005, %v2137
        %v2152 = vadd.f32 %v2006, %v2139
        %v2153 = vadd.f32 %v2007, %v2143
        %v2154 = vadd.f32 %v2008, %v2145
        %s2155 = scalar_lea.vmem %s4, 128
        %v2156 = vld [vmem:[%s2155] sm:$0xff]
        %v2157 = vld [vmem:[%s2155 + $0x8] sm:$0xff]
        %v2158 = vld [vmem:[%s2155 + $0x10] sm:$0xff]
        %v2159 = vld [vmem:[%s2155 + $0x18] sm:$0xff]
        %v2161 = vsel %vm1660, %v2156, 0
        %v2164 = vsel %vm1660, %v2157, 0
        %v2167 = vsel %vm1660, %v2158, 0
        %v2170 = vsel %vm1660, %v2159, 0
        %2172 = vmatprep.subr.mxu0 %v1580
        %2173 = vmatpush1.msra.mxu0 %v1579
        %2174 = vmatprep.subr.mxu0 %v1582
        %2175 = vmatpush1.msra.mxu0 %v1581
        %2176 = vmatprep.subr.mxu0 %v1584
        %2177 = vmatpush1.msra.mxu0 %v1583
        %2178 = vmatprep.subr.mxu0 %v1586
        %2179 = vmatpush1.msra.mxu0 %v1585
        %2180 = vmatprep.subr.mxu0 0.0
        %2181 = vmatpush1.msra.mxu0 0.0
        %2182 = vmatprep.subr.mxu0 0.0
        %2183 = vmatpush1.msra.mxu0 0.0
        %2184 = vmatprep.subr.mxu0 0.0
        %2185 = vmatpush1.msra.mxu0 0.0
        %2186 = vmatprep.subr.mxu0 0.0
        %2187 = vmatpush1.msra.mxu0 0.0
        %2188 = vmatprep.subr.mxu0 0.0
        %2189 = vmatpush1.msra.mxu0 0.0
        %2190 = vmatprep.subr.mxu0 0.0
        %2191 = vmatpush1.msra.mxu0 0.0
        %2192 = vmatprep.subr.mxu0 0.0
        %2193 = vmatpush1.msra.mxu0 0.0
        %2194 = vmatprep.subr.mxu0 0.0
        %2195 = vmatpush1.msra.mxu0 0.0
        %2196 = vmatprep.subr.mxu0 0.0
        %2197 = vmatpush1.msra.mxu0 0.0
        %2198 = vmatprep.subr.mxu0 0.0
        %2199 = vmatpush1.msra.mxu0 0.0
        %2200 = vmatprep.subr.mxu0 0.0
        %2201 = vmatpush1.msra.mxu0 0.0
        %2202 = vmatprep.subr.mxu0 0.0
        %2203 = vmatpush1.msra.mxu0 0.0
        %2204 = vmatprep.subr.mxu0 0.0
        %2205 = vmatpush1.msra.mxu0 0.0
        %2206 = vmatprep.subr.mxu0 0.0
        %2207 = vmatpush1.msra.mxu0 0.0
        %2208 = vmatprep.subr.mxu0 0.0
        %2209 = vmatpush1.msra.mxu0 0.0
        %2210 = vmatprep.subr.mxu0 0.0
        %2211 = vmatpush1.msra.mxu0 0.0
        %2212 = vmatprep.subr.mxu0 0.0
        %2213 = vmatpush1.msra.mxu0 0.0
        %2214 = vmatprep.subr.mxu0 0.0
        %2215 = vmatpush1.msra.mxu0 0.0
        %2216 = vmatprep.subr.mxu0 0.0
        %2217 = vmatpush1.msra.mxu0 0.0
        %2218 = vmatprep.subr.mxu0 0.0
        %2219 = vmatpush1.msra.mxu0 0.0
        %2220 = vmatprep.subr.mxu0 0.0
        %2221 = vmatpush1.msra.mxu0 0.0
        %2222 = vmatprep.subr.mxu0 0.0
        %2223 = vmatpush1.msra.mxu0 0.0
        %2224 = vmatprep.subr.mxu0 0.0
        %2225 = vmatpush1.msra.mxu0 0.0
        %2226 = vmatprep.subr.mxu0 0.0
        %2227 = vmatpush1.msra.mxu0 0.0
        %2228 = vmatprep.subr.mxu0 0.0
        %2229 = vmatpush1.msra.mxu0 0.0
        %2230 = vmatprep.subr.mxu0 0.0
        %2231 = vmatpush1.msra.mxu0 0.0
        %2232 = vmatprep.subr.mxu0 0.0
        %2233 = vmatpush1.msra.mxu0 0.0
        %2234 = vmatprep.subr.mxu0 0.0
        %2235 = vmatpush1.msra.mxu0 0.0
        %2236 = vmatprep.mubr.f32.mxu0 0.0
        %2237 = vmatmul.mubr.f32.gmra.mrb[0].mxu0 %v2161
        %v2238 = vpop.f32.mrb[0].mxu0
        %v2239 = vadd.f32 0.0, %v2238
        %v2240 = vpop.f32.mrb[0].mxu0
        %v2241 = vadd.f32 0.0, %v2240
        %2242 = vmatprep.mubr.f32.mxu0 0.0
        %2243 = vmatmul.mubr.f32.gmra.mrb[0].mxu0 %v2164
        %v2244 = vpop.f32.mrb[0].mxu0
        %v2245 = vadd.f32 0.0, %v2244
        %v2246 = vpop.f32.mrb[0].mxu0
        %v2247 = vadd.f32 0.0, %v2246
        %2248 = vmatprep.mubr.f32.mxu0 0.0
        %2249 = vmatmul.mubr.f32.gmra.mrb[0].mxu0 %v2167
        %v2250 = vpop.f32.mrb[0].mxu0
        %v2251 = vadd.f32 0.0, %v2250
        %v2252 = vpop.f32.mrb[0].mxu0
        %v2253 = vadd.f32 0.0, %v2252
        %2254 = vmatprep.mubr.f32.mxu0 0.0
        %2255 = vmatmul.mubr.f32.gmra.mrb[0].mxu0 %v2170
        %v2256 = vpop.f32.mrb[0].mxu0
        %v2257 = vadd.f32 0.0, %v2256
        %v2258 = vpop.f32.mrb[0].mxu0
        %v2259 = vadd.f32 0.0, %v2258
        %2260 = vdwg.mxu0
        %v2261 = vadd.f32 %v2147, %v2239
        %v2262 = vadd.f32 %v2148, %v2241
        %v2263 = vadd.f32 %v2149, %v2245
        %v2264 = vadd.f32 %v2150, %v2247
        %v2265 = vadd.f32 %v2151, %v2251
        %v2266 = vadd.f32 %v2152, %v2253
        %v2267 = vadd.f32 %v2153, %v2257
        %v2268 = vadd.f32 %v2154, %v2259
        %2269 = vrot.lane.b32.xlu0 %v1579, 127
        %v2270 = vpop.permute.xlu0 %2269
        %2271 = vrot.lane.b32.xlu0 %v1581, 127
        %v2272 = vpop.permute.xlu0 %2271
        %2273 = vrot.lane.b32.xlu0 %v1583, 127
        %v2274 = vpop.permute.xlu0 %2273
        %2275 = vrot.lane.b32.xlu0 %v1585, 127
        %v2276 = vpop.permute.xlu0 %2275
        %2277 = vrot.lane.b32.xlu0 %v1580, 127
        %v2278 = vpop.permute.xlu0 %2277
        %2279 = vrot.lane.b32.xlu0 %v1582, 127
        %v2280 = vpop.permute.xlu0 %2279
        %2281 = vrot.lane.b32.xlu0 %v1584, 127
        %v2282 = vpop.permute.xlu0 %2281
        %2283 = vrot.lane.b32.xlu0 %v1586, 127
        %v2284 = vpop.permute.xlu0 %2283
        %v2285 = vsel %vm991, %v2270, %v2278
        %v2286 = vsel %vm991, %v2272, %v2280
        %v2287 = vsel %vm991, %v2274, %v2282
        %v2288 = vsel %vm991, %v2276, %v2284
        %v2289 = vsel %vm991, %v2278, %v2270
        %v2290 = vsel %vm991, %v2280, %v2272
        %v2291 = vsel %vm991, %v2282, %v2274
        %v2292 = vsel %vm991, %v2284, %v2276
        %v2293 = vmul.f32 %v2285, %v998
        %v2294 = vmul.f32 %v2289, %v1002
        %v2295 = vmul.f32 %v2286, %v998
        %v2296 = vmul.f32 %v2290, %v1002
        %v2297 = vmul.f32 %v2287, %v998
        %v2298 = vmul.f32 %v2291, %v1002
        %v2299 = vmul.f32 %v2288, %v998
        %v2300 = vmul.f32 %v2292, %v1002
        %s2301 = scalar_lea.vmem %s4, 160
        %v2302 = vld [vmem:[%s2301] sm:$0xff]
        %v2303 = vld [vmem:[%s2301 + $0x8] sm:$0xff]
        %v2304 = vld [vmem:[%s2301 + $0x10] sm:$0xff]
        %v2305 = vld [vmem:[%s2301 + $0x18] sm:$0xff]
        %v2307 = vsel %vm1660, %v2302, 0
        %v2310 = vsel %vm1660, %v2303, 0
        %v2313 = vsel %vm1660, %v2304, 0
        %v2316 = vsel %vm1660, %v2305, 0
        %2318 = vmatprep.subr.mxu0 %v2294
        %2319 = vmatpush1.msra.mxu0 %v2293
        %2320 = vmatprep.subr.mxu0 %v2296
        %2321 = vmatpush1.msra.mxu0 %v2295
        %2322 = vmatprep.subr.mxu0 %v2298
        %2323 = vmatpush1.msra.mxu0 %v2297
        %2324 = vmatprep.subr.mxu0 %v2300
        %2325 = vmatpush1.msra.mxu0 %v2299
        %2326 = vmatprep.subr.mxu0 0.0
        %2327 = vmatpush1.msra.mxu0 0.0
        %2328 = vmatprep.subr.mxu0 0.0
        %2329 = vmatpush1.msra.mxu0 0.0
        %2330 = vmatprep.subr.mxu0 0.0
        %2331 = vmatpush1.msra.mxu0 0.0
        %2332 = vmatprep.subr.mxu0 0.0
        %2333 = vmatpush1.msra.mxu0 0.0
        %2334 = vmatprep.subr.mxu0 0.0
        %2335 = vmatpush1.msra.mxu0 0.0
        %2336 = vmatprep.subr.mxu0 0.0
        %2337 = vmatpush1.msra.mxu0 0.0
        %2338 = vmatprep.subr.mxu0 0.0
        %2339 = vmatpush1.msra.mxu0 0.0
        %2340 = vmatprep.subr.mxu0 0.0
        %2341 = vmatpush1.msra.mxu0 0.0
        %2342 = vmatprep.subr.mxu0 0.0
        %2343 = vmatpush1.msra.mxu0 0.0
        %2344 = vmatprep.subr.mxu0 0.0
        %2345 = vmatpush1.msra.mxu0 0.0
        %2346 = vmatprep.subr.mxu0 0.0
        %2347 = vmatpush1.msra.mxu0 0.0
        %2348 = vmatprep.subr.mxu0 0.0
        %2349 = vmatpush1.msra.mxu0 0.0
        %2350 = vmatprep.subr.mxu0 0.0
        %2351 = vmatpush1.msra.mxu0 0.0
        %2352 = vmatprep.subr.mxu0 0.0
        %2353 = vmatpush1.msra.mxu0 0.0
        %2354 = vmatprep.subr.mxu0 0.0
        %2355 = vmatpush1.msra.mxu0 0.0
        %2356 = vmatprep.subr.mxu0 0.0
        %2357 = vmatpush1.msra.mxu0 0.0
        %2358 = vmatprep.subr.mxu0 0.0
        %2359 = vmatpush1.msra.mxu0 0.0
        %2360 = vmatprep.subr.mxu0 0.0
        %2361 = vmatpush1.msra.mxu0 0.0
        %2362 = vmatprep.subr.mxu0 0.0
        %2363 = vmatpush1.msra.mxu0 0.0
        %2364 = vmatprep.subr.mxu0 0.0
        %2365 = vmatpush1.msra.mxu0 0.0
        %2366 = vmatprep.subr.mxu0 0.0
        %2367 = vmatpush1.msra.mxu0 0.0
        %2368 = vmatprep.subr.mxu0 0.0
        %2369 = vmatpush1.msra.mxu0 0.0
        %2370 = vmatprep.subr.mxu0 0.0
        %2371 = vmatpush1.msra.mxu0 0.0
        %2372 = vmatprep.subr.mxu0 0.0
        %2373 = vmatpush1.msra.mxu0 0.0
        %2374 = vmatprep.subr.mxu0 0.0
        %2375 = vmatpush1.msra.mxu0 0.0
        %2376 = vmatprep.subr.mxu0 0.0
        %2377 = vmatpush1.msra.mxu0 0.0
        %2378 = vmatprep.subr.mxu0 0.0
        %2379 = vmatpush1.msra.mxu0 0.0
        %2380 = vmatprep.subr.mxu0 0.0
        %2381 = vmatpush1.msra.mxu0 0.0
        %2382 = vmatprep.mubr.f32.mxu0 0.0
        %2383 = vmatmul.mubr.f32.gmra.mrb[0].mxu0 %v2307
        %v2384 = vpop.f32.mrb[0].mxu0
        %v2385 = vadd.f32 0.0, %v2384
        %v2386 = vpop.f32.mrb[0].mxu0
        %v2387 = vadd.f32 0.0, %v2386
        %2388 = vmatprep.mubr.f32.mxu0 0.0
        %2389 = vmatmul.mubr.f32.gmra.mrb[0].mxu0 %v2310
        %v2390 = vpop.f32.mrb[0].mxu0
        %v2391 = vadd.f32 0.0, %v2390
        %v2392 = vpop.f32.mrb[0].mxu0
        %v2393 = vadd.f32 0.0, %v2392
        %2394 = vmatprep.mubr.f32.mxu0 0.0
        %2395 = vmatmul.mubr.f32.gmra.mrb[0].mxu0 %v2313
        %v2396 = vpop.f32.mrb[0].mxu0
        %v2397 = vadd.f32 0.0, %v2396
        %v2398 = vpop.f32.mrb[0].mxu0
        %v2399 = vadd.f32 0.0, %v2398
        %2400 = vmatprep.mubr.f32.mxu0 0.0
        %2401 = vmatmul.mubr.f32.gmra.mrb[0].mxu0 %v2316
        %v2402 = vpop.f32.mrb[0].mxu0
        %v2403 = vadd.f32 0.0, %v2402
        %v2404 = vpop.f32.mrb[0].mxu0
        %v2405 = vadd.f32 0.0, %v2404
        %2406 = vdwg.mxu0
        %v2407 = vadd.f32 %v2261, %v2385
        %v2408 = vadd.f32 %v2262, %v2387
        %v2409 = vadd.f32 %v2263, %v2391
        %v2410 = vadd.f32 %v2264, %v2393
        %v2411 = vadd.f32 %v2265, %v2397
        %v2412 = vadd.f32 %v2266, %v2399
        %v2413 = vadd.f32 %v2267, %v2403
        %v2414 = vadd.f32 %v2268, %v2405
        %2415 = vrot.lane.b32.xlu0 %v1579, 113
        %v2416 = vpop.permute.xlu0 %2415
        %2417 = vrot.lane.b32.xlu0 %v1581, 113
        %v2418 = vpop.permute.xlu0 %2417
        %2419 = vrot.lane.b32.xlu0 %v1583, 113
        %v2420 = vpop.permute.xlu0 %2419
        %2421 = vrot.lane.b32.xlu0 %v1585, 113
        %v2422 = vpop.permute.xlu0 %2421
        %2423 = vrot.lane.b32.xlu0 %v1580, 113
        %v2424 = vpop.permute.xlu0 %2423
        %2425 = vrot.lane.b32.xlu0 %v1582, 113
        %v2426 = vpop.permute.xlu0 %2425
        %2427 = vrot.lane.b32.xlu0 %v1584, 113
        %v2428 = vpop.permute.xlu0 %2427
        %2429 = vrot.lane.b32.xlu0 %v1586, 113
        %v2430 = vpop.permute.xlu0 %2429
        %v2431 = vsel %vm1131, %v2416, %v2424
        %v2432 = vsel %vm1131, %v2418, %v2426
        %v2433 = vsel %vm1131, %v2420, %v2428
        %v2434 = vsel %vm1131, %v2422, %v2430
        %v2435 = vsel %vm1131, %v2424, %v2416
        %v2436 = vsel %vm1131, %v2426, %v2418
        %v2437 = vsel %vm1131, %v2428, %v2420
        %v2438 = vsel %vm1131, %v2430, %v2422
        %v2439 = vmul.f32 %v2431, %v1138
        %v2440 = vmul.f32 %v2435, %v1142
        %v2441 = vmul.f32 %v2432, %v1138
        %v2442 = vmul.f32 %v2436, %v1142
        %v2443 = vmul.f32 %v2433, %v1138
        %v2444 = vmul.f32 %v2437, %v1142
        %v2445 = vmul.f32 %v2434, %v1138
        %v2446 = vmul.f32 %v2438, %v1142
        %s2447 = scalar_lea.vmem %s4, 192
        %v2448 = vld [vmem:[%s2447] sm:$0xff]
        %v2449 = vld [vmem:[%s2447 + $0x8] sm:$0xff]
        %v2450 = vld [vmem:[%s2447 + $0x10] sm:$0xff]
        %v2451 = vld [vmem:[%s2447 + $0x18] sm:$0xff]
        %v2453 = vsel %vm1660, %v2448, 0
        %v2456 = vsel %vm1660, %v2449, 0
        %v2459 = vsel %vm1660, %v2450, 0
        %v2462 = vsel %vm1660, %v2451, 0
        %2464 = vmatprep.subr.mxu0 %v2440
        %2465 = vmatpush1.msra.mxu0 %v2439
        %2466 = vmatprep.subr.mxu0 %v2442
        %2467 = vmatpush1.msra.mxu0 %v2441
        %2468 = vmatprep.subr.mxu0 %v2444
        %2469 = vmatpush1.msra.mxu0 %v2443
        %2470 = vmatprep.subr.mxu0 %v2446
        %2471 = vmatpush1.msra.mxu0 %v2445
        %2472 = vmatprep.subr.mxu0 0.0
        %2473 = vmatpush1.msra.mxu0 0.0
        %2474 = vmatprep.subr.mxu0 0.0
        %2475 = vmatpush1.msra.mxu0 0.0
        %2476 = vmatprep.subr.mxu0 0.0
        %2477 = vmatpush1.msra.mxu0 0.0
        %2478 = vmatprep.subr.mxu0 0.0
        %2479 = vmatpush1.msra.mxu0 0.0
        %2480 = vmatprep.subr.mxu0 0.0
        %2481 = vmatpush1.msra.mxu0 0.0
        %2482 = vmatprep.subr.mxu0 0.0
        %2483 = vmatpush1.msra.mxu0 0.0
        %2484 = vmatprep.subr.mxu0 0.0
        %2485 = vmatpush1.msra.mxu0 0.0
        %2486 = vmatprep.subr.mxu0 0.0
        %2487 = vmatpush1.msra.mxu0 0.0
        %2488 = vmatprep.subr.mxu0 0.0
        %2489 = vmatpush1.msra.mxu0 0.0
        %2490 = vmatprep.subr.mxu0 0.0
        %2491 = vmatpush1.msra.mxu0 0.0
        %2492 = vmatprep.subr.mxu0 0.0
        %2493 = vmatpush1.msra.mxu0 0.0
        %2494 = vmatprep.subr.mxu0 0.0
        %2495 = vmatpush1.msra.mxu0 0.0
        %2496 = vmatprep.subr.mxu0 0.0
        %2497 = vmatpush1.msra.mxu0 0.0
        %2498 = vmatprep.subr.mxu0 0.0
        %2499 = vmatpush1.msra.mxu0 0.0
        %2500 = vmatprep.subr.mxu0 0.0
        %2501 = vmatpush1.msra.mxu0 0.0
        %2502 = vmatprep.subr.mxu0 0.0
        %2503 = vmatpush1.msra.mxu0 0.0
        %2504 = vmatprep.subr.mxu0 0.0
        %2505 = vmatpush1.msra.mxu0 0.0
        %2506 = vmatprep.subr.mxu0 0.0
        %2507 = vmatpush1.msra.mxu0 0.0
        %2508 = vmatprep.subr.mxu0 0.0
        %2509 = vmatpush1.msra.mxu0 0.0
        %2510 = vmatprep.subr.mxu0 0.0
        %2511 = vmatpush1.msra.mxu0 0.0
        %2512 = vmatprep.subr.mxu0 0.0
        %2513 = vmatpush1.msra.mxu0 0.0
        %2514 = vmatprep.subr.mxu0 0.0
        %2515 = vmatpush1.msra.mxu0 0.0
        %2516 = vmatprep.subr.mxu0 0.0
        %2517 = vmatpush1.msra.mxu0 0.0
        %2518 = vmatprep.subr.mxu0 0.0
        %2519 = vmatpush1.msra.mxu0 0.0
        %2520 = vmatprep.subr.mxu0 0.0
        %2521 = vmatpush1.msra.mxu0 0.0
        %2522 = vmatprep.subr.mxu0 0.0
        %2523 = vmatpush1.msra.mxu0 0.0
        %2524 = vmatprep.subr.mxu0 0.0
        %2525 = vmatpush1.msra.mxu0 0.0
        %2526 = vmatprep.subr.mxu0 0.0
        %2527 = vmatpush1.msra.mxu0 0.0
        %2528 = vmatprep.mubr.f32.mxu0 0.0
        %2529 = vmatmul.mubr.f32.gmra.mrb[0].mxu0 %v2453
        %v2530 = vpop.f32.mrb[0].mxu0
        %v2531 = vadd.f32 0.0, %v2530
        %v2532 = vpop.f32.mrb[0].mxu0
        %v2533 = vadd.f32 0.0, %v2532
        %2534 = vmatprep.mubr.f32.mxu0 0.0
        %2535 = vmatmul.mubr.f32.gmra.mrb[0].mxu0 %v2456
        %v2536 = vpop.f32.mrb[0].mxu0
        %v2537 = vadd.f32 0.0, %v2536
        %v2538 = vpop.f32.mrb[0].mxu0
        %v2539 = vadd.f32 0.0, %v2538
        %2540 = vmatprep.mubr.f32.mxu0 0.0
        %2541 = vmatmul.mubr.f32.gmra.mrb[0].mxu0 %v2459
        %v2542 = vpop.f32.mrb[0].mxu0
        %v2543 = vadd.f32 0.0, %v2542
        %v2544 = vpop.f32.mrb[0].mxu0
        %v2545 = vadd.f32 0.0, %v2544
        %2546 = vmatprep.mubr.f32.mxu0 0.0
        %2547 = vmatmul.mubr.f32.gmra.mrb[0].mxu0 %v2462
        %v2548 = vpop.f32.mrb[0].mxu0
        %v2549 = vadd.f32 0.0, %v2548
        %v2550 = vpop.f32.mrb[0].mxu0
        %v2551 = vadd.f32 0.0, %v2550
        %2552 = vdwg.mxu0
        %v2553 = vadd.f32 %v2407, %v2531
        %v2554 = vadd.f32 %v2408, %v2533
        %v2555 = vadd.f32 %v2409, %v2537
        %v2556 = vadd.f32 %v2410, %v2539
        %v2557 = vadd.f32 %v2411, %v2543
        %v2558 = vadd.f32 %v2412, %v2545
        %v2559 = vadd.f32 %v2413, %v2549
        %v2560 = vadd.f32 %v2414, %v2551
        %2561 = vrot.lane.b32.xlu0 %v1579, 112
        %v2562 = vpop.permute.xlu0 %2561
        %2563 = vrot.lane.b32.xlu0 %v1581, 112
        %v2564 = vpop.permute.xlu0 %2563
        %2565 = vrot.lane.b32.xlu0 %v1583, 112
        %v2566 = vpop.permute.xlu0 %2565
        %2567 = vrot.lane.b32.xlu0 %v1585, 112
        %v2568 = vpop.permute.xlu0 %2567
        %2569 = vrot.lane.b32.xlu0 %v1580, 112
        %v2570 = vpop.permute.xlu0 %2569
        %2571 = vrot.lane.b32.xlu0 %v1582, 112
        %v2572 = vpop.permute.xlu0 %2571
        %2573 = vrot.lane.b32.xlu0 %v1584, 112
        %v2574 = vpop.permute.xlu0 %2573
        %2575 = vrot.lane.b32.xlu0 %v1586, 112
        %v2576 = vpop.permute.xlu0 %2575
        %v2577 = vsel %vm1271, %v2562, %v2570
        %v2578 = vsel %vm1271, %v2564, %v2572
        %v2579 = vsel %vm1271, %v2566, %v2574
        %v2580 = vsel %vm1271, %v2568, %v2576
        %v2581 = vsel %vm1271, %v2570, %v2562
        %v2582 = vsel %vm1271, %v2572, %v2564
        %v2583 = vsel %vm1271, %v2574, %v2566
        %v2584 = vsel %vm1271, %v2576, %v2568
        %v2585 = vmul.f32 %v2577, %v1278
        %v2586 = vmul.f32 %v2581, %v1282
        %v2587 = vmul.f32 %v2578, %v1278
        %v2588 = vmul.f32 %v2582, %v1282
        %v2589 = vmul.f32 %v2579, %v1278
        %v2590 = vmul.f32 %v2583, %v1282
        %v2591 = vmul.f32 %v2580, %v1278
        %v2592 = vmul.f32 %v2584, %v1282
        %s2593 = scalar_lea.vmem %s4, 224
        %v2594 = vld [vmem:[%s2593] sm:$0xff]
        %v2595 = vld [vmem:[%s2593 + $0x8] sm:$0xff]
        %v2596 = vld [vmem:[%s2593 + $0x10] sm:$0xff]
        %v2597 = vld [vmem:[%s2593 + $0x18] sm:$0xff]
        %v2599 = vsel %vm1660, %v2594, 0
        %v2602 = vsel %vm1660, %v2595, 0
        %v2605 = vsel %vm1660, %v2596, 0
        %v2608 = vsel %vm1660, %v2597, 0
        %2610 = vmatprep.subr.mxu0 %v2586
        %2611 = vmatpush1.msra.mxu0 %v2585
        %2612 = vmatprep.subr.mxu0 %v2588
        %2613 = vmatpush1.msra.mxu0 %v2587
        %2614 = vmatprep.subr.mxu0 %v2590
        %2615 = vmatpush1.msra.mxu0 %v2589
        %2616 = vmatprep.subr.mxu0 %v2592
        %2617 = vmatpush1.msra.mxu0 %v2591
        %2618 = vmatprep.subr.mxu0 0.0
        %2619 = vmatpush1.msra.mxu0 0.0
        %2620 = vmatprep.subr.mxu0 0.0
        %2621 = vmatpush1.msra.mxu0 0.0
        %2622 = vmatprep.subr.mxu0 0.0
        %2623 = vmatpush1.msra.mxu0 0.0
        %2624 = vmatprep.subr.mxu0 0.0
        %2625 = vmatpush1.msra.mxu0 0.0
        %2626 = vmatprep.subr.mxu0 0.0
        %2627 = vmatpush1.msra.mxu0 0.0
        %2628 = vmatprep.subr.mxu0 0.0
        %2629 = vmatpush1.msra.mxu0 0.0
        %2630 = vmatprep.subr.mxu0 0.0
        %2631 = vmatpush1.msra.mxu0 0.0
        %2632 = vmatprep.subr.mxu0 0.0
        %2633 = vmatpush1.msra.mxu0 0.0
        %2634 = vmatprep.subr.mxu0 0.0
        %2635 = vmatpush1.msra.mxu0 0.0
        %2636 = vmatprep.subr.mxu0 0.0
        %2637 = vmatpush1.msra.mxu0 0.0
        %2638 = vmatprep.subr.mxu0 0.0
        %2639 = vmatpush1.msra.mxu0 0.0
        %2640 = vmatprep.subr.mxu0 0.0
        %2641 = vmatpush1.msra.mxu0 0.0
        %2642 = vmatprep.subr.mxu0 0.0
        %2643 = vmatpush1.msra.mxu0 0.0
        %2644 = vmatprep.subr.mxu0 0.0
        %2645 = vmatpush1.msra.mxu0 0.0
        %2646 = vmatprep.subr.mxu0 0.0
        %2647 = vmatpush1.msra.mxu0 0.0
        %2648 = vmatprep.subr.mxu0 0.0
        %2649 = vmatpush1.msra.mxu0 0.0
        %2650 = vmatprep.subr.mxu0 0.0
        %2651 = vmatpush1.msra.mxu0 0.0
        %2652 = vmatprep.subr.mxu0 0.0
        %2653 = vmatpush1.msra.mxu0 0.0
        %2654 = vmatprep.subr.mxu0 0.0
        %2655 = vmatpush1.msra.mxu0 0.0
        %2656 = vmatprep.subr.mxu0 0.0
        %2657 = vmatpush1.msra.mxu0 0.0
        %2658 = vmatprep.subr.mxu0 0.0
        %2659 = vmatpush1.msra.mxu0 0.0
        %2660 = vmatprep.subr.mxu0 0.0
        %2661 = vmatpush1.msra.mxu0 0.0
        %2662 = vmatprep.subr.mxu0 0.0
        %2663 = vmatpush1.msra.mxu0 0.0
        %2664 = vmatprep.subr.mxu0 0.0
        %2665 = vmatpush1.msra.mxu0 0.0
        %2666 = vmatprep.subr.mxu0 0.0
        %2667 = vmatpush1.msra.mxu0 0.0
        %2668 = vmatprep.subr.mxu0 0.0
        %2669 = vmatpush1.msra.mxu0 0.0
        %2670 = vmatprep.subr.mxu0 0.0
        %2671 = vmatpush1.msra.mxu0 0.0
        %2672 = vmatprep.subr.mxu0 0.0
        %2673 = vmatpush1.msra.mxu0 0.0
        %2674 = vmatprep.mubr.f32.mxu0 0.0
        %2675 = vmatmul.mubr.f32.gmra.mrb[0].mxu0 %v2599
        %v2676 = vpop.f32.mrb[0].mxu0
        %v2677 = vadd.f32 0.0, %v2676
        %v2678 = vpop.f32.mrb[0].mxu0
        %v2679 = vadd.f32 0.0, %v2678
        %2680 = vmatprep.mubr.f32.mxu0 0.0
        %2681 = vmatmul.mubr.f32.gmra.mrb[0].mxu0 %v2602
        %v2682 = vpop.f32.mrb[0].mxu0
        %v2683 = vadd.f32 0.0, %v2682
        %v2684 = vpop.f32.mrb[0].mxu0
        %v2685 = vadd.f32 0.0, %v2684
        %2686 = vmatprep.mubr.f32.mxu0 0.0
        %2687 = vmatmul.mubr.f32.gmra.mrb[0].mxu0 %v2605
        %v2688 = vpop.f32.mrb[0].mxu0
        %v2689 = vadd.f32 0.0, %v2688
        %v2690 = vpop.f32.mrb[0].mxu0
        %v2691 = vadd.f32 0.0, %v2690
        %2692 = vmatprep.mubr.f32.mxu0 0.0
        %2693 = vmatmul.mubr.f32.gmra.mrb[0].mxu0 %v2608
        %v2694 = vpop.f32.mrb[0].mxu0
        %v2695 = vadd.f32 0.0, %v2694
        %v2696 = vpop.f32.mrb[0].mxu0
        %v2697 = vadd.f32 0.0, %v2696
        %2698 = vdwg.mxu0
        %v2699 = vadd.f32 %v2553, %v2677
        %v2700 = vadd.f32 %v2554, %v2679
        %v2701 = vadd.f32 %v2555, %v2683
        %v2702 = vadd.f32 %v2556, %v2685
        %v2703 = vadd.f32 %v2557, %v2689
        %v2704 = vadd.f32 %v2558, %v2691
        %v2705 = vadd.f32 %v2559, %v2695
        %v2706 = vadd.f32 %v2560, %v2697
        %2707 = vrot.lane.b32.xlu0 %v1579, 111
        %v2708 = vpop.permute.xlu0 %2707
        %2709 = vrot.lane.b32.xlu0 %v1581, 111
        %v2710 = vpop.permute.xlu0 %2709
        %2711 = vrot.lane.b32.xlu0 %v1583, 111
        %v2712 = vpop.permute.xlu0 %2711
        %2713 = vrot.lane.b32.xlu0 %v1585, 111
        %v2714 = vpop.permute.xlu0 %2713
        %2715 = vrot.lane.b32.xlu0 %v1580, 111
        %v2716 = vpop.permute.xlu0 %2715
        %2717 = vrot.lane.b32.xlu0 %v1582, 111
        %v2718 = vpop.permute.xlu0 %2717
        %2719 = vrot.lane.b32.xlu0 %v1584, 111
        %v2720 = vpop.permute.xlu0 %2719
        %2721 = vrot.lane.b32.xlu0 %v1586, 111
        %v2722 = vpop.permute.xlu0 %2721
        %v2723 = vsel %vm1411, %v2708, %v2716
        %v2724 = vsel %vm1411, %v2710, %v2718
        %v2725 = vsel %vm1411, %v2712, %v2720
        %v2726 = vsel %vm1411, %v2714, %v2722
        %v2727 = vsel %vm1411, %v2716, %v2708
        %v2728 = vsel %vm1411, %v2718, %v2710
        %v2729 = vsel %vm1411, %v2720, %v2712
        %v2730 = vsel %vm1411, %v2722, %v2714
        %v2731 = vmul.f32 %v2723, %v1418
        %v2732 = vmul.f32 %v2727, %v1422
        %v2733 = vmul.f32 %v2724, %v1418
        %v2734 = vmul.f32 %v2728, %v1422
        %v2735 = vmul.f32 %v2725, %v1418
        %v2736 = vmul.f32 %v2729, %v1422
        %v2737 = vmul.f32 %v2726, %v1418
        %v2738 = vmul.f32 %v2730, %v1422
        %s2739 = scalar_lea.vmem %s4, 256
        %v2740 = vld [vmem:[%s2739] sm:$0xff]
        %v2741 = vld [vmem:[%s2739 + $0x8] sm:$0xff]
        %v2742 = vld [vmem:[%s2739 + $0x10] sm:$0xff]
        %v2743 = vld [vmem:[%s2739 + $0x18] sm:$0xff]
        %v2745 = vsel %vm1660, %v2740, 0
        %v2748 = vsel %vm1660, %v2741, 0
        %v2751 = vsel %vm1660, %v2742, 0
        %v2754 = vsel %vm1660, %v2743, 0
        %2756 = vmatprep.subr.mxu0 %v2732
        %2757 = vmatpush1.msra.mxu0 %v2731
        %2758 = vmatprep.subr.mxu0 %v2734
        %2759 = vmatpush1.msra.mxu0 %v2733
        %2760 = vmatprep.subr.mxu0 %v2736
        %2761 = vmatpush1.msra.mxu0 %v2735
        %2762 = vmatprep.subr.mxu0 %v2738
        %2763 = vmatpush1.msra.mxu0 %v2737
        %2764 = vmatprep.subr.mxu0 0.0
        %2765 = vmatpush1.msra.mxu0 0.0
        %2766 = vmatprep.subr.mxu0 0.0
        %2767 = vmatpush1.msra.mxu0 0.0
        %2768 = vmatprep.subr.mxu0 0.0
        %2769 = vmatpush1.msra.mxu0 0.0
        %2770 = vmatprep.subr.mxu0 0.0
        %2771 = vmatpush1.msra.mxu0 0.0
        %2772 = vmatprep.subr.mxu0 0.0
        %2773 = vmatpush1.msra.mxu0 0.0
        %2774 = vmatprep.subr.mxu0 0.0
        %2775 = vmatpush1.msra.mxu0 0.0
        %2776 = vmatprep.subr.mxu0 0.0
        %2777 = vmatpush1.msra.mxu0 0.0
        %2778 = vmatprep.subr.mxu0 0.0
        %2779 = vmatpush1.msra.mxu0 0.0
        %2780 = vmatprep.subr.mxu0 0.0
        %2781 = vmatpush1.msra.mxu0 0.0
        %2782 = vmatprep.subr.mxu0 0.0
        %2783 = vmatpush1.msra.mxu0 0.0
        %2784 = vmatprep.subr.mxu0 0.0
        %2785 = vmatpush1.msra.mxu0 0.0
        %2786 = vmatprep.subr.mxu0 0.0
        %2787 = vmatpush1.msra.mxu0 0.0
        %2788 = vmatprep.subr.mxu0 0.0
        %2789 = vmatpush1.msra.mxu0 0.0
        %2790 = vmatprep.subr.mxu0 0.0
        %2791 = vmatpush1.msra.mxu0 0.0
        %2792 = vmatprep.subr.mxu0 0.0
        %2793 = vmatpush1.msra.mxu0 0.0
        %2794 = vmatprep.subr.mxu0 0.0
        %2795 = vmatpush1.msra.mxu0 0.0
        %2796 = vmatprep.subr.mxu0 0.0
        %2797 = vmatpush1.msra.mxu0 0.0
        %2798 = vmatprep.subr.mxu0 0.0
        %2799 = vmatpush1.msra.mxu0 0.0
        %2800 = vmatprep.subr.mxu0 0.0
        %2801 = vmatpush1.msra.mxu0 0.0
        %2802 = vmatprep.subr.mxu0 0.0
        %2803 = vmatpush1.msra.mxu0 0.0
        %2804 = vmatprep.subr.mxu0 0.0
        %2805 = vmatpush1.msra.mxu0 0.0
        %2806 = vmatprep.subr.mxu0 0.0
        %2807 = vmatpush1.msra.mxu0 0.0
        %2808 = vmatprep.subr.mxu0 0.0
        %2809 = vmatpush1.msra.mxu0 0.0
        %2810 = vmatprep.subr.mxu0 0.0
        %2811 = vmatpush1.msra.mxu0 0.0
        %2812 = vmatprep.subr.mxu0 0.0
        %2813 = vmatpush1.msra.mxu0 0.0
        %2814 = vmatprep.subr.mxu0 0.0
        %2815 = vmatpush1.msra.mxu0 0.0
        %2816 = vmatprep.subr.mxu0 0.0
        %2817 = vmatpush1.msra.mxu0 0.0
        %2818 = vmatprep.subr.mxu0 0.0
        %2819 = vmatpush1.msra.mxu0 0.0
        %2820 = vmatprep.mubr.f32.mxu0 0.0
        %2821 = vmatmul.mubr.f32.gmra.mrb[0].mxu0 %v2745
        %v2822 = vpop.f32.mrb[0].mxu0
        %v2823 = vadd.f32 0.0, %v2822
        %v2824 = vpop.f32.mrb[0].mxu0
        %v2825 = vadd.f32 0.0, %v2824
        %2826 = vmatprep.mubr.f32.mxu0 0.0
        %2827 = vmatmul.mubr.f32.gmra.mrb[0].mxu0 %v2748
        %v2828 = vpop.f32.mrb[0].mxu0
        %v2829 = vadd.f32 0.0, %v2828
        %v2830 = vpop.f32.mrb[0].mxu0
        %v2831 = vadd.f32 0.0, %v2830
        %2832 = vmatprep.mubr.f32.mxu0 0.0
        %2833 = vmatmul.mubr.f32.gmra.mrb[0].mxu0 %v2751
        %v2834 = vpop.f32.mrb[0].mxu0
        %v2835 = vadd.f32 0.0, %v2834
        %v2836 = vpop.f32.mrb[0].mxu0
        %v2837 = vadd.f32 0.0, %v2836
        %2838 = vmatprep.mubr.f32.mxu0 0.0
        %2839 = vmatmul.mubr.f32.gmra.mrb[0].mxu0 %v2754
        %v2840 = vpop.f32.mrb[0].mxu0
        %v2841 = vadd.f32 0.0, %v2840
        %v2842 = vpop.f32.mrb[0].mxu0
        %v2843 = vadd.f32 0.0, %v2842
        %2844 = vdwg.mxu0
        %v2845 = vadd.f32 %v2699, %v2823
        %v2846 = vadd.f32 %v2700, %v2825
        %v2847 = vadd.f32 %v2701, %v2829
        %v2848 = vadd.f32 %v2702, %v2831
        %v2849 = vadd.f32 %v2703, %v2835
        %v2850 = vadd.f32 %v2704, %v2837
        %v2851 = vadd.f32 %v2705, %v2841
        %v2852 = vadd.f32 %v2706, %v2843
        %v2853 = vld [vmem:[%s5] sm:$0xff]
        %v2854 = vld [vmem:[%s5 + $0x8] sm:$0xff]
        %v2855 = vld [vmem:[%s5 + $0x10] sm:$0xff]
        %v2856 = vld [vmem:[%s5 + $0x18] sm:$0xff]
        %2858 = vset.pattern.permute.xlu0 0
        %2859 = vperm.xlu0 %2858, %v2853
        %v2860 = vpop.permute.xlu0 %2859
        %2863 = vset.pattern.permute.xlu0 0
        %2864 = vperm.xlu0 %2863, %v2854
        %v2865 = vpop.permute.xlu0 %2864
        %2868 = vset.pattern.permute.xlu0 0
        %2869 = vperm.xlu0 %2868, %v2855
        %v2870 = vpop.permute.xlu0 %2869
        %2873 = vset.pattern.permute.xlu0 0
        %2874 = vperm.xlu0 %2873, %v2856
        %v2875 = vpop.permute.xlu0 %2874
        %v2877 = vadd.f32 %v2845, %v2860
        %v2878 = vadd.f32 %v2846, %v2860
        %v2879 = vadd.f32 %v2847, %v2865
        %v2880 = vadd.f32 %v2848, %v2865
        %v2881 = vadd.f32 %v2849, %v2870
        %v2882 = vadd.f32 %v2850, %v2870
        %v2883 = vadd.f32 %v2851, %v2875
        %v2884 = vadd.f32 %v2852, %v2875
        %v2885 = vmax.f32 %v2877, 0.0
        %v2886 = vmax.f32 %v2878, 0.0
        %v2887 = vmax.f32 %v2879, 0.0
        %v2888 = vmax.f32 %v2880, 0.0
        %v2889 = vmax.f32 %v2881, 0.0
        %v2890 = vmax.f32 %v2882, 0.0
        %v2891 = vmax.f32 %v2883, 0.0
        %v2892 = vmax.f32 %v2884, 0.0
        %v2893 = vld [vmem:[%s6] sm:$0xff]
        %v2894 = vld [vmem:[%s6 + $0x8] sm:$0xff]
        %v2895 = vld [vmem:[%s6 + $0x10] sm:$0xff]
        %v2896 = vld [vmem:[%s7] sm:$0xff]
        %v2897 = vld [vmem:[%s7 + $0x8] sm:$0xff]
        %v2898 = vld [vmem:[%s7 + $0x10] sm:$0xff]
        %2900 = vset.pattern.permute.xlu0 0
        %2901 = vperm.xlu0 %2900, %v2896
        %v2902 = vpop.permute.xlu0 %2901
        %2905 = vset.pattern.permute.xlu0 0
        %2906 = vperm.xlu0 %2905, %v2897
        %v2907 = vpop.permute.xlu0 %2906
        %2910 = vset.pattern.permute.xlu0 0
        %2911 = vperm.xlu0 %2910, %v2898
        %v2912 = vpop.permute.xlu0 %2911
        %v2915 = vsel %vm1660, %v2893, 0
        %v2918 = vsel %vm1660, %v2894, 0
        %v2921 = vsel %vm1660, %v2895, 0
        %2923 = vmatprep.subr.mxu0 %v2886
        %2924 = vmatpush1.msra.mxu0 %v2885
        %2925 = vmatprep.subr.mxu0 %v2888
        %2926 = vmatpush1.msra.mxu0 %v2887
        %2927 = vmatprep.subr.mxu0 %v2890
        %2928 = vmatpush1.msra.mxu0 %v2889
        %2929 = vmatprep.subr.mxu0 %v2892
        %2930 = vmatpush1.msra.mxu0 %v2891
        %2931 = vmatprep.subr.mxu0 0.0
        %2932 = vmatpush1.msra.mxu0 0.0
        %2933 = vmatprep.subr.mxu0 0.0
        %2934 = vmatpush1.msra.mxu0 0.0
        %2935 = vmatprep.subr.mxu0 0.0
        %2936 = vmatpush1.msra.mxu0 0.0
        %2937 = vmatprep.subr.mxu0 0.0
        %2938 = vmatpush1.msra.mxu0 0.0
        %2939 = vmatprep.subr.mxu0 0.0
        %2940 = vmatpush1.msra.mxu0 0.0
        %2941 = vmatprep.subr.mxu0 0.0
        %2942 = vmatpush1.msra.mxu0 0.0
        %2943 = vmatprep.subr.mxu0 0.0
        %2944 = vmatpush1.msra.mxu0 0.0
        %2945 = vmatprep.subr.mxu0 0.0
        %2946 = vmatpush1.msra.mxu0 0.0
        %2947 = vmatprep.subr.mxu0 0.0
        %2948 = vmatpush1.msra.mxu0 0.0
        %2949 = vmatprep.subr.mxu0 0.0
        %2950 = vmatpush1.msra.mxu0 0.0
        %2951 = vmatprep.subr.mxu0 0.0
        %2952 = vmatpush1.msra.mxu0 0.0
        %2953 = vmatprep.subr.mxu0 0.0
        %2954 = vmatpush1.msra.mxu0 0.0
        %2955 = vmatprep.subr.mxu0 0.0
        %2956 = vmatpush1.msra.mxu0 0.0
        %2957 = vmatprep.subr.mxu0 0.0
        %2958 = vmatpush1.msra.mxu0 0.0
        %2959 = vmatprep.subr.mxu0 0.0
        %2960 = vmatpush1.msra.mxu0 0.0
        %2961 = vmatprep.subr.mxu0 0.0
        %2962 = vmatpush1.msra.mxu0 0.0
        %2963 = vmatprep.subr.mxu0 0.0
        %2964 = vmatpush1.msra.mxu0 0.0
        %2965 = vmatprep.subr.mxu0 0.0
        %2966 = vmatpush1.msra.mxu0 0.0
        %2967 = vmatprep.subr.mxu0 0.0
        %2968 = vmatpush1.msra.mxu0 0.0
        %2969 = vmatprep.subr.mxu0 0.0
        %2970 = vmatpush1.msra.mxu0 0.0
        %2971 = vmatprep.subr.mxu0 0.0
        %2972 = vmatpush1.msra.mxu0 0.0
        %2973 = vmatprep.subr.mxu0 0.0
        %2974 = vmatpush1.msra.mxu0 0.0
        %2975 = vmatprep.subr.mxu0 0.0
        %2976 = vmatpush1.msra.mxu0 0.0
        %2977 = vmatprep.subr.mxu0 0.0
        %2978 = vmatpush1.msra.mxu0 0.0
        %2979 = vmatprep.subr.mxu0 0.0
        %2980 = vmatpush1.msra.mxu0 0.0
        %2981 = vmatprep.subr.mxu0 0.0
        %2982 = vmatpush1.msra.mxu0 0.0
        %2983 = vmatprep.subr.mxu0 0.0
        %2984 = vmatpush1.msra.mxu0 0.0
        %2985 = vmatprep.subr.mxu0 0.0
        %2986 = vmatpush1.msra.mxu0 0.0
        %2987 = vmatprep.mubr.f32.mxu0 0.0
        %2988 = vmatmul.mubr.f32.gmra.mrb[0].mxu0 %v2915
        %v2989 = vpop.f32.mrb[0].mxu0
        %v2990 = vadd.f32 %v2902, %v2989
        %v2991 = vpop.f32.mrb[0].mxu0
        %v2992 = vadd.f32 %v2902, %v2991
        %2993 = vmatprep.mubr.f32.mxu0 0.0
        %2994 = vmatmul.mubr.f32.gmra.mrb[0].mxu0 %v2918
        %v2995 = vpop.f32.mrb[0].mxu0
        %v2996 = vadd.f32 %v2907, %v2995
        %v2997 = vpop.f32.mrb[0].mxu0
        %v2998 = vadd.f32 %v2907, %v2997
        %2999 = vmatprep.mubr.f32.mxu0 0.0
        %3000 = vmatmul.mubr.f32.gmra.mrb[0].mxu0 %v2921
        %v3001 = vpop.f32.mrb[0].mxu0
        %v3002 = vadd.f32 %v2912, %v3001
        %v3003 = vpop.f32.mrb[0].mxu0
        %v3004 = vadd.f32 %v2912, %v3003
        %3005 = vdwg.mxu0
        %3006 = vst [vmem:[%s295] sm:$0xff] %v2990
        %3007 = vst [vmem:[%s295 + $0x8] sm:$0xff] %v2992
        %3008 = vst [vmem:[%s295 + $0x10] sm:$0xff] %v2996
        %3009 = vst [vmem:[%s295 + $0x18] sm:$0xff] %v2998
        %3010 = vst [vmem:[%s295 + $0x20] sm:$0xff] %v3002
        %3011 = vst [vmem:[%s295 + $0x28] sm:$0xff] %v3004
        %s3012 = sand.u32 %s200, 1
        %s3013 = sand.u32 %s200, 1
        %s3014 = smul.addr %s3013, 48
        %s3015 = scalar_lea.vmem [#allocation2], %s3014
        // Predicated region
        $region53: #{roi_keypoint_head_forward.1} parent=51 // pred_check
          %p3016 = pneg %p210
        $region54: #{roi_keypoint_head_forward.1} parent=51 // pred_check_branch
          %3018 = sbr.rel (%p3016) target = $region56
        $region55: #{roi_keypoint_head_forward.1} parent=51 // pred_region
          %s3019 = smul.u32 2, %s19
          %s3020 = smul.addr %s3019, 8
          %s3021 = scalar_lea.vmem %s8, %s3020
          // Predicated region
          $region57: #{roi_keypoint_head_forward.1} parent=55 // pred_check
            _
          $region58: #{roi_keypoint_head_forward.1} parent=55 // pred_check_branch
            %3023 = sbr.rel (0) target = $region60
          $region59: #{roi_keypoint_head_forward.1} parent=55 // pred_region
            // Predicated region
            $region61: #{roi_keypoint_head_forward.1} parent=59 // pred_check
              _
            $region62: #{roi_keypoint_head_forward.1} parent=59 // pred_check_branch
              %3025 = sbr.rel (0) target = $region64
            $region63: #{roi_keypoint_head_forward.1} parent=59 // pred_region
              loop: start=0, step=1, limit=1
              $region65: #{roi_keypoint_head_forward.1} parent=63 // loop_pre_header
                _
              $region66: #{roi_keypoint_head_forward.1} parent=63 // loop_header
                %s3027 = sphi 0, %s3031
                %p3028 = scmp.ge.s32.totalorder %s3027, 1
                %s3032 = sphi %s3015, %s3015
                %s3033 = sphi %s3021, %s3021
              $region67: #{roi_keypoint_head_forward.1} parent=63 // loop_header_branch
                %3030 = sbr.rel (%p3028) target = $region71
              $region68: #{roi_keypoint_head_forward.1} parent=63 // loop_body
                %v3034 = vld [vmem:[%s3032] sm:$0xff]
                %3035 = vst [vmem:[%s3033] sm:$0xff] %v3034
                %v3036 = vld [vmem:[%s3032 + $0x8] sm:$0xff]
                %3037 = vst [vmem:[%s3033 + $0x8] sm:$0xff] %v3036
                %v3038 = vld [vmem:[%s3032 + $0x10] sm:$0xff]
                %3039 = vst [vmem:[%s3033 + $0x20] sm:$0xff] %v3038
                %v3040 = vld [vmem:[%s3032 + $0x18] sm:$0xff]
                %3041 = vst [vmem:[%s3033 + $0x28] sm:$0xff] %v3040
                %v3042 = vld [vmem:[%s3032 + $0x20] sm:$0xff]
                %3043 = vst [vmem:[%s3033 + $0x40] sm:$0xff] %v3042
                %v3044 = vld [vmem:[%s3032 + $0x28] sm:$0xff]
                %3045 = vst [vmem:[%s3033 + $0x48] sm:$0xff] %v3044
              $region69: #{roi_keypoint_head_forward.1} parent=63 // loop_footer
                %s3031 = sadd.s32 1, %s3027
              $region70: #{roi_keypoint_head_forward.1} parent=63 // loop_footer_branch
                %3026 = sbr.rel target = $region66
              $region71: #{roi_keypoint_head_forward.1} parent=63 // loop_exit
                _
            $region64: #{roi_keypoint_head_forward.1} parent=59 // pred_fallthru
              _
            // Predicated region
            $region72: #{roi_keypoint_head_forward.1} parent=59 // pred_check
              _
            $region73: #{roi_keypoint_head_forward.1} parent=59 // pred_check_branch
              %3047 = sbr.rel target = $region75
            $region74: #{roi_keypoint_head_forward.1} parent=59 // pred_region
              _
            $region75: #{roi_keypoint_head_forward.1} parent=59 // pred_fallthru
              _
          $region60: #{roi_keypoint_head_forward.1} parent=55 // pred_fallthru
            _
          %3048 = vnop
        $region56: #{roi_keypoint_head_forward.1} parent=51 // pred_fallthru
          _
      $region52: #{roi_keypoint_head_forward.1} parent=5 // pred_fallthru
        _
      %p3049 = scmp.le.s32.totalorder 2, %s14
      // Predicated region
      $region76: #{roi_keypoint_head_forward.1} parent=5 // pred_check
        %p3050 = pneg %p3049
      $region77: #{roi_keypoint_head_forward.1} parent=5 // pred_check_branch
        %3052 = sbr.rel (%p3050) target = $region79
      $region78: #{roi_keypoint_head_forward.1} parent=5 // pred_region
        %s3053 = ssub.s32 %s14, 2
        // Predicated region
        $region80: #{roi_keypoint_head_forward.1} parent=78 // pred_check
          %p3054 = pneg %p216
        $region81: #{roi_keypoint_head_forward.1} parent=78 // pred_check_branch
          %3056 = sbr.rel (%p3054) target = $region83
        $region82: #{roi_keypoint_head_forward.1} parent=78 // pred_region
          %s3057 = sand.u32 %s201, 1
          %s3058 = sand.u32 %s201, 1
          %s3059 = smul.addr %s3058, 48
          %s3060 = scalar_lea.vmem [#allocation2], %s3059
        $region83: #{roi_keypoint_head_forward.1} parent=78 // pred_fallthru
          _
      $region79: #{roi_keypoint_head_forward.1} parent=5 // pred_fallthru
        _
    $region6: #{roi_keypoint_head_forward.1} parent=1 // loop_footer
      %s18 = sadd.s32 1, %s14
    $region7: #{roi_keypoint_head_forward.1} parent=1 // loop_footer_branch
      %13 = sbr.rel target = $region3
    $region8: #{roi_keypoint_head_forward.1} parent=1 // loop_exit
      _

</llo_original>
